<compile_context>
chip_gen: v7x
topology: tpu7x:2x2x1
jax: 0.10.0
libtpu: 0.0.40
codegen_flags: <defaults>
</compile_context>

<pallas_src>
import jax
import jax.numpy as jnp
import numpy as np
from jax.experimental import pallas as pl
from jax.experimental.pallas import tpu as pltpu

MAX_LENGTH = 10
SOS_token = 0


def _round_up(x, m):
    return (x + m - 1) // m * m


def _decoder_kernel(emb_ref, wi_ref, wh_ref, bi_ref, bhn_ref,
                    wout_ref, bout_ref, h0_ref,
                    logp_ref, hout_ref):
    Bp, Hp = h0_ref.shape
    Vp = emb_ref.shape[0]

    col = jax.lax.broadcasted_iota(jnp.int32, (Bp, Vp), 1)

    # weights / biases loaded once; the unrolled loop lets them stay in vregs.
    emb = emb_ref[...]
    wi = wi_ref[...]          # (Hp, 3Hp)  [r|z|n]
    wh = wh_ref[...]          # (Hp, 3Hp)  [r|z|n]
    bi = bi_ref[...]          # (1, 3Hp)   [bir+bhr | biz+bhz | bin]
    bhn = bhn_ref[...]        # (1, Hp)
    wout = wout_ref[...]      # (Hp, Vp)
    bout = bout_ref[...]      # (1, Vp)   (padded vocab lanes = -1e30)

    h = h0_ref[...]
    onehot = jnp.where(col == SOS_token, 1.0, 0.0).astype(jnp.float32)

    for step in range(MAX_LENGTH):
        # embedding lookup (one-hot matmul) + ReLU
        x = jnp.maximum(
            jnp.dot(onehot, emb, preferred_element_type=jnp.float32), 0.0)

        # fused GRU cell (PyTorch nn.GRU gate order r, z, n)
        gi = jnp.dot(x, wi, preferred_element_type=jnp.float32) + bi
        gh = jnp.dot(h, wh, preferred_element_type=jnp.float32)
        r = jax.nn.sigmoid(gi[:, 0:Hp] + gh[:, 0:Hp])
        z = jax.nn.sigmoid(gi[:, Hp:2 * Hp] + gh[:, Hp:2 * Hp])
        n = jnp.tanh(gi[:, 2 * Hp:3 * Hp] + r * (gh[:, 2 * Hp:3 * Hp] + bhn))
        h = (1.0 - z) * n + z * h

        # output projection + log_softmax along vocab
        logits = jnp.dot(h, wout, preferred_element_type=jnp.float32) + bout
        m = jnp.max(logits, axis=-1, keepdims=True)
        lse = jnp.log(jnp.sum(jnp.exp(logits - m), axis=-1, keepdims=True)) + m
        logp_ref[step] = logits - lse

        # greedy next token (first max index, like torch.topk); reuse m
        idx = jnp.min(jnp.where(logits == m, col, Vp), axis=-1, keepdims=True)
        onehot = jnp.where(col == idx, 1.0, 0.0).astype(jnp.float32)

    hout_ref[...] = h


def decoder_rnn_forward(encoder_outputs, encoder_hidden, params):
    """Mirrors DecoderRNN.forward with target_tensor=None (greedy decode)."""
    # TODO(synk): teacher-forcing branch (target_tensor is not None) not implemented.
    B = encoder_outputs.shape[0]
    H = encoder_hidden.shape[-1]
    V = params["emb"].shape[0]

    Bp = _round_up(B, 8)
    Hp = _round_up(H, 128)
    Vp = _round_up(V, 128)
    f32 = jnp.float32

    def pad2(a, r, c, fill=0.0):
        out = jnp.full((r, c), fill, f32)
        return out.at[:a.shape[0], :a.shape[1]].set(a.astype(f32))

    # concatenated + zero-padded GRU weights, order r|z|n, stored (in, out)
    wi_cat = jnp.concatenate([pad2(params["wir"], Hp, Hp),
                              pad2(params["wiz"], Hp, Hp),
                              pad2(params["win"], Hp, Hp)], axis=1)
    wh_cat = jnp.concatenate([pad2(params["whr"], Hp, Hp),
                              pad2(params["whz"], Hp, Hp),
                              pad2(params["whn"], Hp, Hp)], axis=1)
    # r,z input/hidden biases pre-summed; b_hn kept separate (needed inside r*(.))
    bi_cat = jnp.concatenate([pad2(params["bir"] + params["bhr"], 1, Hp),
                              pad2(params["biz"] + params["bhz"], 1, Hp),
                              pad2(params["bin"], 1, Hp)], axis=1)
    bhn = pad2(params["bhn"], 1, Hp)

    emb_p = pad2(params["emb"], Vp, Hp)
    wout_p = pad2(params["wout"], Hp, Vp)
    # padded vocab lanes get a huge negative bias: never win argmax, contribute
    # exp(-1e30)=0 to the softmax denominator.
    bout_p = jnp.full((1, Vp), -1e30, f32).at[:, :V].set(
        params["bout"].astype(f32))

    h0 = jnp.zeros((Bp, Hp), f32).at[:B, :H].set(
        encoder_hidden.reshape(B, H).astype(f32))

    full = lambda shape: pl.BlockSpec(shape, lambda i, s=shape: tuple(0 for _ in s))
    in_specs = [
        full((Vp, Hp)),        # embedding table
        full((Hp, 3 * Hp)),    # W_i  [r|z|n]
        full((Hp, 3 * Hp)),    # W_h  [r|z|n]
        full((1, 3 * Hp)),     # fused input biases
        full((1, Hp)),         # b_hn
        full((Hp, Vp)),        # out weight
        full((1, Vp)),         # out bias (padded lanes -1e30)
        full((Bp, Hp)),        # h0
    ]
    out_specs = [
        pl.BlockSpec((MAX_LENGTH, Bp, Vp), lambda i: (0, 0, 0)),
        pl.BlockSpec((Bp, Hp), lambda i: (0, 0)),
    ]
    out_shape = [
        jax.ShapeDtypeStruct((MAX_LENGTH, Bp, Vp), f32),
        jax.ShapeDtypeStruct((Bp, Hp), f32),
    ]

    logp_sbv, h_final = pl.pallas_call(
        _decoder_kernel,
        out_shape=out_shape,
        grid_spec=pltpu.PrefetchScalarGridSpec(
            num_scalar_prefetch=0,
            grid=(1,),
            in_specs=in_specs,
            out_specs=out_specs,
        ),
        compiler_params=pltpu.CompilerParams(
            dimension_semantics=("arbitrary",),
            vmem_limit_bytes=32 * 1024 * 1024),
    )(emb_p, wi_cat, wh_cat, bi_cat, bhn, wout_p, bout_p, h0)

    # strip padding, restore PyTorch layouts
    decoder_outputs = jnp.transpose(logp_sbv, (1, 0, 2))[:B, :, :V]   # (B, L, V)
    decoder_hidden = h_final[:B, :H][None]                            # (1, B, H)
    return decoder_outputs, decoder_hidden, None


def _ref_forward(encoder_outputs, encoder_hidden, params):
    """Pure-JAX reference matching the PyTorch semantics (greedy path)."""
    B = encoder_outputs.shape[0]
    H = encoder_hidden.shape[-1]
    h = encoder_hidden.reshape(B, H)
    token = jnp.full((B,), SOS_token, jnp.int32)
    outs = []
    for _ in range(MAX_LENGTH):
        x = jnp.maximum(params["emb"][token], 0.0)
        r = jax.nn.sigmoid(x @ params["wir"] + params["bir"] + h @ params["whr"] + params["bhr"])
        z = jax.nn.sigmoid(x @ params["wiz"] + params["biz"] + h @ params["whz"] + params["bhz"])
        n = jnp.tanh(x @ params["win"] + params["bin"] + r * (h @ params["whn"] + params["bhn"]))
        h = (1.0 - z) * n + z * h
        logits = h @ params["wout"] + params["bout"]
        outs.append(logits)
        token = jnp.argmax(logits, axis=-1).astype(jnp.int32)
    out = jnp.stack(outs, axis=1)
    return jax.nn.log_softmax(out, axis=-1), h[None], None


def _init_params(key, hidden_size, output_size):
    ks = jax.random.split(key, 16)
    s = 1.0 / np.sqrt(hidden_size)
    u = lambda k, shape: jax.random.uniform(k, shape, jnp.float32, -s, s)
    return {
        "emb": jax.random.normal(ks[0], (output_size, hidden_size), jnp.float32),
        "wir": u(ks[1], (hidden_size, hidden_size)),
        "wiz": u(ks[2], (hidden_size, hidden_size)),
        "win": u(ks[3], (hidden_size, hidden_size)),
        "whr": u(ks[4], (hidden_size, hidden_size)),
        "whz": u(ks[5], (hidden_size, hidden_size)),
        "whn": u(ks[6], (hidden_size, hidden_size)),
        "bir": u(ks[7], (1, hidden_size)),
        "biz": u(ks[8], (1, hidden_size)),
        "bin": u(ks[9], (1, hidden_size)),
        "bhr": u(ks[10], (1, hidden_size)),
        "bhz": u(ks[11], (1, hidden_size)),
        "bhn": u(ks[12], (1, hidden_size)),
        "wout": u(ks[13], (hidden_size, output_size)),
        "bout": u(ks[14], (1, output_size)),
    }


if __name__ == "__main__":
    B, SEQ, H, V = 4, 8, 32, 16   # small shapes: batch, enc seq, hidden, vocab

    key = jax.random.PRNGKey(0)
    kp, ke, kh = jax.random.split(key, 3)
    params = _init_params(kp, H, V)
    encoder_outputs = jax.random.normal(ke, (B, SEQ, H), jnp.float32)  # only size(0) used
    encoder_hidden = jax.random.normal(kh, (1, B, H), jnp.float32)     # (num_layers, B, H)

    out, hidden, _ = decoder_rnn_forward(encoder_outputs, encoder_hidden, params)
    out = jax.block_until_ready(out)
    hidden = jax.block_until_ready(hidden)

    ref_out, ref_hidden, _ = _ref_forward(encoder_outputs, encoder_hidden, params)
    np.testing.assert_allclose(np.asarray(out), np.asarray(ref_out), atol=1e-4, rtol=1e-4)
    np.testing.assert_allclose(np.asarray(hidden), np.asarray(ref_hidden), atol=1e-4, rtol=1e-4)

    print("KERNEL_OK")
</pallas_src>

<mosaic_0001>
module attributes {stable_mosaic.version = 11 : i64} {
  func.func @_decoder_kernel(%arg0: i32, %arg1: memref<128x128xf32, #tpu.memory_space<vmem>>, %arg2: memref<128x384xf32, #tpu.memory_space<vmem>>, %arg3: memref<128x384xf32, #tpu.memory_space<vmem>>, %arg4: memref<1x384xf32, #tpu.memory_space<vmem>>, %arg5: memref<1x128xf32, #tpu.memory_space<vmem>>, %arg6: memref<128x128xf32, #tpu.memory_space<vmem>>, %arg7: memref<1x128xf32, #tpu.memory_space<vmem>>, %arg8: memref<8x128xf32, #tpu.memory_space<vmem>>, %arg9: memref<10x8x128xf32, #tpu.memory_space<vmem>>, %arg10: memref<8x128xf32, #tpu.memory_space<vmem>>) attributes {dimension_semantics = [#tpu.dimension_semantics<arbitrary>], iteration_bounds = array<i64: 1>, scalar_prefetch = 0 : i64, scratch_operands = 0 : i64, tpu.core_type = #tpu.core_type<tc>, window_params = [{pipeline_mode = #tpu.pipeline_mode<synchronous>, transform_indices = @transform_0, window_bounds = array<i64: 128, 128>}, {pipeline_mode = #tpu.pipeline_mode<synchronous>, transform_indices = @transform_1, window_bounds = array<i64: 128, 384>}, {pipeline_mode = #tpu.pipeline_mode<synchronous>, transform_indices = @transform_2, window_bounds = array<i64: 128, 384>}, {pipeline_mode = #tpu.pipeline_mode<synchronous>, transform_indices = @transform_3, window_bounds = array<i64: 1, 384>}, {pipeline_mode = #tpu.pipeline_mode<synchronous>, transform_indices = @transform_4, window_bounds = array<i64: 1, 128>}, {pipeline_mode = #tpu.pipeline_mode<synchronous>, transform_indices = @transform_5, window_bounds = array<i64: 128, 128>}, {pipeline_mode = #tpu.pipeline_mode<synchronous>, transform_indices = @transform_6, window_bounds = array<i64: 1, 128>}, {pipeline_mode = #tpu.pipeline_mode<synchronous>, transform_indices = @transform_7, window_bounds = array<i64: 8, 128>}, {pipeline_mode = #tpu.pipeline_mode<synchronous>, transform_indices = @transform_8, window_bounds = array<i64: 10, 8, 128>}, {pipeline_mode = #tpu.pipeline_mode<synchronous>, transform_indices = @transform_9, window_bounds = array<i64: 8, 128>}]} {
    %0 = tpu.iota {dimensions = array<i32: 1>} : vector<8x128xi32>
    %c0 = arith.constant 0 : index
    %c0_0 = arith.constant 0 : index
    %1 = vector.load %arg1[%c0, %c0_0] : memref<128x128xf32, #tpu.memory_space<vmem>>, vector<128x128xf32>
    %c0_1 = arith.constant 0 : index
    %c0_2 = arith.constant 0 : index
    %2 = vector.load %arg2[%c0_1, %c0_2] : memref<128x384xf32, #tpu.memory_space<vmem>>, vector<128x384xf32>
    %c0_3 = arith.constant 0 : index
    %c0_4 = arith.constant 0 : index
    %3 = vector.load %arg3[%c0_3, %c0_4] : memref<128x384xf32, #tpu.memory_space<vmem>>, vector<128x384xf32>
    %c0_5 = arith.constant 0 : index
    %c0_6 = arith.constant 0 : index
    %4 = vector.load %arg4[%c0_5, %c0_6] : memref<1x384xf32, #tpu.memory_space<vmem>>, vector<1x384xf32>
    %c0_7 = arith.constant 0 : index
    %c0_8 = arith.constant 0 : index
    %5 = vector.load %arg5[%c0_7, %c0_8] : memref<1x128xf32, #tpu.memory_space<vmem>>, vector<1x128xf32>
    %c0_9 = arith.constant 0 : index
    %c0_10 = arith.constant 0 : index
    %6 = vector.load %arg6[%c0_9, %c0_10] : memref<128x128xf32, #tpu.memory_space<vmem>>, vector<128x128xf32>
    %c0_11 = arith.constant 0 : index
    %c0_12 = arith.constant 0 : index
    %7 = vector.load %arg7[%c0_11, %c0_12] : memref<1x128xf32, #tpu.memory_space<vmem>>, vector<1x128xf32>
    %c0_13 = arith.constant 0 : index
    %c0_14 = arith.constant 0 : index
    %8 = vector.load %arg8[%c0_13, %c0_14] : memref<8x128xf32, #tpu.memory_space<vmem>>, vector<8x128xf32>
    %c0_i32 = arith.constant 0 : i32
    %9 = vector.broadcast %c0_i32 : i32 to vector<8x128xi32>
    %10 = arith.cmpi eq, %0, %9 : vector<8x128xi32>
    %cst = arith.constant 1.000000e+00 : f32
    %cst_15 = arith.constant 0.000000e+00 : f32
    %11 = vector.broadcast %cst : f32 to vector<8x128xf32>
    %12 = vector.broadcast %cst_15 : f32 to vector<8x128xf32>
    %13 = arith.select %10, %11, %12 : vector<8x128xi1>, vector<8x128xf32>
    %cst_16 = arith.constant dense<0.000000e+00> : vector<8x128xf32>
    %14 = tpu.matmul %13, %1, %cst_16 {dimension_numbers = #tpu.dot_dimension_numbers<[1], [0], [0], [1], [0, 0, 1, 1], [], []>} : vector<8x128xf32>, vector<128x128xf32>, vector<8x128xf32> -> vector<8x128xf32>
    %cst_17 = arith.constant 0.000000e+00 : f32
    %15 = vector.broadcast %cst_17 : f32 to vector<8x128xf32>
    %16 = arith.maximumf %14, %15 : vector<8x128xf32>
    %cst_18 = arith.constant dense<0.000000e+00> : vector<8x384xf32>
    %17 = tpu.matmul %16, %2, %cst_18 {dimension_numbers = #tpu.dot_dimension_numbers<[1], [0], [0], [1], [0, 0, 1, 1], [], []>} : vector<8x128xf32>, vector<128x384xf32>, vector<8x384xf32> -> vector<8x384xf32>
    %18 = vector.broadcast %4 : vector<1x384xf32> to vector<8x384xf32>
    %19 = arith.addf %17, %18 : vector<8x384xf32>
    %cst_19 = arith.constant dense<0.000000e+00> : vector<8x384xf32>
    %20 = tpu.matmul %8, %3, %cst_19 {dimension_numbers = #tpu.dot_dimension_numbers<[1], [0], [0], [1], [0, 0, 1, 1], [], []>} : vector<8x128xf32>, vector<128x384xf32>, vector<8x384xf32> -> vector<8x384xf32>
    %21 = vector.extract_strided_slice %19 {offsets = [0, 0], sizes = [8, 128], strides = [1, 1]} : vector<8x384xf32> to vector<8x128xf32>
    %22 = vector.extract_strided_slice %20 {offsets = [0, 0], sizes = [8, 128], strides = [1, 1]} : vector<8x384xf32> to vector<8x128xf32>
    %23 = arith.addf %21, %22 : vector<8x128xf32>
    %24 = arith.negf %23 : vector<8x128xf32>
    %25 = math.exp %24 : vector<8x128xf32>
    %cst_20 = arith.constant 1.000000e+00 : f32
    %26 = vector.broadcast %cst_20 : f32 to vector<8x128xf32>
    %27 = arith.addf %26, %25 : vector<8x128xf32>
    %28 = arith.divf %26, %27 : vector<8x128xf32>
    %29 = vector.extract_strided_slice %19 {offsets = [0, 128], sizes = [8, 128], strides = [1, 1]} : vector<8x384xf32> to vector<8x128xf32>
    %30 = vector.extract_strided_slice %20 {offsets = [0, 128], sizes = [8, 128], strides = [1, 1]} : vector<8x384xf32> to vector<8x128xf32>
    %31 = arith.addf %29, %30 : vector<8x128xf32>
    %32 = arith.negf %31 : vector<8x128xf32>
    %33 = math.exp %32 : vector<8x128xf32>
    %cst_21 = arith.constant 1.000000e+00 : f32
    %34 = vector.broadcast %cst_21 : f32 to vector<8x128xf32>
    %35 = arith.addf %34, %33 : vector<8x128xf32>
    %36 = arith.divf %34, %35 : vector<8x128xf32>
    %37 = vector.extract_strided_slice %19 {offsets = [0, 256], sizes = [8, 128], strides = [1, 1]} : vector<8x384xf32> to vector<8x128xf32>
    %38 = vector.extract_strided_slice %20 {offsets = [0, 256], sizes = [8, 128], strides = [1, 1]} : vector<8x384xf32> to vector<8x128xf32>
    %39 = vector.broadcast %5 : vector<1x128xf32> to vector<8x128xf32>
    %40 = arith.addf %38, %39 : vector<8x128xf32>
    %41 = arith.mulf %28, %40 : vector<8x128xf32>
    %42 = arith.addf %37, %41 : vector<8x128xf32>
    %43 = math.tanh %42 : vector<8x128xf32>
    %cst_22 = arith.constant 1.000000e+00 : f32
    %44 = vector.broadcast %cst_22 : f32 to vector<8x128xf32>
    %45 = arith.subf %44, %36 : vector<8x128xf32>
    %46 = arith.mulf %45, %43 : vector<8x128xf32>
    %47 = arith.mulf %36, %8 : vector<8x128xf32>
    %48 = arith.addf %46, %47 : vector<8x128xf32>
    %cst_23 = arith.constant dense<0.000000e+00> : vector<8x128xf32>
    %49 = tpu.matmul %48, %6, %cst_23 {dimension_numbers = #tpu.dot_dimension_numbers<[1], [0], [0], [1], [0, 0, 1, 1], [], []>} : vector<8x128xf32>, vector<128x128xf32>, vector<8x128xf32> -> vector<8x128xf32>
    %50 = vector.broadcast %7 : vector<1x128xf32> to vector<8x128xf32>
    %51 = arith.addf %49, %50 : vector<8x128xf32>
    %cst_24 = arith.constant dense<0xFF800000> : vector<8xf32>
    %52 = vector.multi_reduction <maximumf>, %51, %cst_24 [1] : vector<8x128xf32> to vector<8xf32>
    %53 = vector.shape_cast %52 : vector<8xf32> to vector<8x1xf32>
    %54 = vector.broadcast %53 : vector<8x1xf32> to vector<8x128xf32>
    %55 = arith.subf %51, %54 : vector<8x128xf32>
    %56 = math.exp %55 : vector<8x128xf32>
    %cst_25 = arith.constant dense<0.000000e+00> : vector<8xf32>
    %57 = vector.multi_reduction <add>, %56, %cst_25 [1] : vector<8x128xf32> to vector<8xf32>
    %58 = vector.shape_cast %57 : vector<8xf32> to vector<8x1xf32>
    %59 = math.log %58 : vector<8x1xf32>
    %60 = arith.addf %59, %53 : vector<8x1xf32>
    %61 = vector.broadcast %60 : vector<8x1xf32> to vector<8x128xf32>
    %62 = arith.subf %51, %61 : vector<8x128xf32>
    %c0_26 = arith.constant 0 : index
    %c0_27 = arith.constant 0 : index
    %c0_28 = arith.constant 0 : index
    %63 = vector.load %arg9[%c0_26, %c0_27, %c0_28] : memref<10x8x128xf32, #tpu.memory_space<vmem>>, vector<1x8x128xf32>
    %64 = vector.shape_cast %63 : vector<1x8x128xf32> to vector<8x128xf32>
    %65 = vector.shape_cast %62 : vector<8x128xf32> to vector<1x8x128xf32>
    tpu.vector_store %arg9[%c0_26, %c0_27, %c0_28], %65 {strides = array<i32>} : memref<10x8x128xf32, #tpu.memory_space<vmem>>, vector<1x8x128xf32>,
    %66 = vector.broadcast %53 : vector<8x1xf32> to vector<8x128xf32>
    %67 = arith.cmpf oeq, %51, %66 : vector<8x128xf32>
    %c128_i32 = arith.constant 128 : i32
    %68 = vector.broadcast %c128_i32 : i32 to vector<8x128xi32>
    %69 = arith.select %67, %0, %68 : vector<8x128xi1>, vector<8x128xi32>
    %cst_29 = arith.constant dense<2147483647> : vector<8xi32>
    %70 = vector.multi_reduction <minsi>, %69, %cst_29 [1] : vector<8x128xi32> to vector<8xi32>
    %71 = vector.shape_cast %70 : vector<8xi32> to vector<8x1xi32>
    %72 = vector.broadcast %71 : vector<8x1xi32> to vector<8x128xi32>
    %73 = arith.cmpi eq, %0, %72 : vector<8x128xi32>
    %cst_30 = arith.constant 1.000000e+00 : f32
    %cst_31 = arith.constant 0.000000e+00 : f32
    %74 = vector.broadcast %cst_30 : f32 to vector<8x128xf32>
    %75 = vector.broadcast %cst_31 : f32 to vector<8x128xf32>
    %76 = arith.select %73, %74, %75 : vector<8x128xi1>, vector<8x128xf32>
    %cst_32 = arith.constant dense<0.000000e+00> : vector<8x128xf32>
    %77 = tpu.matmul %76, %1, %cst_32 {dimension_numbers = #tpu.dot_dimension_numbers<[1], [0], [0], [1], [0, 0, 1, 1], [], []>} : vector<8x128xf32>, vector<128x128xf32>, vector<8x128xf32> -> vector<8x128xf32>
    %cst_33 = arith.constant 0.000000e+00 : f32
    %78 = vector.broadcast %cst_33 : f32 to vector<8x128xf32>
    %79 = arith.maximumf %77, %78 : vector<8x128xf32>
    %cst_34 = arith.constant dense<0.000000e+00> : vector<8x384xf32>
    %80 = tpu.matmul %79, %2, %cst_34 {dimension_numbers = #tpu.dot_dimension_numbers<[1], [0], [0], [1], [0, 0, 1, 1], [], []>} : vector<8x128xf32>, vector<128x384xf32>, vector<8x384xf32> -> vector<8x384xf32>
    %81 = vector.broadcast %4 : vector<1x384xf32> to vector<8x384xf32>
    %82 = arith.addf %80, %81 : vector<8x384xf32>
    %cst_35 = arith.constant dense<0.000000e+00> : vector<8x384xf32>
    %83 = tpu.matmul %48, %3, %cst_35 {dimension_numbers = #tpu.dot_dimension_numbers<[1], [0], [0], [1], [0, 0, 1, 1], [], []>} : vector<8x128xf32>, vector<128x384xf32>, vector<8x384xf32> -> vector<8x384xf32>
    %84 = vector.extract_strided_slice %82 {offsets = [0, 0], sizes = [8, 128], strides = [1, 1]} : vector<8x384xf32> to vector<8x128xf32>
    %85 = vector.extract_strided_slice %83 {offsets = [0, 0], sizes = [8, 128], strides = [1, 1]} : vector<8x384xf32> to vector<8x128xf32>
    %86 = arith.addf %84, %85 : vector<8x128xf32>
    %87 = arith.negf %86 : vector<8x128xf32>
    %88 = math.exp %87 : vector<8x128xf32>
    %cst_36 = arith.constant 1.000000e+00 : f32
    %89 = vector.broadcast %cst_36 : f32 to vector<8x128xf32>
    %90 = arith.addf %89, %88 : vector<8x128xf32>
    %91 = arith.divf %89, %90 : vector<8x128xf32>
    %92 = vector.extract_strided_slice %82 {offsets = [0, 128], sizes = [8, 128], strides = [1, 1]} : vector<8x384xf32> to vector<8x128xf32>
    %93 = vector.extract_strided_slice %83 {offsets = [0, 128], sizes = [8, 128], strides = [1, 1]} : vector<8x384xf32> to vector<8x128xf32>
    %94 = arith.addf %92, %93 : vector<8x128xf32>
    %95 = arith.negf %94 : vector<8x128xf32>
    %96 = math.exp %95 : vector<8x128xf32>
    %cst_37 = arith.constant 1.000000e+00 : f32
    %97 = vector.broadcast %cst_37 : f32 to vector<8x128xf32>
    %98 = arith.addf %97, %96 : vector<8x128xf32>
    %99 = arith.divf %97, %98 : vector<8x128xf32>
    %100 = vector.extract_strided_slice %82 {offsets = [0, 256], sizes = [8, 128], strides = [1, 1]} : vector<8x384xf32> to vector<8x128xf32>
    %101 = vector.extract_strided_slice %83 {offsets = [0, 256], sizes = [8, 128], strides = [1, 1]} : vector<8x384xf32> to vector<8x128xf32>
    %102 = vector.broadcast %5 : vector<1x128xf32> to vector<8x128xf32>
    %103 = arith.addf %101, %102 : vector<8x128xf32>
    %104 = arith.mulf %91, %103 : vector<8x128xf32>
    %105 = arith.addf %100, %104 : vector<8x128xf32>
    %106 = math.tanh %105 : vector<8x128xf32>
    %cst_38 = arith.constant 1.000000e+00 : f32
    %107 = vector.broadcast %cst_38 : f32 to vector<8x128xf32>
    %108 = arith.subf %107, %99 : vector<8x128xf32>
    %109 = arith.mulf %108, %106 : vector<8x128xf32>
    %110 = arith.mulf %99, %48 : vector<8x128xf32>
    %111 = arith.addf %109, %110 : vector<8x128xf32>
    %cst_39 = arith.constant dense<0.000000e+00> : vector<8x128xf32>
    %112 = tpu.matmul %111, %6, %cst_39 {dimension_numbers = #tpu.dot_dimension_numbers<[1], [0], [0], [1], [0, 0, 1, 1], [], []>} : vector<8x128xf32>, vector<128x128xf32>, vector<8x128xf32> -> vector<8x128xf32>
    %113 = vector.broadcast %7 : vector<1x128xf32> to vector<8x128xf32>
    %114 = arith.addf %112, %113 : vector<8x128xf32>
    %cst_40 = arith.constant dense<0xFF800000> : vector<8xf32>
    %115 = vector.multi_reduction <maximumf>, %114, %cst_40 [1] : vector<8x128xf32> to vector<8xf32>
    %116 = vector.shape_cast %115 : vector<8xf32> to vector<8x1xf32>
    %117 = vector.broadcast %116 : vector<8x1xf32> to vector<8x128xf32>
    %118 = arith.subf %114, %117 : vector<8x128xf32>
    %119 = math.exp %118 : vector<8x128xf32>
    %cst_41 = arith.constant dense<0.000000e+00> : vector<8xf32>
    %120 = vector.multi_reduction <add>, %119, %cst_41 [1] : vector<8x128xf32> to vector<8xf32>
    %121 = vector.shape_cast %120 : vector<8xf32> to vector<8x1xf32>
    %122 = math.log %121 : vector<8x1xf32>
    %123 = arith.addf %122, %116 : vector<8x1xf32>
    %124 = vector.broadcast %123 : vector<8x1xf32> to vector<8x128xf32>
    %125 = arith.subf %114, %124 : vector<8x128xf32>
    %c1 = arith.constant 1 : index
    %c0_42 = arith.constant 0 : index
    %c0_43 = arith.constant 0 : index
    %126 = vector.load %arg9[%c1, %c0_42, %c0_43] : memref<10x8x128xf32, #tpu.memory_space<vmem>>, vector<1x8x128xf32>
    %127 = vector.shape_cast %126 : vector<1x8x128xf32> to vector<8x128xf32>
    %128 = vector.shape_cast %125 : vector<8x128xf32> to vector<1x8x128xf32>
    tpu.vector_store %arg9[%c1, %c0_42, %c0_43], %128 {strides = array<i32>} : memref<10x8x128xf32, #tpu.memory_space<vmem>>, vector<1x8x128xf32>,
    %129 = vector.broadcast %116 : vector<8x1xf32> to vector<8x128xf32>
    %130 = arith.cmpf oeq, %114, %129 : vector<8x128xf32>
    %c128_i32_44 = arith.constant 128 : i32
    %131 = vector.broadcast %c128_i32_44 : i32 to vector<8x128xi32>
    %132 = arith.select %130, %0, %131 : vector<8x128xi1>, vector<8x128xi32>
    %cst_45 = arith.constant dense<2147483647> : vector<8xi32>
    %133 = vector.multi_reduction <minsi>, %132, %cst_45 [1] : vector<8x128xi32> to vector<8xi32>
    %134 = vector.shape_cast %133 : vector<8xi32> to vector<8x1xi32>
    %135 = vector.broadcast %134 : vector<8x1xi32> to vector<8x128xi32>
    %136 = arith.cmpi eq, %0, %135 : vector<8x128xi32>
    %cst_46 = arith.constant 1.000000e+00 : f32
    %cst_47 = arith.constant 0.000000e+00 : f32
    %137 = vector.broadcast %cst_46 : f32 to vector<8x128xf32>
    %138 = vector.broadcast %cst_47 : f32 to vector<8x128xf32>
    %139 = arith.select %136, %137, %138 : vector<8x128xi1>, vector<8x128xf32>
    %cst_48 = arith.constant dense<0.000000e+00> : vector<8x128xf32>
    %140 = tpu.matmul %139, %1, %cst_48 {dimension_numbers = #tpu.dot_dimension_numbers<[1], [0], [0], [1], [0, 0, 1, 1], [], []>} : vector<8x128xf32>, vector<128x128xf32>, vector<8x128xf32> -> vector<8x128xf32>
    %cst_49 = arith.constant 0.000000e+00 : f32
    %141 = vector.broadcast %cst_49 : f32 to vector<8x128xf32>
    %142 = arith.maximumf %140, %141 : vector<8x128xf32>
    %cst_50 = arith.constant dense<0.000000e+00> : vector<8x384xf32>
    %143 = tpu.matmul %142, %2, %cst_50 {dimension_numbers = #tpu.dot_dimension_numbers<[1], [0], [0], [1], [0, 0, 1, 1], [], []>} : vector<8x128xf32>, vector<128x384xf32>, vector<8x384xf32> -> vector<8x384xf32>
    %144 = vector.broadcast %4 : vector<1x384xf32> to vector<8x384xf32>
    %145 = arith.addf %143, %144 : vector<8x384xf32>
    %cst_51 = arith.constant dense<0.000000e+00> : vector<8x384xf32>
    %146 = tpu.matmul %111, %3, %cst_51 {dimension_numbers = #tpu.dot_dimension_numbers<[1], [0], [0], [1], [0, 0, 1, 1], [], []>} : vector<8x128xf32>, vector<128x384xf32>, vector<8x384xf32> -> vector<8x384xf32>
    %147 = vector.extract_strided_slice %145 {offsets = [0, 0], sizes = [8, 128], strides = [1, 1]} : vector<8x384xf32> to vector<8x128xf32>
    %148 = vector.extract_strided_slice %146 {offsets = [0, 0], sizes = [8, 128], strides = [1, 1]} : vector<8x384xf32> to vector<8x128xf32>
    %149 = arith.addf %147, %148 : vector<8x128xf32>
    %150 = arith.negf %149 : vector<8x128xf32>
    %151 = math.exp %150 : vector<8x128xf32>
    %cst_52 = arith.constant 1.000000e+00 : f32
    %152 = vector.broadcast %cst_52 : f32 to vector<8x128xf32>
    %153 = arith.addf %152, %151 : vector<8x128xf32>
    %154 = arith.divf %152, %153 : vector<8x128xf32>
    %155 = vector.extract_strided_slice %145 {offsets = [0, 128], sizes = [8, 128], strides = [1, 1]} : vector<8x384xf32> to vector<8x128xf32>
    %156 = vector.extract_strided_slice %146 {offsets = [0, 128], sizes = [8, 128], strides = [1, 1]} : vector<8x384xf32> to vector<8x128xf32>
    %157 = arith.addf %155, %156 : vector<8x128xf32>
    %158 = arith.negf %157 : vector<8x128xf32>
    %159 = math.exp %158 : vector<8x128xf32>
    %cst_53 = arith.constant 1.000000e+00 : f32
    %160 = vector.broadcast %cst_53 : f32 to vector<8x128xf32>
    %161 = arith.addf %160, %159 : vector<8x128xf32>
    %162 = arith.divf %160, %161 : vector<8x128xf32>
    %163 = vector.extract_strided_slice %145 {offsets = [0, 256], sizes = [8, 128], strides = [1, 1]} : vector<8x384xf32> to vector<8x128xf32>
    %164 = vector.extract_strided_slice %146 {offsets = [0, 256], sizes = [8, 128], strides = [1, 1]} : vector<8x384xf32> to vector<8x128xf32>
    %165 = vector.broadcast %5 : vector<1x128xf32> to vector<8x128xf32>
    %166 = arith.addf %164, %165 : vector<8x128xf32>
    %167 = arith.mulf %154, %166 : vector<8x128xf32>
    %168 = arith.addf %163, %167 : vector<8x128xf32>
    %169 = math.tanh %168 : vector<8x128xf32>
    %cst_54 = arith.constant 1.000000e+00 : f32
    %170 = vector.broadcast %cst_54 : f32 to vector<8x128xf32>
    %171 = arith.subf %170, %162 : vector<8x128xf32>
    %172 = arith.mulf %171, %169 : vector<8x128xf32>
    %173 = arith.mulf %162, %111 : vector<8x128xf32>
    %174 = arith.addf %172, %173 : vector<8x128xf32>
    %cst_55 = arith.constant dense<0.000000e+00> : vector<8x128xf32>
    %175 = tpu.matmul %174, %6, %cst_55 {dimension_numbers = #tpu.dot_dimension_numbers<[1], [0], [0], [1], [0, 0, 1, 1], [], []>} : vector<8x128xf32>, vector<128x128xf32>, vector<8x128xf32> -> vector<8x128xf32>
    %176 = vector.broadcast %7 : vector<1x128xf32> to vector<8x128xf32>
    %177 = arith.addf %175, %176 : vector<8x128xf32>
    %cst_56 = arith.constant dense<0xFF800000> : vector<8xf32>
    %178 = vector.multi_reduction <maximumf>, %177, %cst_56 [1] : vector<8x128xf32> to vector<8xf32>
    %179 = vector.shape_cast %178 : vector<8xf32> to vector<8x1xf32>
    %180 = vector.broadcast %179 : vector<8x1xf32> to vector<8x128xf32>
    %181 = arith.subf %177, %180 : vector<8x128xf32>
    %182 = math.exp %181 : vector<8x128xf32>
    %cst_57 = arith.constant dense<0.000000e+00> : vector<8xf32>
    %183 = vector.multi_reduction <add>, %182, %cst_57 [1] : vector<8x128xf32> to vector<8xf32>
    %184 = vector.shape_cast %183 : vector<8xf32> to vector<8x1xf32>
    %185 = math.log %184 : vector<8x1xf32>
    %186 = arith.addf %185, %179 : vector<8x1xf32>
    %187 = vector.broadcast %186 : vector<8x1xf32> to vector<8x128xf32>
    %188 = arith.subf %177, %187 : vector<8x128xf32>
    %c2 = arith.constant 2 : index
    %c0_58 = arith.constant 0 : index
    %c0_59 = arith.constant 0 : index
    %189 = vector.load %arg9[%c2, %c0_58, %c0_59] : memref<10x8x128xf32, #tpu.memory_space<vmem>>, vector<1x8x128xf32>
    %190 = vector.shape_cast %189 : vector<1x8x128xf32> to vector<8x128xf32>
    %191 = vector.shape_cast %188 : vector<8x128xf32> to vector<1x8x128xf32>
    tpu.vector_store %arg9[%c2, %c0_58, %c0_59], %191 {strides = array<i32>} : memref<10x8x128xf32, #tpu.memory_space<vmem>>, vector<1x8x128xf32>,
    %192 = vector.broadcast %179 : vector<8x1xf32> to vector<8x128xf32>
    %193 = arith.cmpf oeq, %177, %192 : vector<8x128xf32>
    %c128_i32_60 = arith.constant 128 : i32
    %194 = vector.broadcast %c128_i32_60 : i32 to vector<8x128xi32>
    %195 = arith.select %193, %0, %194 : vector<8x128xi1>, vector<8x128xi32>
    %cst_61 = arith.constant dense<2147483647> : vector<8xi32>
    %196 = vector.multi_reduction <minsi>, %195, %cst_61 [1] : vector<8x128xi32> to vector<8xi32>
    %197 = vector.shape_cast %196 : vector<8xi32> to vector<8x1xi32>
    %198 = vector.broadcast %197 : vector<8x1xi32> to vector<8x128xi32>
    %199 = arith.cmpi eq, %0, %198 : vector<8x128xi32>
    %cst_62 = arith.constant 1.000000e+00 : f32
    %cst_63 = arith.constant 0.000000e+00 : f32
    %200 = vector.broadcast %cst_62 : f32 to vector<8x128xf32>
    %201 = vector.broadcast %cst_63 : f32 to vector<8x128xf32>
    %202 = arith.select %199, %200, %201 : vector<8x128xi1>, vector<8x128xf32>
    %cst_64 = arith.constant dense<0.000000e+00> : vector<8x128xf32>
    %203 = tpu.matmul %202, %1, %cst_64 {dimension_numbers = #tpu.dot_dimension_numbers<[1], [0], [0], [1], [0, 0, 1, 1], [], []>} : vector<8x128xf32>, vector<128x128xf32>, vector<8x128xf32> -> vector<8x128xf32>
    %cst_65 = arith.constant 0.000000e+00 : f32
    %204 = vector.broadcast %cst_65 : f32 to vector<8x128xf32>
    %205 = arith.maximumf %203, %204 : vector<8x128xf32>
    %cst_66 = arith.constant dense<0.000000e+00> : vector<8x384xf32>
    %206 = tpu.matmul %205, %2, %cst_66 {dimension_numbers = #tpu.dot_dimension_numbers<[1], [0], [0], [1], [0, 0, 1, 1], [], []>} : vector<8x128xf32>, vector<128x384xf32>, vector<8x384xf32> -> vector<8x384xf32>
    %207 = vector.broadcast %4 : vector<1x384xf32> to vector<8x384xf32>
    %208 = arith.addf %206, %207 : vector<8x384xf32>
    %cst_67 = arith.constant dense<0.000000e+00> : vector<8x384xf32>
    %209 = tpu.matmul %174, %3, %cst_67 {dimension_numbers = #tpu.dot_dimension_numbers<[1], [0], [0], [1], [0, 0, 1, 1], [], []>} : vector<8x128xf32>, vector<128x384xf32>, vector<8x384xf32> -> vector<8x384xf32>
    %210 = vector.extract_strided_slice %208 {offsets = [0, 0], sizes = [8, 128], strides = [1, 1]} : vector<8x384xf32> to vector<8x128xf32>
    %211 = vector.extract_strided_slice %209 {offsets = [0, 0], sizes = [8, 128], strides = [1, 1]} : vector<8x384xf32> to vector<8x128xf32>
    %212 = arith.addf %210, %211 : vector<8x128xf32>
    %213 = arith.negf %212 : vector<8x128xf32>
    %214 = math.exp %213 : vector<8x128xf32>
    %cst_68 = arith.constant 1.000000e+00 : f32
    %215 = vector.broadcast %cst_68 : f32 to vector<8x128xf32>
    %216 = arith.addf %215, %214 : vector<8x128xf32>
    %217 = arith.divf %215, %216 : vector<8x128xf32>
    %218 = vector.extract_strided_slice %208 {offsets = [0, 128], sizes = [8, 128], strides = [1, 1]} : vector<8x384xf32> to vector<8x128xf32>
    %219 = vector.extract_strided_slice %209 {offsets = [0, 128], sizes = [8, 128], strides = [1, 1]} : vector<8x384xf32> to vector<8x128xf32>
    %220 = arith.addf %218, %219 : vector<8x128xf32>
    %221 = arith.negf %220 : vector<8x128xf32>
    %222 = math.exp %221 : vector<8x128xf32>
    %cst_69 = arith.constant 1.000000e+00 : f32
    %223 = vector.broadcast %cst_69 : f32 to vector<8x128xf32>
    %224 = arith.addf %223, %222 : vector<8x128xf32>
    %225 = arith.divf %223, %224 : vector<8x128xf32>
    %226 = vector.extract_strided_slice %208 {offsets = [0, 256], sizes = [8, 128], strides = [1, 1]} : vector<8x384xf32> to vector<8x128xf32>
    %227 = vector.extract_strided_slice %209 {offsets = [0, 256], sizes = [8, 128], strides = [1, 1]} : vector<8x384xf32> to vector<8x128xf32>
    %228 = vector.broadcast %5 : vector<1x128xf32> to vector<8x128xf32>
    %229 = arith.addf %227, %228 : vector<8x128xf32>
    %230 = arith.mulf %217, %229 : vector<8x128xf32>
    %231 = arith.addf %226, %230 : vector<8x128xf32>
    %232 = math.tanh %231 : vector<8x128xf32>
    %cst_70 = arith.constant 1.000000e+00 : f32
    %233 = vector.broadcast %cst_70 : f32 to vector<8x128xf32>
    %234 = arith.subf %233, %225 : vector<8x128xf32>
    %235 = arith.mulf %234, %232 : vector<8x128xf32>
    %236 = arith.mulf %225, %174 : vector<8x128xf32>
    %237 = arith.addf %235, %236 : vector<8x128xf32>
    %cst_71 = arith.constant dense<0.000000e+00> : vector<8x128xf32>
    %238 = tpu.matmul %237, %6, %cst_71 {dimension_numbers = #tpu.dot_dimension_numbers<[1], [0], [0], [1], [0, 0, 1, 1], [], []>} : vector<8x128xf32>, vector<128x128xf32>, vector<8x128xf32> -> vector<8x128xf32>
    %239 = vector.broadcast %7 : vector<1x128xf32> to vector<8x128xf32>
    %240 = arith.addf %238, %239 : vector<8x128xf32>
    %cst_72 = arith.constant dense<0xFF800000> : vector<8xf32>
    %241 = vector.multi_reduction <maximumf>, %240, %cst_72 [1] : vector<8x128xf32> to vector<8xf32>
    %242 = vector.shape_cast %241 : vector<8xf32> to vector<8x1xf32>
    %243 = vector.broadcast %242 : vector<8x1xf32> to vector<8x128xf32>
    %244 = arith.subf %240, %243 : vector<8x128xf32>
    %245 = math.exp %244 : vector<8x128xf32>
    %cst_73 = arith.constant dense<0.000000e+00> : vector<8xf32>
    %246 = vector.multi_reduction <add>, %245, %cst_73 [1] : vector<8x128xf32> to vector<8xf32>
    %247 = vector.shape_cast %246 : vector<8xf32> to vector<8x1xf32>
    %248 = math.log %247 : vector<8x1xf32>
    %249 = arith.addf %248, %242 : vector<8x1xf32>
    %250 = vector.broadcast %249 : vector<8x1xf32> to vector<8x128xf32>
    %251 = arith.subf %240, %250 : vector<8x128xf32>
    %c3 = arith.constant 3 : index
    %c0_74 = arith.constant 0 : index
    %c0_75 = arith.constant 0 : index
    %252 = vector.load %arg9[%c3, %c0_74, %c0_75] : memref<10x8x128xf32, #tpu.memory_space<vmem>>, vector<1x8x128xf32>
    %253 = vector.shape_cast %252 : vector<1x8x128xf32> to vector<8x128xf32>
    %254 = vector.shape_cast %251 : vector<8x128xf32> to vector<1x8x128xf32>
    tpu.vector_store %arg9[%c3, %c0_74, %c0_75], %254 {strides = array<i32>} : memref<10x8x128xf32, #tpu.memory_space<vmem>>, vector<1x8x128xf32>,
    %255 = vector.broadcast %242 : vector<8x1xf32> to vector<8x128xf32>
    %256 = arith.cmpf oeq, %240, %255 : vector<8x128xf32>
    %c128_i32_76 = arith.constant 128 : i32
    %257 = vector.broadcast %c128_i32_76 : i32 to vector<8x128xi32>
    %258 = arith.select %256, %0, %257 : vector<8x128xi1>, vector<8x128xi32>
    %cst_77 = arith.constant dense<2147483647> : vector<8xi32>
    %259 = vector.multi_reduction <minsi>, %258, %cst_77 [1] : vector<8x128xi32> to vector<8xi32>
    %260 = vector.shape_cast %259 : vector<8xi32> to vector<8x1xi32>
    %261 = vector.broadcast %260 : vector<8x1xi32> to vector<8x128xi32>
    %262 = arith.cmpi eq, %0, %261 : vector<8x128xi32>
    %cst_78 = arith.constant 1.000000e+00 : f32
    %cst_79 = arith.constant 0.000000e+00 : f32
    %263 = vector.broadcast %cst_78 : f32 to vector<8x128xf32>
    %264 = vector.broadcast %cst_79 : f32 to vector<8x128xf32>
    %265 = arith.select %262, %263, %264 : vector<8x128xi1>, vector<8x128xf32>
    %cst_80 = arith.constant dense<0.000000e+00> : vector<8x128xf32>
    %266 = tpu.matmul %265, %1, %cst_80 {dimension_numbers = #tpu.dot_dimension_numbers<[1], [0], [0], [1], [0, 0, 1, 1], [], []>} : vector<8x128xf32>, vector<128x128xf32>, vector<8x128xf32> -> vector<8x128xf32>
    %cst_81 = arith.constant 0.000000e+00 : f32
    %267 = vector.broadcast %cst_81 : f32 to vector<8x128xf32>
    %268 = arith.maximumf %266, %267 : vector<8x128xf32>
    %cst_82 = arith.constant dense<0.000000e+00> : vector<8x384xf32>
    %269 = tpu.matmul %268, %2, %cst_82 {dimension_numbers = #tpu.dot_dimension_numbers<[1], [0], [0], [1], [0, 0, 1, 1], [], []>} : vector<8x128xf32>, vector<128x384xf32>, vector<8x384xf32> -> vector<8x384xf32>
    %270 = vector.broadcast %4 : vector<1x384xf32> to vector<8x384xf32>
    %271 = arith.addf %269, %270 : vector<8x384xf32>
    %cst_83 = arith.constant dense<0.000000e+00> : vector<8x384xf32>
    %272 = tpu.matmul %237, %3, %cst_83 {dimension_numbers = #tpu.dot_dimension_numbers<[1], [0], [0], [1], [0, 0, 1, 1], [], []>} : vector<8x128xf32>, vector<128x384xf32>, vector<8x384xf32> -> vector<8x384xf32>
    %273 = vector.extract_strided_slice %271 {offsets = [0, 0], sizes = [8, 128], strides = [1, 1]} : vector<8x384xf32> to vector<8x128xf32>
    %274 = vector.extract_strided_slice %272 {offsets = [0, 0], sizes = [8, 128], strides = [1, 1]} : vector<8x384xf32> to vector<8x128xf32>
    %275 = arith.addf %273, %274 : vector<8x128xf32>
    %276 = arith.negf %275 : vector<8x128xf32>
    %277 = math.exp %276 : vector<8x128xf32>
    %cst_84 = arith.constant 1.000000e+00 : f32
    %278 = vector.broadcast %cst_84 : f32 to vector<8x128xf32>
    %279 = arith.addf %278, %277 : vector<8x128xf32>
    %280 = arith.divf %278, %279 : vector<8x128xf32>
    %281 = vector.extract_strided_slice %271 {offsets = [0, 128], sizes = [8, 128], strides = [1, 1]} : vector<8x384xf32> to vector<8x128xf32>
    %282 = vector.extract_strided_slice %272 {offsets = [0, 128], sizes = [8, 128], strides = [1, 1]} : vector<8x384xf32> to vector<8x128xf32>
    %283 = arith.addf %281, %282 : vector<8x128xf32>
    %284 = arith.negf %283 : vector<8x128xf32>
    %285 = math.exp %284 : vector<8x128xf32>
    %cst_85 = arith.constant 1.000000e+00 : f32
    %286 = vector.broadcast %cst_85 : f32 to vector<8x128xf32>
    %287 = arith.addf %286, %285 : vector<8x128xf32>
    %288 = arith.divf %286, %287 : vector<8x128xf32>
    %289 = vector.extract_strided_slice %271 {offsets = [0, 256], sizes = [8, 128], strides = [1, 1]} : vector<8x384xf32> to vector<8x128xf32>
    %290 = vector.extract_strided_slice %272 {offsets = [0, 256], sizes = [8, 128], strides = [1, 1]} : vector<8x384xf32> to vector<8x128xf32>
    %291 = vector.broadcast %5 : vector<1x128xf32> to vector<8x128xf32>
    %292 = arith.addf %290, %291 : vector<8x128xf32>
    %293 = arith.mulf %280, %292 : vector<8x128xf32>
    %294 = arith.addf %289, %293 : vector<8x128xf32>
    %295 = math.tanh %294 : vector<8x128xf32>
    %cst_86 = arith.constant 1.000000e+00 : f32
    %296 = vector.broadcast %cst_86 : f32 to vector<8x128xf32>
    %297 = arith.subf %296, %288 : vector<8x128xf32>
    %298 = arith.mulf %297, %295 : vector<8x128xf32>
    %299 = arith.mulf %288, %237 : vector<8x128xf32>
    %300 = arith.addf %298, %299 : vector<8x128xf32>
    %cst_87 = arith.constant dense<0.000000e+00> : vector<8x128xf32>
    %301 = tpu.matmul %300, %6, %cst_87 {dimension_numbers = #tpu.dot_dimension_numbers<[1], [0], [0], [1], [0, 0, 1, 1], [], []>} : vector<8x128xf32>, vector<128x128xf32>, vector<8x128xf32> -> vector<8x128xf32>
    %302 = vector.broadcast %7 : vector<1x128xf32> to vector<8x128xf32>
    %303 = arith.addf %301, %302 : vector<8x128xf32>
    %cst_88 = arith.constant dense<0xFF800000> : vector<8xf32>
    %304 = vector.multi_reduction <maximumf>, %303, %cst_88 [1] : vector<8x128xf32> to vector<8xf32>
    %305 = vector.shape_cast %304 : vector<8xf32> to vector<8x1xf32>
    %306 = vector.broadcast %305 : vector<8x1xf32> to vector<8x128xf32>
    %307 = arith.subf %303, %306 : vector<8x128xf32>
    %308 = math.exp %307 : vector<8x128xf32>
    %cst_89 = arith.constant dense<0.000000e+00> : vector<8xf32>
    %309 = vector.multi_reduction <add>, %308, %cst_89 [1] : vector<8x128xf32> to vector<8xf32>
    %310 = vector.shape_cast %309 : vector<8xf32> to vector<8x1xf32>
    %311 = math.log %310 : vector<8x1xf32>
    %312 = arith.addf %311, %305 : vector<8x1xf32>
    %313 = vector.broadcast %312 : vector<8x1xf32> to vector<8x128xf32>
    %314 = arith.subf %303, %313 : vector<8x128xf32>
    %c4 = arith.constant 4 : index
    %c0_90 = arith.constant 0 : index
    %c0_91 = arith.constant 0 : index
    %315 = vector.load %arg9[%c4, %c0_90, %c0_91] : memref<10x8x128xf32, #tpu.memory_space<vmem>>, vector<1x8x128xf32>
    %316 = vector.shape_cast %315 : vector<1x8x128xf32> to vector<8x128xf32>
    %317 = vector.shape_cast %314 : vector<8x128xf32> to vector<1x8x128xf32>
    tpu.vector_store %arg9[%c4, %c0_90, %c0_91], %317 {strides = array<i32>} : memref<10x8x128xf32, #tpu.memory_space<vmem>>, vector<1x8x128xf32>,
    %318 = vector.broadcast %305 : vector<8x1xf32> to vector<8x128xf32>
    %319 = arith.cmpf oeq, %303, %318 : vector<8x128xf32>
    %c128_i32_92 = arith.constant 128 : i32
    %320 = vector.broadcast %c128_i32_92 : i32 to vector<8x128xi32>
    %321 = arith.select %319, %0, %320 : vector<8x128xi1>, vector<8x128xi32>
    %cst_93 = arith.constant dense<2147483647> : vector<8xi32>
    %322 = vector.multi_reduction <minsi>, %321, %cst_93 [1] : vector<8x128xi32> to vector<8xi32>
    %323 = vector.shape_cast %322 : vector<8xi32> to vector<8x1xi32>
    %324 = vector.broadcast %323 : vector<8x1xi32> to vector<8x128xi32>
    %325 = arith.cmpi eq, %0, %324 : vector<8x128xi32>
    %cst_94 = arith.constant 1.000000e+00 : f32
    %cst_95 = arith.constant 0.000000e+00 : f32
    %326 = vector.broadcast %cst_94 : f32 to vector<8x128xf32>
    %327 = vector.broadcast %cst_95 : f32 to vector<8x128xf32>
    %328 = arith.select %325, %326, %327 : vector<8x128xi1>, vector<8x128xf32>
    %cst_96 = arith.constant dense<0.000000e+00> : vector<8x128xf32>
    %329 = tpu.matmul %328, %1, %cst_96 {dimension_numbers = #tpu.dot_dimension_numbers<[1], [0], [0], [1], [0, 0, 1, 1], [], []>} : vector<8x128xf32>, vector<128x128xf32>, vector<8x128xf32> -> vector<8x128xf32>
    %cst_97 = arith.constant 0.000000e+00 : f32
    %330 = vector.broadcast %cst_97 : f32 to vector<8x128xf32>
    %331 = arith.maximumf %329, %330 : vector<8x128xf32>
    %cst_98 = arith.constant dense<0.000000e+00> : vector<8x384xf32>
    %332 = tpu.matmul %331, %2, %cst_98 {dimension_numbers = #tpu.dot_dimension_numbers<[1], [0], [0], [1], [0, 0, 1, 1], [], []>} : vector<8x128xf32>, vector<128x384xf32>, vector<8x384xf32> -> vector<8x384xf32>
    %333 = vector.broadcast %4 : vector<1x384xf32> to vector<8x384xf32>
    %334 = arith.addf %332, %333 : vector<8x384xf32>
    %cst_99 = arith.constant dense<0.000000e+00> : vector<8x384xf32>
    %335 = tpu.matmul %300, %3, %cst_99 {dimension_numbers = #tpu.dot_dimension_numbers<[1], [0], [0], [1], [0, 0, 1, 1], [], []>} : vector<8x128xf32>, vector<128x384xf32>, vector<8x384xf32> -> vector<8x384xf32>
    %336 = vector.extract_strided_slice %334 {offsets = [0, 0], sizes = [8, 128], strides = [1, 1]} : vector<8x384xf32> to vector<8x128xf32>
    %337 = vector.extract_strided_slice %335 {offsets = [0, 0], sizes = [8, 128], strides = [1, 1]} : vector<8x384xf32> to vector<8x128xf32>
    %338 = arith.addf %336, %337 : vector<8x128xf32>
    %339 = arith.negf %338 : vector<8x128xf32>
    %340 = math.exp %339 : vector<8x128xf32>
    %cst_100 = arith.constant 1.000000e+00 : f32
    %341 = vector.broadcast %cst_100 : f32 to vector<8x128xf32>
    %342 = arith.addf %341, %340 : vector<8x128xf32>
    %343 = arith.divf %341, %342 : vector<8x128xf32>
    %344 = vector.extract_strided_slice %334 {offsets = [0, 128], sizes = [8, 128], strides = [1, 1]} : vector<8x384xf32> to vector<8x128xf32>
    %345 = vector.extract_strided_slice %335 {offsets = [0, 128], sizes = [8, 128], strides = [1, 1]} : vector<8x384xf32> to vector<8x128xf32>
    %346 = arith.addf %344, %345 : vector<8x128xf32>
    %347 = arith.negf %346 : vector<8x128xf32>
    %348 = math.exp %347 : vector<8x128xf32>
    %cst_101 = arith.constant 1.000000e+00 : f32
    %349 = vector.broadcast %cst_101 : f32 to vector<8x128xf32>
    %350 = arith.addf %349, %348 : vector<8x128xf32>
    %351 = arith.divf %349, %350 : vector<8x128xf32>
    %352 = vector.extract_strided_slice %334 {offsets = [0, 256], sizes = [8, 128], strides = [1, 1]} : vector<8x384xf32> to vector<8x128xf32>
    %353 = vector.extract_strided_slice %335 {offsets = [0, 256], sizes = [8, 128], strides = [1, 1]} : vector<8x384xf32> to vector<8x128xf32>
    %354 = vector.broadcast %5 : vector<1x128xf32> to vector<8x128xf32>
    %355 = arith.addf %353, %354 : vector<8x128xf32>
    %356 = arith.mulf %343, %355 : vector<8x128xf32>
    %357 = arith.addf %352, %356 : vector<8x128xf32>
    %358 = math.tanh %357 : vector<8x128xf32>
    %cst_102 = arith.constant 1.000000e+00 : f32
    %359 = vector.broadcast %cst_102 : f32 to vector<8x128xf32>
    %360 = arith.subf %359, %351 : vector<8x128xf32>
    %361 = arith.mulf %360, %358 : vector<8x128xf32>
    %362 = arith.mulf %351, %300 : vector<8x128xf32>
    %363 = arith.addf %361, %362 : vector<8x128xf32>
    %cst_103 = arith.constant dense<0.000000e+00> : vector<8x128xf32>
    %364 = tpu.matmul %363, %6, %cst_103 {dimension_numbers = #tpu.dot_dimension_numbers<[1], [0], [0], [1], [0, 0, 1, 1], [], []>} : vector<8x128xf32>, vector<128x128xf32>, vector<8x128xf32> -> vector<8x128xf32>
    %365 = vector.broadcast %7 : vector<1x128xf32> to vector<8x128xf32>
    %366 = arith.addf %364, %365 : vector<8x128xf32>
    %cst_104 = arith.constant dense<0xFF800000> : vector<8xf32>
    %367 = vector.multi_reduction <maximumf>, %366, %cst_104 [1] : vector<8x128xf32> to vector<8xf32>
    %368 = vector.shape_cast %367 : vector<8xf32> to vector<8x1xf32>
    %369 = vector.broadcast %368 : vector<8x1xf32> to vector<8x128xf32>
    %370 = arith.subf %366, %369 : vector<8x128xf32>
    %371 = math.exp %370 : vector<8x128xf32>
    %cst_105 = arith.constant dense<0.000000e+00> : vector<8xf32>
    %372 = vector.multi_reduction <add>, %371, %cst_105 [1] : vector<8x128xf32> to vector<8xf32>
    %373 = vector.shape_cast %372 : vector<8xf32> to vector<8x1xf32>
    %374 = math.log %373 : vector<8x1xf32>
    %375 = arith.addf %374, %368 : vector<8x1xf32>
    %376 = vector.broadcast %375 : vector<8x1xf32> to vector<8x128xf32>
    %377 = arith.subf %366, %376 : vector<8x128xf32>
    %c5 = arith.constant 5 : index
    %c0_106 = arith.constant 0 : index
    %c0_107 = arith.constant 0 : index
    %378 = vector.load %arg9[%c5, %c0_106, %c0_107] : memref<10x8x128xf32, #tpu.memory_space<vmem>>, vector<1x8x128xf32>
    %379 = vector.shape_cast %378 : vector<1x8x128xf32> to vector<8x128xf32>
    %380 = vector.shape_cast %377 : vector<8x128xf32> to vector<1x8x128xf32>
    tpu.vector_store %arg9[%c5, %c0_106, %c0_107], %380 {strides = array<i32>} : memref<10x8x128xf32, #tpu.memory_space<vmem>>, vector<1x8x128xf32>,
    %381 = vector.broadcast %368 : vector<8x1xf32> to vector<8x128xf32>
    %382 = arith.cmpf oeq, %366, %381 : vector<8x128xf32>
    %c128_i32_108 = arith.constant 128 : i32
    %383 = vector.broadcast %c128_i32_108 : i32 to vector<8x128xi32>
    %384 = arith.select %382, %0, %383 : vector<8x128xi1>, vector<8x128xi32>
    %cst_109 = arith.constant dense<2147483647> : vector<8xi32>
    %385 = vector.multi_reduction <minsi>, %384, %cst_109 [1] : vector<8x128xi32> to vector<8xi32>
    %386 = vector.shape_cast %385 : vector<8xi32> to vector<8x1xi32>
    %387 = vector.broadcast %386 : vector<8x1xi32> to vector<8x128xi32>
    %388 = arith.cmpi eq, %0, %387 : vector<8x128xi32>
    %cst_110 = arith.constant 1.000000e+00 : f32
    %cst_111 = arith.constant 0.000000e+00 : f32
    %389 = vector.broadcast %cst_110 : f32 to vector<8x128xf32>
    %390 = vector.broadcast %cst_111 : f32 to vector<8x128xf32>
    %391 = arith.select %388, %389, %390 : vector<8x128xi1>, vector<8x128xf32>
    %cst_112 = arith.constant dense<0.000000e+00> : vector<8x128xf32>
    %392 = tpu.matmul %391, %1, %cst_112 {dimension_numbers = #tpu.dot_dimension_numbers<[1], [0], [0], [1], [0, 0, 1, 1], [], []>} : vector<8x128xf32>, vector<128x128xf32>, vector<8x128xf32> -> vector<8x128xf32>
    %cst_113 = arith.constant 0.000000e+00 : f32
    %393 = vector.broadcast %cst_113 : f32 to vector<8x128xf32>
    %394 = arith.maximumf %392, %393 : vector<8x128xf32>
    %cst_114 = arith.constant dense<0.000000e+00> : vector<8x384xf32>
    %395 = tpu.matmul %394, %2, %cst_114 {dimension_numbers = #tpu.dot_dimension_numbers<[1], [0], [0], [1], [0, 0, 1, 1], [], []>} : vector<8x128xf32>, vector<128x384xf32>, vector<8x384xf32> -> vector<8x384xf32>
    %396 = vector.broadcast %4 : vector<1x384xf32> to vector<8x384xf32>
    %397 = arith.addf %395, %396 : vector<8x384xf32>
    %cst_115 = arith.constant dense<0.000000e+00> : vector<8x384xf32>
    %398 = tpu.matmul %363, %3, %cst_115 {dimension_numbers = #tpu.dot_dimension_numbers<[1], [0], [0], [1], [0, 0, 1, 1], [], []>} : vector<8x128xf32>, vector<128x384xf32>, vector<8x384xf32> -> vector<8x384xf32>
    %399 = vector.extract_strided_slice %397 {offsets = [0, 0], sizes = [8, 128], strides = [1, 1]} : vector<8x384xf32> to vector<8x128xf32>
    %400 = vector.extract_strided_slice %398 {offsets = [0, 0], sizes = [8, 128], strides = [1, 1]} : vector<8x384xf32> to vector<8x128xf32>
    %401 = arith.addf %399, %400 : vector<8x128xf32>
    %402 = arith.negf %401 : vector<8x128xf32>
    %403 = math.exp %402 : vector<8x128xf32>
    %cst_116 = arith.constant 1.000000e+00 : f32
    %404 = vector.broadcast %cst_116 : f32 to vector<8x128xf32>
    %405 = arith.addf %404, %403 : vector<8x128xf32>
    %406 = arith.divf %404, %405 : vector<8x128xf32>
    %407 = vector.extract_strided_slice %397 {offsets = [0, 128], sizes = [8, 128], strides = [1, 1]} : vector<8x384xf32> to vector<8x128xf32>
    %408 = vector.extract_strided_slice %398 {offsets = [0, 128], sizes = [8, 128], strides = [1, 1]} : vector<8x384xf32> to vector<8x128xf32>
    %409 = arith.addf %407, %408 : vector<8x128xf32>
    %410 = arith.negf %409 : vector<8x128xf32>
    %411 = math.exp %410 : vector<8x128xf32>
    %cst_117 = arith.constant 1.000000e+00 : f32
    %412 = vector.broadcast %cst_117 : f32 to vector<8x128xf32>
    %413 = arith.addf %412, %411 : vector<8x128xf32>
    %414 = arith.divf %412, %413 : vector<8x128xf32>
    %415 = vector.extract_strided_slice %397 {offsets = [0, 256], sizes = [8, 128], strides = [1, 1]} : vector<8x384xf32> to vector<8x128xf32>
    %416 = vector.extract_strided_slice %398 {offsets = [0, 256], sizes = [8, 128], strides = [1, 1]} : vector<8x384xf32> to vector<8x128xf32>
    %417 = vector.broadcast %5 : vector<1x128xf32> to vector<8x128xf32>
    %418 = arith.addf %416, %417 : vector<8x128xf32>
    %419 = arith.mulf %406, %418 : vector<8x128xf32>
    %420 = arith.addf %415, %419 : vector<8x128xf32>
    %421 = math.tanh %420 : vector<8x128xf32>
    %cst_118 = arith.constant 1.000000e+00 : f32
    %422 = vector.broadcast %cst_118 : f32 to vector<8x128xf32>
    %423 = arith.subf %422, %414 : vector<8x128xf32>
    %424 = arith.mulf %423, %421 : vector<8x128xf32>
    %425 = arith.mulf %414, %363 : vector<8x128xf32>
    %426 = arith.addf %424, %425 : vector<8x128xf32>
    %cst_119 = arith.constant dense<0.000000e+00> : vector<8x128xf32>
    %427 = tpu.matmul %426, %6, %cst_119 {dimension_numbers = #tpu.dot_dimension_numbers<[1], [0], [0], [1], [0, 0, 1, 1], [], []>} : vector<8x128xf32>, vector<128x128xf32>, vector<8x128xf32> -> vector<8x128xf32>
    %428 = vector.broadcast %7 : vector<1x128xf32> to vector<8x128xf32>
    %429 = arith.addf %427, %428 : vector<8x128xf32>
    %cst_120 = arith.constant dense<0xFF800000> : vector<8xf32>
    %430 = vector.multi_reduction <maximumf>, %429, %cst_120 [1] : vector<8x128xf32> to vector<8xf32>
    %431 = vector.shape_cast %430 : vector<8xf32> to vector<8x1xf32>
    %432 = vector.broadcast %431 : vector<8x1xf32> to vector<8x128xf32>
    %433 = arith.subf %429, %432 : vector<8x128xf32>
    %434 = math.exp %433 : vector<8x128xf32>
    %cst_121 = arith.constant dense<0.000000e+00> : vector<8xf32>
    %435 = vector.multi_reduction <add>, %434, %cst_121 [1] : vector<8x128xf32> to vector<8xf32>
    %436 = vector.shape_cast %435 : vector<8xf32> to vector<8x1xf32>
    %437 = math.log %436 : vector<8x1xf32>
    %438 = arith.addf %437, %431 : vector<8x1xf32>
    %439 = vector.broadcast %438 : vector<8x1xf32> to vector<8x128xf32>
    %440 = arith.subf %429, %439 : vector<8x128xf32>
    %c6 = arith.constant 6 : index
    %c0_122 = arith.constant 0 : index
    %c0_123 = arith.constant 0 : index
    %441 = vector.load %arg9[%c6, %c0_122, %c0_123] : memref<10x8x128xf32, #tpu.memory_space<vmem>>, vector<1x8x128xf32>
    %442 = vector.shape_cast %441 : vector<1x8x128xf32> to vector<8x128xf32>
    %443 = vector.shape_cast %440 : vector<8x128xf32> to vector<1x8x128xf32>
    tpu.vector_store %arg9[%c6, %c0_122, %c0_123], %443 {strides = array<i32>} : memref<10x8x128xf32, #tpu.memory_space<vmem>>, vector<1x8x128xf32>,
    %444 = vector.broadcast %431 : vector<8x1xf32> to vector<8x128xf32>
    %445 = arith.cmpf oeq, %429, %444 : vector<8x128xf32>
    %c128_i32_124 = arith.constant 128 : i32
    %446 = vector.broadcast %c128_i32_124 : i32 to vector<8x128xi32>
    %447 = arith.select %445, %0, %446 : vector<8x128xi1>, vector<8x128xi32>
    %cst_125 = arith.constant dense<2147483647> : vector<8xi32>
    %448 = vector.multi_reduction <minsi>, %447, %cst_125 [1] : vector<8x128xi32> to vector<8xi32>
    %449 = vector.shape_cast %448 : vector<8xi32> to vector<8x1xi32>
    %450 = vector.broadcast %449 : vector<8x1xi32> to vector<8x128xi32>
    %451 = arith.cmpi eq, %0, %450 : vector<8x128xi32>
    %cst_126 = arith.constant 1.000000e+00 : f32
    %cst_127 = arith.constant 0.000000e+00 : f32
    %452 = vector.broadcast %cst_126 : f32 to vector<8x128xf32>
    %453 = vector.broadcast %cst_127 : f32 to vector<8x128xf32>
    %454 = arith.select %451, %452, %453 : vector<8x128xi1>, vector<8x128xf32>
    %cst_128 = arith.constant dense<0.000000e+00> : vector<8x128xf32>
    %455 = tpu.matmul %454, %1, %cst_128 {dimension_numbers = #tpu.dot_dimension_numbers<[1], [0], [0], [1], [0, 0, 1, 1], [], []>} : vector<8x128xf32>, vector<128x128xf32>, vector<8x128xf32> -> vector<8x128xf32>
    %cst_129 = arith.constant 0.000000e+00 : f32
    %456 = vector.broadcast %cst_129 : f32 to vector<8x128xf32>
    %457 = arith.maximumf %455, %456 : vector<8x128xf32>
    %cst_130 = arith.constant dense<0.000000e+00> : vector<8x384xf32>
    %458 = tpu.matmul %457, %2, %cst_130 {dimension_numbers = #tpu.dot_dimension_numbers<[1], [0], [0], [1], [0, 0, 1, 1], [], []>} : vector<8x128xf32>, vector<128x384xf32>, vector<8x384xf32> -> vector<8x384xf32>
    %459 = vector.broadcast %4 : vector<1x384xf32> to vector<8x384xf32>
    %460 = arith.addf %458, %459 : vector<8x384xf32>
    %cst_131 = arith.constant dense<0.000000e+00> : vector<8x384xf32>
    %461 = tpu.matmul %426, %3, %cst_131 {dimension_numbers = #tpu.dot_dimension_numbers<[1], [0], [0], [1], [0, 0, 1, 1], [], []>} : vector<8x128xf32>, vector<128x384xf32>, vector<8x384xf32> -> vector<8x384xf32>
    %462 = vector.extract_strided_slice %460 {offsets = [0, 0], sizes = [8, 128], strides = [1, 1]} : vector<8x384xf32> to vector<8x128xf32>
    %463 = vector.extract_strided_slice %461 {offsets = [0, 0], sizes = [8, 128], strides = [1, 1]} : vector<8x384xf32> to vector<8x128xf32>
    %464 = arith.addf %462, %463 : vector<8x128xf32>
    %465 = arith.negf %464 : vector<8x128xf32>
    %466 = math.exp %465 : vector<8x128xf32>
    %cst_132 = arith.constant 1.000000e+00 : f32
    %467 = vector.broadcast %cst_132 : f32 to vector<8x128xf32>
    %468 = arith.addf %467, %466 : vector<8x128xf32>
    %469 = arith.divf %467, %468 : vector<8x128xf32>
    %470 = vector.extract_strided_slice %460 {offsets = [0, 128], sizes = [8, 128], strides = [1, 1]} : vector<8x384xf32> to vector<8x128xf32>
    %471 = vector.extract_strided_slice %461 {offsets = [0, 128], sizes = [8, 128], strides = [1, 1]} : vector<8x384xf32> to vector<8x128xf32>
    %472 = arith.addf %470, %471 : vector<8x128xf32>
    %473 = arith.negf %472 : vector<8x128xf32>
    %474 = math.exp %473 : vector<8x128xf32>
    %cst_133 = arith.constant 1.000000e+00 : f32
    %475 = vector.broadcast %cst_133 : f32 to vector<8x128xf32>
    %476 = arith.addf %475, %474 : vector<8x128xf32>
    %477 = arith.divf %475, %476 : vector<8x128xf32>
    %478 = vector.extract_strided_slice %460 {offsets = [0, 256], sizes = [8, 128], strides = [1, 1]} : vector<8x384xf32> to vector<8x128xf32>
    %479 = vector.extract_strided_slice %461 {offsets = [0, 256], sizes = [8, 128], strides = [1, 1]} : vector<8x384xf32> to vector<8x128xf32>
    %480 = vector.broadcast %5 : vector<1x128xf32> to vector<8x128xf32>
    %481 = arith.addf %479, %480 : vector<8x128xf32>
    %482 = arith.mulf %469, %481 : vector<8x128xf32>
    %483 = arith.addf %478, %482 : vector<8x128xf32>
    %484 = math.tanh %483 : vector<8x128xf32>
    %cst_134 = arith.constant 1.000000e+00 : f32
    %485 = vector.broadcast %cst_134 : f32 to vector<8x128xf32>
    %486 = arith.subf %485, %477 : vector<8x128xf32>
    %487 = arith.mulf %486, %484 : vector<8x128xf32>
    %488 = arith.mulf %477, %426 : vector<8x128xf32>
    %489 = arith.addf %487, %488 : vector<8x128xf32>
    %cst_135 = arith.constant dense<0.000000e+00> : vector<8x128xf32>
    %490 = tpu.matmul %489, %6, %cst_135 {dimension_numbers = #tpu.dot_dimension_numbers<[1], [0], [0], [1], [0, 0, 1, 1], [], []>} : vector<8x128xf32>, vector<128x128xf32>, vector<8x128xf32> -> vector<8x128xf32>
    %491 = vector.broadcast %7 : vector<1x128xf32> to vector<8x128xf32>
    %492 = arith.addf %490, %491 : vector<8x128xf32>
    %cst_136 = arith.constant dense<0xFF800000> : vector<8xf32>
    %493 = vector.multi_reduction <maximumf>, %492, %cst_136 [1] : vector<8x128xf32> to vector<8xf32>
    %494 = vector.shape_cast %493 : vector<8xf32> to vector<8x1xf32>
    %495 = vector.broadcast %494 : vector<8x1xf32> to vector<8x128xf32>
    %496 = arith.subf %492, %495 : vector<8x128xf32>
    %497 = math.exp %496 : vector<8x128xf32>
    %cst_137 = arith.constant dense<0.000000e+00> : vector<8xf32>
    %498 = vector.multi_reduction <add>, %497, %cst_137 [1] : vector<8x128xf32> to vector<8xf32>
    %499 = vector.shape_cast %498 : vector<8xf32> to vector<8x1xf32>
    %500 = math.log %499 : vector<8x1xf32>
    %501 = arith.addf %500, %494 : vector<8x1xf32>
    %502 = vector.broadcast %501 : vector<8x1xf32> to vector<8x128xf32>
    %503 = arith.subf %492, %502 : vector<8x128xf32>
    %c7 = arith.constant 7 : index
    %c0_138 = arith.constant 0 : index
    %c0_139 = arith.constant 0 : index
    %504 = vector.load %arg9[%c7, %c0_138, %c0_139] : memref<10x8x128xf32, #tpu.memory_space<vmem>>, vector<1x8x128xf32>
    %505 = vector.shape_cast %504 : vector<1x8x128xf32> to vector<8x128xf32>
    %506 = vector.shape_cast %503 : vector<8x128xf32> to vector<1x8x128xf32>
    tpu.vector_store %arg9[%c7, %c0_138, %c0_139], %506 {strides = array<i32>} : memref<10x8x128xf32, #tpu.memory_space<vmem>>, vector<1x8x128xf32>,
    %507 = vector.broadcast %494 : vector<8x1xf32> to vector<8x128xf32>
    %508 = arith.cmpf oeq, %492, %507 : vector<8x128xf32>
    %c128_i32_140 = arith.constant 128 : i32
    %509 = vector.broadcast %c128_i32_140 : i32 to vector<8x128xi32>
    %510 = arith.select %508, %0, %509 : vector<8x128xi1>, vector<8x128xi32>
    %cst_141 = arith.constant dense<2147483647> : vector<8xi32>
    %511 = vector.multi_reduction <minsi>, %510, %cst_141 [1] : vector<8x128xi32> to vector<8xi32>
    %512 = vector.shape_cast %511 : vector<8xi32> to vector<8x1xi32>
    %513 = vector.broadcast %512 : vector<8x1xi32> to vector<8x128xi32>
    %514 = arith.cmpi eq, %0, %513 : vector<8x128xi32>
    %cst_142 = arith.constant 1.000000e+00 : f32
    %cst_143 = arith.constant 0.000000e+00 : f32
    %515 = vector.broadcast %cst_142 : f32 to vector<8x128xf32>
    %516 = vector.broadcast %cst_143 : f32 to vector<8x128xf32>
    %517 = arith.select %514, %515, %516 : vector<8x128xi1>, vector<8x128xf32>
    %cst_144 = arith.constant dense<0.000000e+00> : vector<8x128xf32>
    %518 = tpu.matmul %517, %1, %cst_144 {dimension_numbers = #tpu.dot_dimension_numbers<[1], [0], [0], [1], [0, 0, 1, 1], [], []>} : vector<8x128xf32>, vector<128x128xf32>, vector<8x128xf32> -> vector<8x128xf32>
    %cst_145 = arith.constant 0.000000e+00 : f32
    %519 = vector.broadcast %cst_145 : f32 to vector<8x128xf32>
    %520 = arith.maximumf %518, %519 : vector<8x128xf32>
    %cst_146 = arith.constant dense<0.000000e+00> : vector<8x384xf32>
    %521 = tpu.matmul %520, %2, %cst_146 {dimension_numbers = #tpu.dot_dimension_numbers<[1], [0], [0], [1], [0, 0, 1, 1], [], []>} : vector<8x128xf32>, vector<128x384xf32>, vector<8x384xf32> -> vector<8x384xf32>
    %522 = vector.broadcast %4 : vector<1x384xf32> to vector<8x384xf32>
    %523 = arith.addf %521, %522 : vector<8x384xf32>
    %cst_147 = arith.constant dense<0.000000e+00> : vector<8x384xf32>
    %524 = tpu.matmul %489, %3, %cst_147 {dimension_numbers = #tpu.dot_dimension_numbers<[1], [0], [0], [1], [0, 0, 1, 1], [], []>} : vector<8x128xf32>, vector<128x384xf32>, vector<8x384xf32> -> vector<8x384xf32>
    %525 = vector.extract_strided_slice %523 {offsets = [0, 0], sizes = [8, 128], strides = [1, 1]} : vector<8x384xf32> to vector<8x128xf32>
    %526 = vector.extract_strided_slice %524 {offsets = [0, 0], sizes = [8, 128], strides = [1, 1]} : vector<8x384xf32> to vector<8x128xf32>
    %527 = arith.addf %525, %526 : vector<8x128xf32>
    %528 = arith.negf %527 : vector<8x128xf32>
    %529 = math.exp %528 : vector<8x128xf32>
    %cst_148 = arith.constant 1.000000e+00 : f32
    %530 = vector.broadcast %cst_148 : f32 to vector<8x128xf32>
    %531 = arith.addf %530, %529 : vector<8x128xf32>
    %532 = arith.divf %530, %531 : vector<8x128xf32>
    %533 = vector.extract_strided_slice %523 {offsets = [0, 128], sizes = [8, 128], strides = [1, 1]} : vector<8x384xf32> to vector<8x128xf32>
    %534 = vector.extract_strided_slice %524 {offsets = [0, 128], sizes = [8, 128], strides = [1, 1]} : vector<8x384xf32> to vector<8x128xf32>
    %535 = arith.addf %533, %534 : vector<8x128xf32>
    %536 = arith.negf %535 : vector<8x128xf32>
    %537 = math.exp %536 : vector<8x128xf32>
    %cst_149 = arith.constant 1.000000e+00 : f32
    %538 = vector.broadcast %cst_149 : f32 to vector<8x128xf32>
    %539 = arith.addf %538, %537 : vector<8x128xf32>
    %540 = arith.divf %538, %539 : vector<8x128xf32>
    %541 = vector.extract_strided_slice %523 {offsets = [0, 256], sizes = [8, 128], strides = [1, 1]} : vector<8x384xf32> to vector<8x128xf32>
    %542 = vector.extract_strided_slice %524 {offsets = [0, 256], sizes = [8, 128], strides = [1, 1]} : vector<8x384xf32> to vector<8x128xf32>
    %543 = vector.broadcast %5 : vector<1x128xf32> to vector<8x128xf32>
    %544 = arith.addf %542, %543 : vector<8x128xf32>
    %545 = arith.mulf %532, %544 : vector<8x128xf32>
    %546 = arith.addf %541, %545 : vector<8x128xf32>
    %547 = math.tanh %546 : vector<8x128xf32>
    %cst_150 = arith.constant 1.000000e+00 : f32
    %548 = vector.broadcast %cst_150 : f32 to vector<8x128xf32>
    %549 = arith.subf %548, %540 : vector<8x128xf32>
    %550 = arith.mulf %549, %547 : vector<8x128xf32>
    %551 = arith.mulf %540, %489 : vector<8x128xf32>
    %552 = arith.addf %550, %551 : vector<8x128xf32>
    %cst_151 = arith.constant dense<0.000000e+00> : vector<8x128xf32>
    %553 = tpu.matmul %552, %6, %cst_151 {dimension_numbers = #tpu.dot_dimension_numbers<[1], [0], [0], [1], [0, 0, 1, 1], [], []>} : vector<8x128xf32>, vector<128x128xf32>, vector<8x128xf32> -> vector<8x128xf32>
    %554 = vector.broadcast %7 : vector<1x128xf32> to vector<8x128xf32>
    %555 = arith.addf %553, %554 : vector<8x128xf32>
    %cst_152 = arith.constant dense<0xFF800000> : vector<8xf32>
    %556 = vector.multi_reduction <maximumf>, %555, %cst_152 [1] : vector<8x128xf32> to vector<8xf32>
    %557 = vector.shape_cast %556 : vector<8xf32> to vector<8x1xf32>
    %558 = vector.broadcast %557 : vector<8x1xf32> to vector<8x128xf32>
    %559 = arith.subf %555, %558 : vector<8x128xf32>
    %560 = math.exp %559 : vector<8x128xf32>
    %cst_153 = arith.constant dense<0.000000e+00> : vector<8xf32>
    %561 = vector.multi_reduction <add>, %560, %cst_153 [1] : vector<8x128xf32> to vector<8xf32>
    %562 = vector.shape_cast %561 : vector<8xf32> to vector<8x1xf32>
    %563 = math.log %562 : vector<8x1xf32>
    %564 = arith.addf %563, %557 : vector<8x1xf32>
    %565 = vector.broadcast %564 : vector<8x1xf32> to vector<8x128xf32>
    %566 = arith.subf %555, %565 : vector<8x128xf32>
    %c8 = arith.constant 8 : index
    %c0_154 = arith.constant 0 : index
    %c0_155 = arith.constant 0 : index
    %567 = vector.load %arg9[%c8, %c0_154, %c0_155] : memref<10x8x128xf32, #tpu.memory_space<vmem>>, vector<1x8x128xf32>
    %568 = vector.shape_cast %567 : vector<1x8x128xf32> to vector<8x128xf32>
    %569 = vector.shape_cast %566 : vector<8x128xf32> to vector<1x8x128xf32>
    tpu.vector_store %arg9[%c8, %c0_154, %c0_155], %569 {strides = array<i32>} : memref<10x8x128xf32, #tpu.memory_space<vmem>>, vector<1x8x128xf32>,
    %570 = vector.broadcast %557 : vector<8x1xf32> to vector<8x128xf32>
    %571 = arith.cmpf oeq, %555, %570 : vector<8x128xf32>
    %c128_i32_156 = arith.constant 128 : i32
    %572 = vector.broadcast %c128_i32_156 : i32 to vector<8x128xi32>
    %573 = arith.select %571, %0, %572 : vector<8x128xi1>, vector<8x128xi32>
    %cst_157 = arith.constant dense<2147483647> : vector<8xi32>
    %574 = vector.multi_reduction <minsi>, %573, %cst_157 [1] : vector<8x128xi32> to vector<8xi32>
    %575 = vector.shape_cast %574 : vector<8xi32> to vector<8x1xi32>
    %576 = vector.broadcast %575 : vector<8x1xi32> to vector<8x128xi32>
    %577 = arith.cmpi eq, %0, %576 : vector<8x128xi32>
    %cst_158 = arith.constant 1.000000e+00 : f32
    %cst_159 = arith.constant 0.000000e+00 : f32
    %578 = vector.broadcast %cst_158 : f32 to vector<8x128xf32>
    %579 = vector.broadcast %cst_159 : f32 to vector<8x128xf32>
    %580 = arith.select %577, %578, %579 : vector<8x128xi1>, vector<8x128xf32>
    %cst_160 = arith.constant dense<0.000000e+00> : vector<8x128xf32>
    %581 = tpu.matmul %580, %1, %cst_160 {dimension_numbers = #tpu.dot_dimension_numbers<[1], [0], [0], [1], [0, 0, 1, 1], [], []>} : vector<8x128xf32>, vector<128x128xf32>, vector<8x128xf32> -> vector<8x128xf32>
    %cst_161 = arith.constant 0.000000e+00 : f32
    %582 = vector.broadcast %cst_161 : f32 to vector<8x128xf32>
    %583 = arith.maximumf %581, %582 : vector<8x128xf32>
    %cst_162 = arith.constant dense<0.000000e+00> : vector<8x384xf32>
    %584 = tpu.matmul %583, %2, %cst_162 {dimension_numbers = #tpu.dot_dimension_numbers<[1], [0], [0], [1], [0, 0, 1, 1], [], []>} : vector<8x128xf32>, vector<128x384xf32>, vector<8x384xf32> -> vector<8x384xf32>
    %585 = vector.broadcast %4 : vector<1x384xf32> to vector<8x384xf32>
    %586 = arith.addf %584, %585 : vector<8x384xf32>
    %cst_163 = arith.constant dense<0.000000e+00> : vector<8x384xf32>
    %587 = tpu.matmul %552, %3, %cst_163 {dimension_numbers = #tpu.dot_dimension_numbers<[1], [0], [0], [1], [0, 0, 1, 1], [], []>} : vector<8x128xf32>, vector<128x384xf32>, vector<8x384xf32> -> vector<8x384xf32>
    %588 = vector.extract_strided_slice %586 {offsets = [0, 0], sizes = [8, 128], strides = [1, 1]} : vector<8x384xf32> to vector<8x128xf32>
    %589 = vector.extract_strided_slice %587 {offsets = [0, 0], sizes = [8, 128], strides = [1, 1]} : vector<8x384xf32> to vector<8x128xf32>
    %590 = arith.addf %588, %589 : vector<8x128xf32>
    %591 = arith.negf %590 : vector<8x128xf32>
    %592 = math.exp %591 : vector<8x128xf32>
    %cst_164 = arith.constant 1.000000e+00 : f32
    %593 = vector.broadcast %cst_164 : f32 to vector<8x128xf32>
    %594 = arith.addf %593, %592 : vector<8x128xf32>
    %595 = arith.divf %593, %594 : vector<8x128xf32>
    %596 = vector.extract_strided_slice %586 {offsets = [0, 128], sizes = [8, 128], strides = [1, 1]} : vector<8x384xf32> to vector<8x128xf32>
    %597 = vector.extract_strided_slice %587 {offsets = [0, 128], sizes = [8, 128], strides = [1, 1]} : vector<8x384xf32> to vector<8x128xf32>
    %598 = arith.addf %596, %597 : vector<8x128xf32>
    %599 = arith.negf %598 : vector<8x128xf32>
    %600 = math.exp %599 : vector<8x128xf32>
    %cst_165 = arith.constant 1.000000e+00 : f32
    %601 = vector.broadcast %cst_165 : f32 to vector<8x128xf32>
    %602 = arith.addf %601, %600 : vector<8x128xf32>
    %603 = arith.divf %601, %602 : vector<8x128xf32>
    %604 = vector.extract_strided_slice %586 {offsets = [0, 256], sizes = [8, 128], strides = [1, 1]} : vector<8x384xf32> to vector<8x128xf32>
    %605 = vector.extract_strided_slice %587 {offsets = [0, 256], sizes = [8, 128], strides = [1, 1]} : vector<8x384xf32> to vector<8x128xf32>
    %606 = vector.broadcast %5 : vector<1x128xf32> to vector<8x128xf32>
    %607 = arith.addf %605, %606 : vector<8x128xf32>
    %608 = arith.mulf %595, %607 : vector<8x128xf32>
    %609 = arith.addf %604, %608 : vector<8x128xf32>
    %610 = math.tanh %609 : vector<8x128xf32>
    %cst_166 = arith.constant 1.000000e+00 : f32
    %611 = vector.broadcast %cst_166 : f32 to vector<8x128xf32>
    %612 = arith.subf %611, %603 : vector<8x128xf32>
    %613 = arith.mulf %612, %610 : vector<8x128xf32>
    %614 = arith.mulf %603, %552 : vector<8x128xf32>
    %615 = arith.addf %613, %614 : vector<8x128xf32>
    %cst_167 = arith.constant dense<0.000000e+00> : vector<8x128xf32>
    %616 = tpu.matmul %615, %6, %cst_167 {dimension_numbers = #tpu.dot_dimension_numbers<[1], [0], [0], [1], [0, 0, 1, 1], [], []>} : vector<8x128xf32>, vector<128x128xf32>, vector<8x128xf32> -> vector<8x128xf32>
    %617 = vector.broadcast %7 : vector<1x128xf32> to vector<8x128xf32>
    %618 = arith.addf %616, %617 : vector<8x128xf32>
    %cst_168 = arith.constant dense<0xFF800000> : vector<8xf32>
    %619 = vector.multi_reduction <maximumf>, %618, %cst_168 [1] : vector<8x128xf32> to vector<8xf32>
    %620 = vector.shape_cast %619 : vector<8xf32> to vector<8x1xf32>
    %621 = vector.broadcast %620 : vector<8x1xf32> to vector<8x128xf32>
    %622 = arith.subf %618, %621 : vector<8x128xf32>
    %623 = math.exp %622 : vector<8x128xf32>
    %cst_169 = arith.constant dense<0.000000e+00> : vector<8xf32>
    %624 = vector.multi_reduction <add>, %623, %cst_169 [1] : vector<8x128xf32> to vector<8xf32>
    %625 = vector.shape_cast %624 : vector<8xf32> to vector<8x1xf32>
    %626 = math.log %625 : vector<8x1xf32>
    %627 = arith.addf %626, %620 : vector<8x1xf32>
    %628 = vector.broadcast %627 : vector<8x1xf32> to vector<8x128xf32>
    %629 = arith.subf %618, %628 : vector<8x128xf32>
    %c9 = arith.constant 9 : index
    %c0_170 = arith.constant 0 : index
    %c0_171 = arith.constant 0 : index
    %630 = vector.load %arg9[%c9, %c0_170, %c0_171] : memref<10x8x128xf32, #tpu.memory_space<vmem>>, vector<1x8x128xf32>
    %631 = vector.shape_cast %630 : vector<1x8x128xf32> to vector<8x128xf32>
    %632 = vector.shape_cast %629 : vector<8x128xf32> to vector<1x8x128xf32>
    tpu.vector_store %arg9[%c9, %c0_170, %c0_171], %632 {strides = array<i32>} : memref<10x8x128xf32, #tpu.memory_space<vmem>>, vector<1x8x128xf32>,
    %c0_172 = arith.constant 0 : index
    %c0_173 = arith.constant 0 : index
    %633 = vector.load %arg10[%c0_172, %c0_173] : memref<8x128xf32, #tpu.memory_space<vmem>>, vector<8x128xf32>
    tpu.vector_store %arg10[%c0_172, %c0_173], %615 {strides = array<i32>} : memref<8x128xf32, #tpu.memory_space<vmem>>, vector<8x128xf32>,
    return
  }
  func.func @transform_0(%arg0: i32) -> (i32, i32) {
    %c0_i32 = arith.constant 0 : i32
    %c0_i32_0 = arith.constant 0 : i32
    %c0_i32_1 = arith.constant 0 : i32
    return %c0_i32, %c0_i32_0 : i32, i32
  }
  func.func @transform_1(%arg0: i32) -> (i32, i32) {
    %c0_i32 = arith.constant 0 : i32
    %c0_i32_0 = arith.constant 0 : i32
    %c0_i32_1 = arith.constant 0 : i32
    return %c0_i32, %c0_i32_0 : i32, i32
  }
  func.func @transform_2(%arg0: i32) -> (i32, i32) {
    %c0_i32 = arith.constant 0 : i32
    %c0_i32_0 = arith.constant 0 : i32
    %c0_i32_1 = arith.constant 0 : i32
    return %c0_i32, %c0_i32_0 : i32, i32
  }
  func.func @transform_3(%arg0: i32) -> (i32, i32) {
    %c0_i32 = arith.constant 0 : i32
    %c0_i32_0 = arith.constant 0 : i32
    %c0_i32_1 = arith.constant 0 : i32
    return %c0_i32, %c0_i32_0 : i32, i32
  }
  func.func @transform_4(%arg0: i32) -> (i32, i32) {
    %c0_i32 = arith.constant 0 : i32
    %c0_i32_0 = arith.constant 0 : i32
    %c0_i32_1 = arith.constant 0 : i32
    return %c0_i32, %c0_i32_0 : i32, i32
  }
  func.func @transform_5(%arg0: i32) -> (i32, i32) {
    %c0_i32 = arith.constant 0 : i32
    %c0_i32_0 = arith.constant 0 : i32
    %c0_i32_1 = arith.constant 0 : i32
    return %c0_i32, %c0_i32_0 : i32, i32
  }
  func.func @transform_6(%arg0: i32) -> (i32, i32) {
    %c0_i32 = arith.constant 0 : i32
    %c0_i32_0 = arith.constant 0 : i32
    %c0_i32_1 = arith.constant 0 : i32
    return %c0_i32, %c0_i32_0 : i32, i32
  }
  func.func @transform_7(%arg0: i32) -> (i32, i32) {
    %c0_i32 = arith.constant 0 : i32
    %c0_i32_0 = arith.constant 0 : i32
    %c0_i32_1 = arith.constant 0 : i32
    return %c0_i32, %c0_i32_0 : i32, i32
  }
  func.func @transform_8(%arg0: i32) -> (i32, i32, i32) {
    %c0_i32 = arith.constant 0 : i32
    %c0_i32_0 = arith.constant 0 : i32
    %c0_i32_1 = arith.constant 0 : i32
    %c0_i32_2 = arith.constant 0 : i32
    return %c0_i32, %c0_i32_0, %c0_i32_1 : i32, i32, i32
  }
  func.func @transform_9(%arg0: i32) -> (i32, i32) {
    %c0_i32 = arith.constant 0 : i32
    %c0_i32_0 = arith.constant 0 : i32
    %c0_i32_1 = arith.constant 0 : i32
    return %c0_i32, %c0_i32_0 : i32, i32
  }
}

</mosaic_0001>

<llo_original>
// kernel: tpu_custom_call.1
$region0: #{tpu_custom_call.1}
  #allocation0 [shape = 'u32[]', space=smem, size = 0x4, offset = 0x4, fixed_abs, tag = 'smem constant byte address 0x4 - core index']
  #allocation1 [shape = 'u32[144,128]{1,0:T(1,128)}', space=vmem, size = 0x12000, scoped, tag = 'internal scratch']
  %s0 = inlined_call_operand.hbm [shape: f32[128,128], index: 0, kind: input, shape index: {}]
  %s1 = inlined_call_operand.hbm [shape: f32[128,384], index: 1, kind: input, shape index: {}]
  %s2 = inlined_call_operand.hbm [shape: f32[128,384], index: 2, kind: input, shape index: {}]
  %s3 = inlined_call_operand.vmem [shape: f32[1,384], index: 3, kind: input, shape index: {}]
  %s4 = inlined_call_operand.vmem [shape: f32[1,128], index: 4, kind: input, shape index: {}]
  %s5 = inlined_call_operand.hbm [shape: f32[128,128], index: 5, kind: input, shape index: {}]
  %s6 = inlined_call_operand.vmem [shape: f32[1,128], index: 6, kind: input, shape index: {}]
  %s7 = inlined_call_operand.vmem [shape: f32[8,128], index: 7, kind: input, shape index: {}]
  %s8 = inlined_call_operand.hbm [shape: f32[10,8,128], index: 8, kind: output, shape index: {0}]
  %s9 = inlined_call_operand.hbm [shape: f32[8,128], index: 9, kind: output, shape index: {1}]
  %10 = xla_tuple %s8, %s9
  %s11 = sld [smem:[#allocation0]]
  $region66: #{tpu_custom_call.1} parent=0
    _
  %s13 = ssub.s32 1, %s11
  %s14 = scalar_select 0, %s13, %s11
  $region1: #{tpu_custom_call.1} parent=0
    #allocation2 [shape = 'u8[65536]{0}', space=vmem, size = 0x10000, scoped, tag = 'input window, operand 0, single buffered']
    #allocation3 [shape = 's32[1]{0}', space=sflag, size = 0x4, scoped, tag = 'scoped memory for tpu_custom_call.1']
    #allocation4 [shape = 's32[1]{0}', space=sflag, size = 0x4, scoped, tag = 'scoped memory for tpu_custom_call.1']
    #allocation5 [shape = 'u8[196608]{0}', space=vmem, size = 0x30000, scoped, tag = 'input window, operand 1, single buffered']
    #allocation6 [shape = 's32[1]{0}', space=sflag, size = 0x4, scoped, tag = 'scoped memory for tpu_custom_call.1']
    #allocation7 [shape = 'u8[196608]{0}', space=vmem, size = 0x30000, scoped, tag = 'input window, operand 2, single buffered']
    #allocation8 [shape = 'u8[65536]{0}', space=vmem, size = 0x10000, scoped, tag = 'input window, operand 5, single buffered']
    #allocation9 [shape = 's32[1]{0}', space=sflag, size = 0x4, scoped, tag = 'scoped memory for tpu_custom_call.1']
    #allocation10 [shape = 'u8[40960]{0}', space=vmem, size = 0xa000, scoped, tag = 'output window, operand 0, single buffered']
    #allocation11 [shape = 'u8[4096]{0}', space=vmem, size = 0x1000, scoped, tag = 'output window, operand 1, single buffered']
    #allocation12 [shape = 's32[1]{0}', space=sflag, size = 0x4, scoped, tag = 'scoped memory for tpu_custom_call.1']
    %15 = vsyncpa [#allocation3], 0
    %16 = vsyncpa [#allocation6], 0
    %17 = vsyncpa [#allocation9], 0
    %18 = vsyncpa [#allocation4], 0
    %19 = vsyncpa [#allocation12], 0
    // Predicated region
    $region2: #{tpu_custom_call.1} parent=1 // pred_check
      _
    $region3: #{tpu_custom_call.1} parent=1 // pred_check_branch
      %21 = sbr.rel (0) target = $region5
    $region4: #{tpu_custom_call.1} parent=1 // pred_region
      %s23 = ssub.s32 2048, 2048
      %24 = vsyncadd [#allocation3], %s23
      %s25 = sshll.u32 [#allocation2], 4
      %s26 = int_to_ptr.vmem [resolvable:$true] %s25
      %31 = dma.hbm_to_vmem [thread:$0]  %s0, 2048, %s26, [#allocation3], 128, 128, 8
    $region5: #{tpu_custom_call.1} parent=1 // pred_fallthru
      _
    // Predicated region
    $region6: #{tpu_custom_call.1} parent=1 // pred_check
      _
    $region7: #{tpu_custom_call.1} parent=1 // pred_check_branch
      %33 = sbr.rel (0) target = $region9
    $region8: #{tpu_custom_call.1} parent=1 // pred_region
      %s35 = ssub.s32 6144, 6144
      %36 = vsyncadd [#allocation6], %s35
      %s37 = sshll.u32 [#allocation5], 4
      %s38 = int_to_ptr.vmem [resolvable:$true] %s37
      %43 = dma.hbm_to_vmem [thread:$0]  %s1, 6144, %s38, [#allocation6], 384, 384, 24
    $region9: #{tpu_custom_call.1} parent=1 // pred_fallthru
      _
    // Predicated region
    $region10: #{tpu_custom_call.1} parent=1 // pred_check
      _
    $region11: #{tpu_custom_call.1} parent=1 // pred_check_branch
      %45 = sbr.rel (0) target = $region13
    $region12: #{tpu_custom_call.1} parent=1 // pred_region
      %s47 = ssub.s32 6144, 6144
      %48 = vsyncadd [#allocation6], %s47
      %s49 = sshll.u32 [#allocation7], 4
      %s50 = int_to_ptr.vmem [resolvable:$true] %s49
      %55 = dma.hbm_to_vmem [thread:$0]  %s2, 6144, %s50, [#allocation6], 384, 384, 24
    $region13: #{tpu_custom_call.1} parent=1 // pred_fallthru
      _
    // Predicated region
    $region14: #{tpu_custom_call.1} parent=1 // pred_check
      _
    $region15: #{tpu_custom_call.1} parent=1 // pred_check_branch
      %57 = sbr.rel (0) target = $region17
    $region16: #{tpu_custom_call.1} parent=1 // pred_region
      _
    $region17: #{tpu_custom_call.1} parent=1 // pred_fallthru
      _
    // Predicated region
    $region18: #{tpu_custom_call.1} parent=1 // pred_check
      _
    $region19: #{tpu_custom_call.1} parent=1 // pred_check_branch
      %59 = sbr.rel (0) target = $region21
    $region20: #{tpu_custom_call.1} parent=1 // pred_region
      _
    $region21: #{tpu_custom_call.1} parent=1 // pred_fallthru
      _
    // Predicated region
    $region22: #{tpu_custom_call.1} parent=1 // pred_check
      _
    $region23: #{tpu_custom_call.1} parent=1 // pred_check_branch
      %61 = sbr.rel (0) target = $region25
    $region24: #{tpu_custom_call.1} parent=1 // pred_region
      %s63 = ssub.s32 2048, 2048
      %64 = vsyncadd [#allocation9], %s63
      %s65 = sshll.u32 [#allocation8], 4
      %s66 = int_to_ptr.vmem [resolvable:$true] %s65
      %71 = dma.hbm_to_vmem [thread:$0]  %s5, 2048, %s66, [#allocation9], 128, 128, 8
    $region25: #{tpu_custom_call.1} parent=1 // pred_fallthru
      _
    // Predicated region
    $region26: #{tpu_custom_call.1} parent=1 // pred_check
      _
    $region27: #{tpu_custom_call.1} parent=1 // pred_check_branch
      %73 = sbr.rel (0) target = $region29
    $region28: #{tpu_custom_call.1} parent=1 // pred_region
      _
    $region29: #{tpu_custom_call.1} parent=1 // pred_fallthru
      _
    // Predicated region
    $region30: #{tpu_custom_call.1} parent=1 // pred_check
      _
    $region31: #{tpu_custom_call.1} parent=1 // pred_check_branch
      %75 = sbr.rel (0) target = $region33
    $region32: #{tpu_custom_call.1} parent=1 // pred_region
      _
    $region33: #{tpu_custom_call.1} parent=1 // pred_fallthru
      _
    // Predicated region
    $region34: #{tpu_custom_call.1} parent=1 // pred_check
      _
    $region35: #{tpu_custom_call.1} parent=1 // pred_check_branch
      %77 = sbr.rel (0) target = $region37
    $region36: #{tpu_custom_call.1} parent=1 // pred_region
      %78 = dma.done [#allocation3], 2048
    $region37: #{tpu_custom_call.1} parent=1 // pred_fallthru
      _
    // Predicated region
    $region38: #{tpu_custom_call.1} parent=1 // pred_check
      _
    $region39: #{tpu_custom_call.1} parent=1 // pred_check_branch
      %80 = sbr.rel (0) target = $region41
    $region40: #{tpu_custom_call.1} parent=1 // pred_region
      %81 = dma.done [#allocation6], 6144
    $region41: #{tpu_custom_call.1} parent=1 // pred_fallthru
      _
    // Predicated region
    $region42: #{tpu_custom_call.1} parent=1 // pred_check
      _
    $region43: #{tpu_custom_call.1} parent=1 // pred_check_branch
      %83 = sbr.rel (0) target = $region45
    $region44: #{tpu_custom_call.1} parent=1 // pred_region
      %84 = dma.done [#allocation6], 6144
    $region45: #{tpu_custom_call.1} parent=1 // pred_fallthru
      _
    // Predicated region
    $region46: #{tpu_custom_call.1} parent=1 // pred_check
      _
    $region47: #{tpu_custom_call.1} parent=1 // pred_check_branch
      %86 = sbr.rel (0) target = $region49
    $region48: #{tpu_custom_call.1} parent=1 // pred_region
      %87 = dma.done [#allocation9], 2048
    $region49: #{tpu_custom_call.1} parent=1 // pred_fallthru
      _
    %v88 = vlaneseq
    %v89 = vand.u32 %v88, 127
    %v90 = vld [vmem:[#allocation2] sm:$0xff]
    %v91 = vld [vmem:[#allocation2 + $0x8] sm:$0xff]
    %v92 = vld [vmem:[#allocation2 + $0x10] sm:$0xff]
    %v93 = vld [vmem:[#allocation2 + $0x18] sm:$0xff]
    %v94 = vld [vmem:[#allocation2 + $0x20] sm:$0xff]
    %v95 = vld [vmem:[#allocation2 + $0x28] sm:$0xff]
    %v96 = vld [vmem:[#allocation2 + $0x30] sm:$0xff]
    %v97 = vld [vmem:[#allocation2 + $0x38] sm:$0xff]
    %v98 = vld [vmem:[#allocation2 + $0x40] sm:$0xff]
    %v99 = vld [vmem:[#allocation2 + $0x48] sm:$0xff]
    %v100 = vld [vmem:[#allocation2 + $0x50] sm:$0xff]
    %v101 = vld [vmem:[#allocation2 + $0x58] sm:$0xff]
    %v102 = vld [vmem:[#allocation2 + $0x60] sm:$0xff]
    %v103 = vld [vmem:[#allocation2 + $0x68] sm:$0xff]
    %v104 = vld [vmem:[#allocation2 + $0x70] sm:$0xff]
    %v105 = vld [vmem:[#allocation2 + $0x78] sm:$0xff]
    %v106 = vld [vmem:[#allocation5] sm:$0xff]
    %v107 = vld [vmem:[#allocation5 + $0x8] sm:$0xff]
    %v108 = vld [vmem:[#allocation5 + $0x10] sm:$0xff]
    %v109 = vld [vmem:[#allocation5 + $0x18] sm:$0xff]
    %v110 = vld [vmem:[#allocation5 + $0x20] sm:$0xff]
    %v111 = vld [vmem:[#allocation5 + $0x28] sm:$0xff]
    %v112 = vld [vmem:[#allocation5 + $0x30] sm:$0xff]
    %v113 = vld [vmem:[#allocation5 + $0x38] sm:$0xff]
    %v114 = vld [vmem:[#allocation5 + $0x40] sm:$0xff]
    %v115 = vld [vmem:[#allocation5 + $0x48] sm:$0xff]
    %v116 = vld [vmem:[#allocation5 + $0x50] sm:$0xff]
    %v117 = vld [vmem:[#allocation5 + $0x58] sm:$0xff]
    %v118 = vld [vmem:[#allocation5 + $0x60] sm:$0xff]
    %v119 = vld [vmem:[#allocation5 + $0x68] sm:$0xff]
    %v120 = vld [vmem:[#allocation5 + $0x70] sm:$0xff]
    %v121 = vld [vmem:[#allocation5 + $0x78] sm:$0xff]
    %v122 = vld [vmem:[#allocation5 + $0x80] sm:$0xff]
    %v123 = vld [vmem:[#allocation5 + $0x88] sm:$0xff]
    %v124 = vld [vmem:[#allocation5 + $0x90] sm:$0xff]
    %v125 = vld [vmem:[#allocation5 + $0x98] sm:$0xff]
    %v126 = vld [vmem:[#allocation5 + $0xa0] sm:$0xff]
    %v127 = vld [vmem:[#allocation5 + $0xa8] sm:$0xff]
    %v128 = vld [vmem:[#allocation5 + $0xb0] sm:$0xff]
    %v129 = vld [vmem:[#allocation5 + $0xb8] sm:$0xff]
    %v130 = vld [vmem:[#allocation5 + $0xc0] sm:$0xff]
    %v131 = vld [vmem:[#allocation5 + $0xc8] sm:$0xff]
    %v132 = vld [vmem:[#allocation5 + $0xd0] sm:$0xff]
    %v133 = vld [vmem:[#allocation5 + $0xd8] sm:$0xff]
    %v134 = vld [vmem:[#allocation5 + $0xe0] sm:$0xff]
    %v135 = vld [vmem:[#allocation5 + $0xe8] sm:$0xff]
    %v136 = vld [vmem:[#allocation5 + $0xf0] sm:$0xff]
    %v137 = vld [vmem:[#allocation5 + $0xf8] sm:$0xff]
    %v138 = vld [vmem:[#allocation5 + $0x100] sm:$0xff]
    %v139 = vld [vmem:[#allocation5 + $0x108] sm:$0xff]
    %v140 = vld [vmem:[#allocation5 + $0x110] sm:$0xff]
    %v141 = vld [vmem:[#allocation5 + $0x118] sm:$0xff]
    %v142 = vld [vmem:[#allocation5 + $0x120] sm:$0xff]
    %v143 = vld [vmem:[#allocation5 + $0x128] sm:$0xff]
    %v144 = vld [vmem:[#allocation5 + $0x130] sm:$0xff]
    %v145 = vld [vmem:[#allocation5 + $0x138] sm:$0xff]
    %v146 = vld [vmem:[#allocation5 + $0x140] sm:$0xff]
    %v147 = vld [vmem:[#allocation5 + $0x148] sm:$0xff]
    %v148 = vld [vmem:[#allocation5 + $0x150] sm:$0xff]
    %v149 = vld [vmem:[#allocation5 + $0x158] sm:$0xff]
    %v150 = vld [vmem:[#allocation5 + $0x160] sm:$0xff]
    %v151 = vld [vmem:[#allocation5 + $0x168] sm:$0xff]
    %v152 = vld [vmem:[#allocation5 + $0x170] sm:$0xff]
    %v153 = vld [vmem:[#allocation5 + $0x178] sm:$0xff]
    %v154 = vld [vmem:[#allocation7] sm:$0xff]
    %v155 = vld [vmem:[#allocation7 + $0x8] sm:$0xff]
    %v156 = vld [vmem:[#allocation7 + $0x10] sm:$0xff]
    %v157 = vld [vmem:[#allocation7 + $0x18] sm:$0xff]
    %v158 = vld [vmem:[#allocation7 + $0x20] sm:$0xff]
    %v159 = vld [vmem:[#allocation7 + $0x28] sm:$0xff]
    %v160 = vld [vmem:[#allocation7 + $0x30] sm:$0xff]
    %v161 = vld [vmem:[#allocation7 + $0x38] sm:$0xff]
    %v162 = vld [vmem:[#allocation7 + $0x40] sm:$0xff]
    %v163 = vld [vmem:[#allocation7 + $0x48] sm:$0xff]
    %v164 = vld [vmem:[#allocation7 + $0x50] sm:$0xff]
    %v165 = vld [vmem:[#allocation7 + $0x58] sm:$0xff]
    %v166 = vld [vmem:[#allocation7 + $0x60] sm:$0xff]
    %v167 = vld [vmem:[#allocation7 + $0x68] sm:$0xff]
    %v168 = vld [vmem:[#allocation7 + $0x70] sm:$0xff]
    %v169 = vld [vmem:[#allocation7 + $0x78] sm:$0xff]
    %v170 = vld [vmem:[#allocation7 + $0x80] sm:$0xff]
    %v171 = vld [vmem:[#allocation7 + $0x88] sm:$0xff]
    %v172 = vld [vmem:[#allocation7 + $0x90] sm:$0xff]
    %v173 = vld [vmem:[#allocation7 + $0x98] sm:$0xff]
    %v174 = vld [vmem:[#allocation7 + $0xa0] sm:$0xff]
    %v175 = vld [vmem:[#allocation7 + $0xa8] sm:$0xff]
    %v176 = vld [vmem:[#allocation7 + $0xb0] sm:$0xff]
    %v177 = vld [vmem:[#allocation7 + $0xb8] sm:$0xff]
    %v178 = vld [vmem:[#allocation7 + $0xc0] sm:$0xff]
    %v179 = vld [vmem:[#allocation7 + $0xc8] sm:$0xff]
    %v180 = vld [vmem:[#allocation7 + $0xd0] sm:$0xff]
    %v181 = vld [vmem:[#allocation7 + $0xd8] sm:$0xff]
    %v182 = vld [vmem:[#allocation7 + $0xe0] sm:$0xff]
    %v183 = vld [vmem:[#allocation7 + $0xe8] sm:$0xff]
    %v184 = vld [vmem:[#allocation7 + $0xf0] sm:$0xff]
    %v185 = vld [vmem:[#allocation7 + $0xf8] sm:$0xff]
    %v186 = vld [vmem:[#allocation7 + $0x100] sm:$0xff]
    %v187 = vld [vmem:[#allocation7 + $0x108] sm:$0xff]
    %v188 = vld [vmem:[#allocation7 + $0x110] sm:$0xff]
    %v189 = vld [vmem:[#allocation7 + $0x118] sm:$0xff]
    %v190 = vld [vmem:[#allocation7 + $0x120] sm:$0xff]
    %v191 = vld [vmem:[#allocation7 + $0x128] sm:$0xff]
    %v192 = vld [vmem:[#allocation7 + $0x130] sm:$0xff]
    %v193 = vld [vmem:[#allocation7 + $0x138] sm:$0xff]
    %v194 = vld [vmem:[#allocation7 + $0x140] sm:$0xff]
    %v195 = vld [vmem:[#allocation7 + $0x148] sm:$0xff]
    %v196 = vld [vmem:[#allocation7 + $0x150] sm:$0xff]
    %v197 = vld [vmem:[#allocation7 + $0x158] sm:$0xff]
    %v198 = vld [vmem:[#allocation7 + $0x160] sm:$0xff]
    %v199 = vld [vmem:[#allocation7 + $0x168] sm:$0xff]
    %v200 = vld [vmem:[#allocation7 + $0x170] sm:$0xff]
    %v201 = vld [vmem:[#allocation7 + $0x178] sm:$0xff]
    %v202 = vld [vmem:[%s3] sm:$0x7]
    %v203 = vld [vmem:[%s4] sm:$0x1]
    %v204 = vld [vmem:[#allocation8] sm:$0xff]
    %v205 = vld [vmem:[#allocation8 + $0x8] sm:$0xff]
    %v206 = vld [vmem:[#allocation8 + $0x10] sm:$0xff]
    %v207 = vld [vmem:[#allocation8 + $0x18] sm:$0xff]
    %v208 = vld [vmem:[#allocation8 + $0x20] sm:$0xff]
    %v209 = vld [vmem:[#allocation8 + $0x28] sm:$0xff]
    %v210 = vld [vmem:[#allocation8 + $0x30] sm:$0xff]
    %v211 = vld [vmem:[#allocation8 + $0x38] sm:$0xff]
    %v212 = vld [vmem:[#allocation8 + $0x40] sm:$0xff]
    %v213 = vld [vmem:[#allocation8 + $0x48] sm:$0xff]
    %v214 = vld [vmem:[#allocation8 + $0x50] sm:$0xff]
    %v215 = vld [vmem:[#allocation8 + $0x58] sm:$0xff]
    %v216 = vld [vmem:[#allocation8 + $0x60] sm:$0xff]
    %v217 = vld [vmem:[#allocation8 + $0x68] sm:$0xff]
    %v218 = vld [vmem:[#allocation8 + $0x70] sm:$0xff]
    %v219 = vld [vmem:[#allocation8 + $0x78] sm:$0xff]
    %v220 = vld [vmem:[%s6] sm:$0x1]
    %v221 = vld [vmem:[%s7] sm:$0xff]
    %vm222 = vcmp.eq.s32.totalorder %v89, 0
    %v223 = vsel %vm222, 1.0, 0.0
    %224 = vmatprep.subr.mxu0 0.0
    %225 = vmatpush1.msra.mxu0 %v90
    %226 = vmatprep.subr.mxu0 0.0
    %227 = vmatpush1.msra.mxu0 %v91
    %228 = vmatprep.subr.mxu0 0.0
    %229 = vmatpush1.msra.mxu0 %v92
    %230 = vmatprep.subr.mxu0 0.0
    %231 = vmatpush1.msra.mxu0 %v93
    %232 = vmatprep.subr.mxu0 0.0
    %233 = vmatpush1.msra.mxu0 %v94
    %234 = vmatprep.subr.mxu0 0.0
    %235 = vmatpush1.msra.mxu0 %v95
    %236 = vmatprep.subr.mxu0 0.0
    %237 = vmatpush1.msra.mxu0 %v96
    %238 = vmatprep.subr.mxu0 0.0
    %239 = vmatpush1.msra.mxu0 %v97
    %240 = vmatprep.subr.mxu0 0.0
    %241 = vmatpush1.msra.mxu0 %v98
    %242 = vmatprep.subr.mxu0 0.0
    %243 = vmatpush1.msra.mxu0 %v99
    %244 = vmatprep.subr.mxu0 0.0
    %245 = vmatpush1.msra.mxu0 %v100
    %246 = vmatprep.subr.mxu0 0.0
    %247 = vmatpush1.msra.mxu0 %v101
    %248 = vmatprep.subr.mxu0 0.0
    %249 = vmatpush1.msra.mxu0 %v102
    %250 = vmatprep.subr.mxu0 0.0
    %251 = vmatpush1.msra.mxu0 %v103
    %252 = vmatprep.subr.mxu0 0.0
    %253 = vmatpush1.msra.mxu0 %v104
    %254 = vmatprep.subr.mxu0 0.0
    %255 = vmatpush1.msra.mxu0 %v105
    %256 = vmatprep.subr.mxu0 0.0
    %257 = vmatpush1.msra.mxu0 0.0
    %258 = vmatprep.subr.mxu0 0.0
    %259 = vmatpush1.msra.mxu0 0.0
    %260 = vmatprep.subr.mxu0 0.0
    %261 = vmatpush1.msra.mxu0 0.0
    %262 = vmatprep.subr.mxu0 0.0
    %263 = vmatpush1.msra.mxu0 0.0
    %264 = vmatprep.subr.mxu0 0.0
    %265 = vmatpush1.msra.mxu0 0.0
    %266 = vmatprep.subr.mxu0 0.0
    %267 = vmatpush1.msra.mxu0 0.0
    %268 = vmatprep.subr.mxu0 0.0
    %269 = vmatpush1.msra.mxu0 0.0
    %270 = vmatprep.subr.mxu0 0.0
    %271 = vmatpush1.msra.mxu0 0.0
    %272 = vmatprep.subr.mxu0 0.0
    %273 = vmatpush1.msra.mxu0 0.0
    %274 = vmatprep.subr.mxu0 0.0
    %275 = vmatpush1.msra.mxu0 0.0
    %276 = vmatprep.subr.mxu0 0.0
    %277 = vmatpush1.msra.mxu0 0.0
    %278 = vmatprep.subr.mxu0 0.0
    %279 = vmatpush1.msra.mxu0 0.0
    %280 = vmatprep.subr.mxu0 0.0
    %281 = vmatpush1.msra.mxu0 0.0
    %282 = vmatprep.subr.mxu0 0.0
    %283 = vmatpush1.msra.mxu0 0.0
    %284 = vmatprep.subr.mxu0 0.0
    %285 = vmatpush1.msra.mxu0 0.0
    %286 = vmatprep.subr.mxu0 0.0
    %287 = vmatpush1.msra.mxu0 0.0
    %288 = vmatprep.mubr.f32.mxu0 0.0
    %289 = vmatmul.mubr.f32.gmra.mrb[0].mxu0 %v223
    %v290 = vpop.f32.mrb[0].mxu0
    %v291 = vadd.f32 0.0, %v290
    %v292 = vpop.f32.mrb[0].mxu0
    %293 = vdwg.mxu0
    %v294 = vmax.f32 %v291, 0.0
    %v296 = vlaneseq
    %v297 = vshrl.u32 %v296, 7
    %v298 = vsub.s32 0, %v297
    %v299 = vrot.slane %v202, %v298
    %v300 = vlaneseq
    %v301 = vshrl.u32 %v300, 7
    %v302 = vsub.s32 1, %v301
    %v303 = vrot.slane %v202, %v302
    %v304 = vlaneseq
    %v305 = vshrl.u32 %v304, 7
    %v306 = vsub.s32 2, %v305
    %v307 = vrot.slane %v202, %v306
    %311 = vmatprep.subr.mxu0 %v107
    %312 = vmatpush1.msra.mxu0 %v106
    %313 = vmatprep.subr.mxu0 %v110
    %314 = vmatpush1.msra.mxu0 %v109
    %315 = vmatprep.subr.mxu0 %v113
    %316 = vmatpush1.msra.mxu0 %v112
    %317 = vmatprep.subr.mxu0 %v116
    %318 = vmatpush1.msra.mxu0 %v115
    %319 = vmatprep.subr.mxu0 %v119
    %320 = vmatpush1.msra.mxu0 %v118
    %321 = vmatprep.subr.mxu0 %v122
    %322 = vmatpush1.msra.mxu0 %v121
    %323 = vmatprep.subr.mxu0 %v125
    %324 = vmatpush1.msra.mxu0 %v124
    %325 = vmatprep.subr.mxu0 %v128
    %326 = vmatpush1.msra.mxu0 %v127
    %327 = vmatprep.subr.mxu0 %v131
    %328 = vmatpush1.msra.mxu0 %v130
    %329 = vmatprep.subr.mxu0 %v134
    %330 = vmatpush1.msra.mxu0 %v133
    %331 = vmatprep.subr.mxu0 %v137
    %332 = vmatpush1.msra.mxu0 %v136
    %333 = vmatprep.subr.mxu0 %v140
    %334 = vmatpush1.msra.mxu0 %v139
    %335 = vmatprep.subr.mxu0 %v143
    %336 = vmatpush1.msra.mxu0 %v142
    %337 = vmatprep.subr.mxu0 %v146
    %338 = vmatpush1.msra.mxu0 %v145
    %339 = vmatprep.subr.mxu0 %v149
    %340 = vmatpush1.msra.mxu0 %v148
    %341 = vmatprep.subr.mxu0 %v152
    %342 = vmatpush1.msra.mxu0 %v151
    %343 = vmatprep.subr.mxu0 0.0
    %344 = vmatpush1.msra.mxu0 0.0
    %345 = vmatprep.subr.mxu0 0.0
    %346 = vmatpush1.msra.mxu0 0.0
    %347 = vmatprep.subr.mxu0 0.0
    %348 = vmatpush1.msra.mxu0 0.0
    %349 = vmatprep.subr.mxu0 0.0
    %350 = vmatpush1.msra.mxu0 0.0
    %351 = vmatprep.subr.mxu0 0.0
    %352 = vmatpush1.msra.mxu0 0.0
    %353 = vmatprep.subr.mxu0 0.0
    %354 = vmatpush1.msra.mxu0 0.0
    %355 = vmatprep.subr.mxu0 0.0
    %356 = vmatpush1.msra.mxu0 0.0
    %357 = vmatprep.subr.mxu0 0.0
    %358 = vmatpush1.msra.mxu0 0.0
    %359 = vmatprep.subr.mxu0 0.0
    %360 = vmatpush1.msra.mxu0 0.0
    %361 = vmatprep.subr.mxu0 0.0
    %362 = vmatpush1.msra.mxu0 0.0
    %363 = vmatprep.subr.mxu0 0.0
    %364 = vmatpush1.msra.mxu0 0.0
    %365 = vmatprep.subr.mxu0 0.0
    %366 = vmatpush1.msra.mxu0 0.0
    %367 = vmatprep.subr.mxu0 0.0
    %368 = vmatpush1.msra.mxu0 0.0
    %369 = vmatprep.subr.mxu0 0.0
    %370 = vmatpush1.msra.mxu0 0.0
    %371 = vmatprep.subr.mxu0 0.0
    %372 = vmatpush1.msra.mxu0 0.0
    %373 = vmatprep.subr.mxu0 0.0
    %374 = vmatpush1.msra.mxu0 0.0
    %375 = vmatprep.mubr.f32.mxu0 0.0
    %376 = vmatmul.mubr.f32.gmra.mrb[0].mxu0 %v294
    %v377 = vpop.f32.mrb[0].mxu0
    %v378 = vadd.f32 %v299, %v377
    %v379 = vpop.f32.mrb[0].mxu0
    %v380 = vadd.f32 %v303, %v379
    %381 = vdwg.mxu0
    %382 = vmatprep.subr.mxu0 0.0
    %383 = vmatpush1.msra.mxu0 %v108
    %384 = vmatprep.subr.mxu0 0.0
    %385 = vmatpush1.msra.mxu0 %v111
    %386 = vmatprep.subr.mxu0 0.0
    %387 = vmatpush1.msra.mxu0 %v114
    %388 = vmatprep.subr.mxu0 0.0
    %389 = vmatpush1.msra.mxu0 %v117
    %390 = vmatprep.subr.mxu0 0.0
    %391 = vmatpush1.msra.mxu0 %v120
    %392 = vmatprep.subr.mxu0 0.0
    %393 = vmatpush1.msra.mxu0 %v123
    %394 = vmatprep.subr.mxu0 0.0
    %395 = vmatpush1.msra.mxu0 %v126
    %396 = vmatprep.subr.mxu0 0.0
    %397 = vmatpush1.msra.mxu0 %v129
    %398 = vmatprep.subr.mxu0 0.0
    %399 = vmatpush1.msra.mxu0 %v132
    %400 = vmatprep.subr.mxu0 0.0
    %401 = vmatpush1.msra.mxu0 %v135
    %402 = vmatprep.subr.mxu0 0.0
    %403 = vmatpush1.msra.mxu0 %v138
    %404 = vmatprep.subr.mxu0 0.0
    %405 = vmatpush1.msra.mxu0 %v141
    %406 = vmatprep.subr.mxu0 0.0
    %407 = vmatpush1.msra.mxu0 %v144
    %408 = vmatprep.subr.mxu0 0.0
    %409 = vmatpush1.msra.mxu0 %v147
    %410 = vmatprep.subr.mxu0 0.0
    %411 = vmatpush1.msra.mxu0 %v150
    %412 = vmatprep.subr.mxu0 0.0
    %413 = vmatpush1.msra.mxu0 %v153
    %414 = vmatprep.subr.mxu0 0.0
    %415 = vmatpush1.msra.mxu0 0.0
    %416 = vmatprep.subr.mxu0 0.0
    %417 = vmatpush1.msra.mxu0 0.0
    %418 = vmatprep.subr.mxu0 0.0
    %419 = vmatpush1.msra.mxu0 0.0
    %420 = vmatprep.subr.mxu0 0.0
    %421 = vmatpush1.msra.mxu0 0.0
    %422 = vmatprep.subr.mxu0 0.0
    %423 = vmatpush1.msra.mxu0 0.0
    %424 = vmatprep.subr.mxu0 0.0
    %425 = vmatpush1.msra.mxu0 0.0
    %426 = vmatprep.subr.mxu0 0.0
    %427 = vmatpush1.msra.mxu0 0.0
    %428 = vmatprep.subr.mxu0 0.0
    %429 = vmatpush1.msra.mxu0 0.0
    %430 = vmatprep.subr.mxu0 0.0
    %431 = vmatpush1.msra.mxu0 0.0
    %432 = vmatprep.subr.mxu0 0.0
    %433 = vmatpush1.msra.mxu0 0.0
    %434 = vmatprep.subr.mxu0 0.0
    %435 = vmatpush1.msra.mxu0 0.0
    %436 = vmatprep.subr.mxu0 0.0
    %437 = vmatpush1.msra.mxu0 0.0
    %438 = vmatprep.subr.mxu0 0.0
    %439 = vmatpush1.msra.mxu0 0.0
    %440 = vmatprep.subr.mxu0 0.0
    %441 = vmatpush1.msra.mxu0 0.0
    %442 = vmatprep.subr.mxu0 0.0
    %443 = vmatpush1.msra.mxu0 0.0
    %444 = vmatprep.subr.mxu0 0.0
    %445 = vmatpush1.msra.mxu0 0.0
    %446 = vmatprep.mubr.f32.mxu0 0.0
    %447 = vmatmul.mubr.f32.gmra.mrb[0].mxu0 %v294
    %v448 = vpop.f32.mrb[0].mxu0
    %v449 = vadd.f32 %v307, %v448
    %v450 = vpop.f32.mrb[0].mxu0
    %451 = vdwg.mxu0
    %452 = vmatprep.subr.mxu0 %v155
    %453 = vmatpush1.msra.mxu0 %v154
    %454 = vmatprep.subr.mxu0 %v158
    %455 = vmatpush1.msra.mxu0 %v157
    %456 = vmatprep.subr.mxu0 %v161
    %457 = vmatpush1.msra.mxu0 %v160
    %458 = vmatprep.subr.mxu0 %v164
    %459 = vmatpush1.msra.mxu0 %v163
    %460 = vmatprep.subr.mxu0 %v167
    %461 = vmatpush1.msra.mxu0 %v166
    %462 = vmatprep.subr.mxu0 %v170
    %463 = vmatpush1.msra.mxu0 %v169
    %464 = vmatprep.subr.mxu0 %v173
    %465 = vmatpush1.msra.mxu0 %v172
    %466 = vmatprep.subr.mxu0 %v176
    %467 = vmatpush1.msra.mxu0 %v175
    %468 = vmatprep.subr.mxu0 %v179
    %469 = vmatpush1.msra.mxu0 %v178
    %470 = vmatprep.subr.mxu0 %v182
    %471 = vmatpush1.msra.mxu0 %v181
    %472 = vmatprep.subr.mxu0 %v185
    %473 = vmatpush1.msra.mxu0 %v184
    %474 = vmatprep.subr.mxu0 %v188
    %475 = vmatpush1.msra.mxu0 %v187
    %476 = vmatprep.subr.mxu0 %v191
    %477 = vmatpush1.msra.mxu0 %v190
    %478 = vmatprep.subr.mxu0 %v194
    %479 = vmatpush1.msra.mxu0 %v193
    %480 = vmatprep.subr.mxu0 %v197
    %481 = vmatpush1.msra.mxu0 %v196
    %482 = vmatprep.subr.mxu0 %v200
    %483 = vmatpush1.msra.mxu0 %v199
    %484 = vmatprep.subr.mxu0 0.0
    %485 = vmatpush1.msra.mxu0 0.0
    %486 = vmatprep.subr.mxu0 0.0
    %487 = vmatpush1.msra.mxu0 0.0
    %488 = vmatprep.subr.mxu0 0.0
    %489 = vmatpush1.msra.mxu0 0.0
    %490 = vmatprep.subr.mxu0 0.0
    %491 = vmatpush1.msra.mxu0 0.0
    %492 = vmatprep.subr.mxu0 0.0
    %493 = vmatpush1.msra.mxu0 0.0
    %494 = vmatprep.subr.mxu0 0.0
    %495 = vmatpush1.msra.mxu0 0.0
    %496 = vmatprep.subr.mxu0 0.0
    %497 = vmatpush1.msra.mxu0 0.0
    %498 = vmatprep.subr.mxu0 0.0
    %499 = vmatpush1.msra.mxu0 0.0
    %500 = vmatprep.subr.mxu0 0.0
    %501 = vmatpush1.msra.mxu0 0.0
    %502 = vmatprep.subr.mxu0 0.0
    %503 = vmatpush1.msra.mxu0 0.0
    %504 = vmatprep.subr.mxu0 0.0
    %505 = vmatpush1.msra.mxu0 0.0
    %506 = vmatprep.subr.mxu0 0.0
    %507 = vmatpush1.msra.mxu0 0.0
    %508 = vmatprep.subr.mxu0 0.0
    %509 = vmatpush1.msra.mxu0 0.0
    %510 = vmatprep.subr.mxu0 0.0
    %511 = vmatpush1.msra.mxu0 0.0
    %512 = vmatprep.subr.mxu0 0.0
    %513 = vmatpush1.msra.mxu0 0.0
    %514 = vmatprep.subr.mxu0 0.0
    %515 = vmatpush1.msra.mxu0 0.0
    %516 = vmatprep.mubr.f32.mxu0 0.0
    %517 = vmatmul.mubr.f32.gmra.mrb[0].mxu0 %v221
    %v518 = vpop.f32.mrb[0].mxu0
    %v519 = vadd.f32 0.0, %v518
    %v520 = vpop.f32.mrb[0].mxu0
    %v521 = vadd.f32 0.0, %v520
    %522 = vdwg.mxu0
    %523 = vmatprep.subr.mxu0 0.0
    %524 = vmatpush1.msra.mxu0 %v156
    %525 = vmatprep.subr.mxu0 0.0
    %526 = vmatpush1.msra.mxu0 %v159
    %527 = vmatprep.subr.mxu0 0.0
    %528 = vmatpush1.msra.mxu0 %v162
    %529 = vmatprep.subr.mxu0 0.0
    %530 = vmatpush1.msra.mxu0 %v165
    %531 = vmatprep.subr.mxu0 0.0
    %532 = vmatpush1.msra.mxu0 %v168
    %533 = vmatprep.subr.mxu0 0.0
    %534 = vmatpush1.msra.mxu0 %v171
    %535 = vmatprep.subr.mxu0 0.0
    %536 = vmatpush1.msra.mxu0 %v174
    %537 = vmatprep.subr.mxu0 0.0
    %538 = vmatpush1.msra.mxu0 %v177
    %539 = vmatprep.subr.mxu0 0.0
    %540 = vmatpush1.msra.mxu0 %v180
    %541 = vmatprep.subr.mxu0 0.0
    %542 = vmatpush1.msra.mxu0 %v183
    %543 = vmatprep.subr.mxu0 0.0
    %544 = vmatpush1.msra.mxu0 %v186
    %545 = vmatprep.subr.mxu0 0.0
    %546 = vmatpush1.msra.mxu0 %v189
    %547 = vmatprep.subr.mxu0 0.0
    %548 = vmatpush1.msra.mxu0 %v192
    %549 = vmatprep.subr.mxu0 0.0
    %550 = vmatpush1.msra.mxu0 %v195
    %551 = vmatprep.subr.mxu0 0.0
    %552 = vmatpush1.msra.mxu0 %v198
    %553 = vmatprep.subr.mxu0 0.0
    %554 = vmatpush1.msra.mxu0 %v201
    %555 = vmatprep.subr.mxu0 0.0
    %556 = vmatpush1.msra.mxu0 0.0
    %557 = vmatprep.subr.mxu0 0.0
    %558 = vmatpush1.msra.mxu0 0.0
    %559 = vmatprep.subr.mxu0 0.0
    %560 = vmatpush1.msra.mxu0 0.0
    %561 = vmatprep.subr.mxu0 0.0
    %562 = vmatpush1.msra.mxu0 0.0
    %563 = vmatprep.subr.mxu0 0.0
    %564 = vmatpush1.msra.mxu0 0.0
    %565 = vmatprep.subr.mxu0 0.0
    %566 = vmatpush1.msra.mxu0 0.0
    %567 = vmatprep.subr.mxu0 0.0
    %568 = vmatpush1.msra.mxu0 0.0
    %569 = vmatprep.subr.mxu0 0.0
    %570 = vmatpush1.msra.mxu0 0.0
    %571 = vmatprep.subr.mxu0 0.0
    %572 = vmatpush1.msra.mxu0 0.0
    %573 = vmatprep.subr.mxu0 0.0
    %574 = vmatpush1.msra.mxu0 0.0
    %575 = vmatprep.subr.mxu0 0.0
    %576 = vmatpush1.msra.mxu0 0.0
    %577 = vmatprep.subr.mxu0 0.0
    %578 = vmatpush1.msra.mxu0 0.0
    %579 = vmatprep.subr.mxu0 0.0
    %580 = vmatpush1.msra.mxu0 0.0
    %581 = vmatprep.subr.mxu0 0.0
    %582 = vmatpush1.msra.mxu0 0.0
    %583 = vmatprep.subr.mxu0 0.0
    %584 = vmatpush1.msra.mxu0 0.0
    %585 = vmatprep.subr.mxu0 0.0
    %586 = vmatpush1.msra.mxu0 0.0
    %587 = vmatprep.mubr.f32.mxu0 0.0
    %588 = vmatmul.mubr.f32.gmra.mrb[0].mxu0 %v221
    %v589 = vpop.f32.mrb[0].mxu0
    %v590 = vadd.f32 0.0, %v589
    %v591 = vpop.f32.mrb[0].mxu0
    %592 = vdwg.mxu0
    %v593 = vadd.f32 %v378, %v519
    %v594 = vxor.u32 %v593, 2147483648
    %v595 = vmul.f32 %v594, 1.442695
    %v596 = vpow.pop %v595
    %v597 = vadd.f32 %v596, 1.0
    %v598 = vrcp.pop %v597
    %v599 = vmul.f32 1.0, %v598
    %v600 = vadd.f32 %v380, %v521
    %v601 = vxor.u32 %v600, 2147483648
    %v602 = vmul.f32 %v601, 1.442695
    %v603 = vpow.pop %v602
    %v604 = vadd.f32 %v603, 1.0
    %v605 = vrcp.pop %v604
    %v606 = vmul.f32 1.0, %v605
    %v608 = vlaneseq
    %v609 = vshrl.u32 %v608, 7
    %v610 = vsub.s32 0, %v609
    %v611 = vrot.slane %v203, %v610
    %v613 = vadd.f32 %v590, %v611
    %v614 = vmul.f32 %v599, %v613
    %v615 = vadd.f32 %v449, %v614
    %v616 = vtanh.pop %v615
    %v617 = vsub.f32 1.0, %v606
    %v618 = vmul.f32 %v617, %v616
    %v619 = vmul.f32 %v606, %v221
    %v620 = vadd.f32 %v618, %v619
    %v622 = vlaneseq
    %v623 = vshrl.u32 %v622, 7
    %v624 = vsub.s32 0, %v623
    %v625 = vrot.slane %v220, %v624
    %627 = vmatprep.subr.mxu0 0.0
    %628 = vmatpush1.msra.mxu0 %v204
    %629 = vmatprep.subr.mxu0 0.0
    %630 = vmatpush1.msra.mxu0 %v205
    %631 = vmatprep.subr.mxu0 0.0
    %632 = vmatpush1.msra.mxu0 %v206
    %633 = vmatprep.subr.mxu0 0.0
    %634 = vmatpush1.msra.mxu0 %v207
    %635 = vmatprep.subr.mxu0 0.0
    %636 = vmatpush1.msra.mxu0 %v208
    %637 = vmatprep.subr.mxu0 0.0
    %638 = vmatpush1.msra.mxu0 %v209
    %639 = vmatprep.subr.mxu0 0.0
    %640 = vmatpush1.msra.mxu0 %v210
    %641 = vmatprep.subr.mxu0 0.0
    %642 = vmatpush1.msra.mxu0 %v211
    %643 = vmatprep.subr.mxu0 0.0
    %644 = vmatpush1.msra.mxu0 %v212
    %645 = vmatprep.subr.mxu0 0.0
    %646 = vmatpush1.msra.mxu0 %v213
    %647 = vmatprep.subr.mxu0 0.0
    %648 = vmatpush1.msra.mxu0 %v214
    %649 = vmatprep.subr.mxu0 0.0
    %650 = vmatpush1.msra.mxu0 %v215
    %651 = vmatprep.subr.mxu0 0.0
    %652 = vmatpush1.msra.mxu0 %v216
    %653 = vmatprep.subr.mxu0 0.0
    %654 = vmatpush1.msra.mxu0 %v217
    %655 = vmatprep.subr.mxu0 0.0
    %656 = vmatpush1.msra.mxu0 %v218
    %657 = vmatprep.subr.mxu0 0.0
    %658 = vmatpush1.msra.mxu0 %v219
    %659 = vmatprep.subr.mxu0 0.0
    %660 = vmatpush1.msra.mxu0 0.0
    %661 = vmatprep.subr.mxu0 0.0
    %662 = vmatpush1.msra.mxu0 0.0
    %663 = vmatprep.subr.mxu0 0.0
    %664 = vmatpush1.msra.mxu0 0.0
    %665 = vmatprep.subr.mxu0 0.0
    %666 = vmatpush1.msra.mxu0 0.0
    %667 = vmatprep.subr.mxu0 0.0
    %668 = vmatpush1.msra.mxu0 0.0
    %669 = vmatprep.subr.mxu0 0.0
    %670 = vmatpush1.msra.mxu0 0.0
    %671 = vmatprep.subr.mxu0 0.0
    %672 = vmatpush1.msra.mxu0 0.0
    %673 = vmatprep.subr.mxu0 0.0
    %674 = vmatpush1.msra.mxu0 0.0
    %675 = vmatprep.subr.mxu0 0.0
    %676 = vmatpush1.msra.mxu0 0.0
    %677 = vmatprep.subr.mxu0 0.0
    %678 = vmatpush1.msra.mxu0 0.0
    %679 = vmatprep.subr.mxu0 0.0
    %680 = vmatpush1.msra.mxu0 0.0
    %681 = vmatprep.subr.mxu0 0.0
    %682 = vmatpush1.msra.mxu0 0.0
    %683 = vmatprep.subr.mxu0 0.0
    %684 = vmatpush1.msra.mxu0 0.0
    %685 = vmatprep.subr.mxu0 0.0
    %686 = vmatpush1.msra.mxu0 0.0
    %687 = vmatprep.subr.mxu0 0.0
    %688 = vmatpush1.msra.mxu0 0.0
    %689 = vmatprep.subr.mxu0 0.0
    %690 = vmatpush1.msra.mxu0 0.0
    %691 = vmatprep.mubr.f32.mxu0 0.0
    %692 = vmatmul.mubr.f32.gmra.mrb[0].mxu0 %v620
    %v693 = vpop.f32.mrb[0].mxu0
    %v694 = vadd.f32 %v625, %v693
    %v695 = vpop.f32.mrb[0].mxu0
    %696 = vdwg.mxu0
    %697 = vmax.xlane.f32.xlu0 %v694
    %v698 = vpop.xlane.xlu0 %697
    %v699 = vsub.f32 %v694, %v698
    %v700 = vmul.f32 %v699, 1.442695
    %v701 = vpow.pop %v700
    %702 = vadd.xlane.f32.xlu0 %v701
    %v703 = vpop.xlane.xlu0 %702
    %v704 = vlog2.pop %v703
    %v705 = vmul.f32 %v704, 0.6931472
    %v706 = vadd.f32 %v705, %v698
    %v707 = vsub.f32 %v694, %v706
    %708 = vst [vmem:[#allocation10] sm:$0xff] %v707
    %vm709 = vcmp.eq.f32.partialorder %v694, %v698
    %v710 = vsel %vm709, %v89, 128
    %v711 = vand.u32 %v710, 65535
    %v712 = vshra.s32 %v710, 16
    %v713 = vcvt.s32.f32 %v711
    %v714 = vcvt.s32.f32 %v712
    %715 = vmin.xlane.f32.xlu0 %v714
    %v716 = vpop.xlane.xlu0 %715
    %vm717 = vcmp.eq.f32.partialorder %v714, %v716
    %v718 = vsel %vm717, %v713, inf
    %719 = vmin.xlane.f32.xlu0 %v718
    %v720 = vpop.xlane.xlu0 %719
    %v721 = vcvt.f32.s32 %v720
    %v722 = vcvt.f32.s32 %v716
    %v723 = vshll.u32 %v722, 16
    %v724 = vadd.s32 %v723, %v721
    %vm725 = vcmp.eq.s32.totalorder %v89, %v724
    %v726 = vsel %vm725, 1.0, 0.0
    %727 = vmatprep.subr.mxu0 0.0
    %728 = vmatpush1.msra.mxu0 %v90
    %729 = vmatprep.subr.mxu0 0.0
    %730 = vmatpush1.msra.mxu0 %v91
    %731 = vmatprep.subr.mxu0 0.0
    %732 = vmatpush1.msra.mxu0 %v92
    %733 = vmatprep.subr.mxu0 0.0
    %734 = vmatpush1.msra.mxu0 %v93
    %735 = vmatprep.subr.mxu0 0.0
    %736 = vmatpush1.msra.mxu0 %v94
    %737 = vmatprep.subr.mxu0 0.0
    %738 = vmatpush1.msra.mxu0 %v95
    %739 = vmatprep.subr.mxu0 0.0
    %740 = vmatpush1.msra.mxu0 %v96
    %741 = vmatprep.subr.mxu0 0.0
    %742 = vmatpush1.msra.mxu0 %v97
    %743 = vmatprep.subr.mxu0 0.0
    %744 = vmatpush1.msra.mxu0 %v98
    %745 = vmatprep.subr.mxu0 0.0
    %746 = vmatpush1.msra.mxu0 %v99
    %747 = vmatprep.subr.mxu0 0.0
    %748 = vmatpush1.msra.mxu0 %v100
    %749 = vmatprep.subr.mxu0 0.0
    %750 = vmatpush1.msra.mxu0 %v101
    %751 = vmatprep.subr.mxu0 0.0
    %752 = vmatpush1.msra.mxu0 %v102
    %753 = vmatprep.subr.mxu0 0.0
    %754 = vmatpush1.msra.mxu0 %v103
    %755 = vmatprep.subr.mxu0 0.0
    %756 = vmatpush1.msra.mxu0 %v104
    %757 = vmatprep.subr.mxu0 0.0
    %758 = vmatpush1.msra.mxu0 %v105
    %759 = vmatprep.subr.mxu0 0.0
    %760 = vmatpush1.msra.mxu0 0.0
    %761 = vmatprep.subr.mxu0 0.0
    %762 = vmatpush1.msra.mxu0 0.0
    %763 = vmatprep.subr.mxu0 0.0
    %764 = vmatpush1.msra.mxu0 0.0
    %765 = vmatprep.subr.mxu0 0.0
    %766 = vmatpush1.msra.mxu0 0.0
    %767 = vmatprep.subr.mxu0 0.0
    %768 = vmatpush1.msra.mxu0 0.0
    %769 = vmatprep.subr.mxu0 0.0
    %770 = vmatpush1.msra.mxu0 0.0
    %771 = vmatprep.subr.mxu0 0.0
    %772 = vmatpush1.msra.mxu0 0.0
    %773 = vmatprep.subr.mxu0 0.0
    %774 = vmatpush1.msra.mxu0 0.0
    %775 = vmatprep.subr.mxu0 0.0
    %776 = vmatpush1.msra.mxu0 0.0
    %777 = vmatprep.subr.mxu0 0.0
    %778 = vmatpush1.msra.mxu0 0.0
    %779 = vmatprep.subr.mxu0 0.0
    %780 = vmatpush1.msra.mxu0 0.0
    %781 = vmatprep.subr.mxu0 0.0
    %782 = vmatpush1.msra.mxu0 0.0
    %783 = vmatprep.subr.mxu0 0.0
    %784 = vmatpush1.msra.mxu0 0.0
    %785 = vmatprep.subr.mxu0 0.0
    %786 = vmatpush1.msra.mxu0 0.0
    %787 = vmatprep.subr.mxu0 0.0
    %788 = vmatpush1.msra.mxu0 0.0
    %789 = vmatprep.subr.mxu0 0.0
    %790 = vmatpush1.msra.mxu0 0.0
    %791 = vmatprep.mubr.f32.mxu0 0.0
    %792 = vmatmul.mubr.f32.gmra.mrb[0].mxu0 %v726
    %v793 = vpop.f32.mrb[0].mxu0
    %v794 = vadd.f32 0.0, %v793
    %v795 = vpop.f32.mrb[0].mxu0
    %796 = vdwg.mxu0
    %v797 = vmax.f32 %v794, 0.0
    %798 = vmatprep.subr.mxu0 %v107
    %799 = vmatpush1.msra.mxu0 %v106
    %800 = vmatprep.subr.mxu0 %v110
    %801 = vmatpush1.msra.mxu0 %v109
    %802 = vmatprep.subr.mxu0 %v113
    %803 = vmatpush1.msra.mxu0 %v112
    %804 = vmatprep.subr.mxu0 %v116
    %805 = vmatpush1.msra.mxu0 %v115
    %806 = vmatprep.subr.mxu0 %v119
    %807 = vmatpush1.msra.mxu0 %v118
    %808 = vmatprep.subr.mxu0 %v122
    %809 = vmatpush1.msra.mxu0 %v121
    %810 = vmatprep.subr.mxu0 %v125
    %811 = vmatpush1.msra.mxu0 %v124
    %812 = vmatprep.subr.mxu0 %v128
    %813 = vmatpush1.msra.mxu0 %v127
    %814 = vmatprep.subr.mxu0 %v131
    %815 = vmatpush1.msra.mxu0 %v130
    %816 = vmatprep.subr.mxu0 %v134
    %817 = vmatpush1.msra.mxu0 %v133
    %818 = vmatprep.subr.mxu0 %v137
    %819 = vmatpush1.msra.mxu0 %v136
    %820 = vmatprep.subr.mxu0 %v140
    %821 = vmatpush1.msra.mxu0 %v139
    %822 = vmatprep.subr.mxu0 %v143
    %823 = vmatpush1.msra.mxu0 %v142
    %824 = vmatprep.subr.mxu0 %v146
    %825 = vmatpush1.msra.mxu0 %v145
    %826 = vmatprep.subr.mxu0 %v149
    %827 = vmatpush1.msra.mxu0 %v148
    %828 = vmatprep.subr.mxu0 %v152
    %829 = vmatpush1.msra.mxu0 %v151
    %830 = vmatprep.subr.mxu0 0.0
    %831 = vmatpush1.msra.mxu0 0.0
    %832 = vmatprep.subr.mxu0 0.0
    %833 = vmatpush1.msra.mxu0 0.0
    %834 = vmatprep.subr.mxu0 0.0
    %835 = vmatpush1.msra.mxu0 0.0
    %836 = vmatprep.subr.mxu0 0.0
    %837 = vmatpush1.msra.mxu0 0.0
    %838 = vmatprep.subr.mxu0 0.0
    %839 = vmatpush1.msra.mxu0 0.0
    %840 = vmatprep.subr.mxu0 0.0
    %841 = vmatpush1.msra.mxu0 0.0
    %842 = vmatprep.subr.mxu0 0.0
    %843 = vmatpush1.msra.mxu0 0.0
    %844 = vmatprep.subr.mxu0 0.0
    %845 = vmatpush1.msra.mxu0 0.0
    %846 = vmatprep.subr.mxu0 0.0
    %847 = vmatpush1.msra.mxu0 0.0
    %848 = vmatprep.subr.mxu0 0.0
    %849 = vmatpush1.msra.mxu0 0.0
    %850 = vmatprep.subr.mxu0 0.0
    %851 = vmatpush1.msra.mxu0 0.0
    %852 = vmatprep.subr.mxu0 0.0
    %853 = vmatpush1.msra.mxu0 0.0
    %854 = vmatprep.subr.mxu0 0.0
    %855 = vmatpush1.msra.mxu0 0.0
    %856 = vmatprep.subr.mxu0 0.0
    %857 = vmatpush1.msra.mxu0 0.0
    %858 = vmatprep.subr.mxu0 0.0
    %859 = vmatpush1.msra.mxu0 0.0
    %860 = vmatprep.subr.mxu0 0.0
    %861 = vmatpush1.msra.mxu0 0.0
    %862 = vmatprep.mubr.f32.mxu0 0.0
    %863 = vmatmul.mubr.f32.gmra.mrb[0].mxu0 %v797
    %v864 = vpop.f32.mrb[0].mxu0
    %v865 = vadd.f32 %v299, %v864
    %v866 = vpop.f32.mrb[0].mxu0
    %v867 = vadd.f32 %v303, %v866
    %868 = vdwg.mxu0
    %869 = vmatprep.subr.mxu0 0.0
    %870 = vmatpush1.msra.mxu0 %v108
    %871 = vmatprep.subr.mxu0 0.0
    %872 = vmatpush1.msra.mxu0 %v111
    %873 = vmatprep.subr.mxu0 0.0
    %874 = vmatpush1.msra.mxu0 %v114
    %875 = vmatprep.subr.mxu0 0.0
    %876 = vmatpush1.msra.mxu0 %v117
    %877 = vmatprep.subr.mxu0 0.0
    %878 = vmatpush1.msra.mxu0 %v120
    %879 = vmatprep.subr.mxu0 0.0
    %880 = vmatpush1.msra.mxu0 %v123
    %881 = vmatprep.subr.mxu0 0.0
    %882 = vmatpush1.msra.mxu0 %v126
    %883 = vmatprep.subr.mxu0 0.0
    %884 = vmatpush1.msra.mxu0 %v129
    %885 = vmatprep.subr.mxu0 0.0
    %886 = vmatpush1.msra.mxu0 %v132
    %887 = vmatprep.subr.mxu0 0.0
    %888 = vmatpush1.msra.mxu0 %v135
    %889 = vmatprep.subr.mxu0 0.0
    %890 = vmatpush1.msra.mxu0 %v138
    %891 = vmatprep.subr.mxu0 0.0
    %892 = vmatpush1.msra.mxu0 %v141
    %893 = vmatprep.subr.mxu0 0.0
    %894 = vmatpush1.msra.mxu0 %v144
    %895 = vmatprep.subr.mxu0 0.0
    %896 = vmatpush1.msra.mxu0 %v147
    %897 = vmatprep.subr.mxu0 0.0
    %898 = vmatpush1.msra.mxu0 %v150
    %899 = vmatprep.subr.mxu0 0.0
    %900 = vmatpush1.msra.mxu0 %v153
    %901 = vmatprep.subr.mxu0 0.0
    %902 = vmatpush1.msra.mxu0 0.0
    %903 = vmatprep.subr.mxu0 0.0
    %904 = vmatpush1.msra.mxu0 0.0
    %905 = vmatprep.subr.mxu0 0.0
    %906 = vmatpush1.msra.mxu0 0.0
    %907 = vmatprep.subr.mxu0 0.0
    %908 = vmatpush1.msra.mxu0 0.0
    %909 = vmatprep.subr.mxu0 0.0
    %910 = vmatpush1.msra.mxu0 0.0
    %911 = vmatprep.subr.mxu0 0.0
    %912 = vmatpush1.msra.mxu0 0.0
    %913 = vmatprep.subr.mxu0 0.0
    %914 = vmatpush1.msra.mxu0 0.0
    %915 = vmatprep.subr.mxu0 0.0
    %916 = vmatpush1.msra.mxu0 0.0
    %917 = vmatprep.subr.mxu0 0.0
    %918 = vmatpush1.msra.mxu0 0.0
    %919 = vmatprep.subr.mxu0 0.0
    %920 = vmatpush1.msra.mxu0 0.0
    %921 = vmatprep.subr.mxu0 0.0
    %922 = vmatpush1.msra.mxu0 0.0
    %923 = vmatprep.subr.mxu0 0.0
    %924 = vmatpush1.msra.mxu0 0.0
    %925 = vmatprep.subr.mxu0 0.0
    %926 = vmatpush1.msra.mxu0 0.0
    %927 = vmatprep.subr.mxu0 0.0
    %928 = vmatpush1.msra.mxu0 0.0
    %929 = vmatprep.subr.mxu0 0.0
    %930 = vmatpush1.msra.mxu0 0.0
    %931 = vmatprep.subr.mxu0 0.0
    %932 = vmatpush1.msra.mxu0 0.0
    %933 = vmatprep.mubr.f32.mxu0 0.0
    %934 = vmatmul.mubr.f32.gmra.mrb[0].mxu0 %v797
    %v935 = vpop.f32.mrb[0].mxu0
    %v936 = vadd.f32 %v307, %v935
    %v937 = vpop.f32.mrb[0].mxu0
    %938 = vdwg.mxu0
    %939 = vmatprep.subr.mxu0 %v155
    %940 = vmatpush1.msra.mxu0 %v154
    %941 = vmatprep.subr.mxu0 %v158
    %942 = vmatpush1.msra.mxu0 %v157
    %943 = vmatprep.subr.mxu0 %v161
    %944 = vmatpush1.msra.mxu0 %v160
    %945 = vmatprep.subr.mxu0 %v164
    %946 = vmatpush1.msra.mxu0 %v163
    %947 = vmatprep.subr.mxu0 %v167
    %948 = vmatpush1.msra.mxu0 %v166
    %949 = vmatprep.subr.mxu0 %v170
    %950 = vmatpush1.msra.mxu0 %v169
    %951 = vmatprep.subr.mxu0 %v173
    %952 = vmatpush1.msra.mxu0 %v172
    %953 = vmatprep.subr.mxu0 %v176
    %954 = vmatpush1.msra.mxu0 %v175
    %955 = vmatprep.subr.mxu0 %v179
    %956 = vmatpush1.msra.mxu0 %v178
    %957 = vmatprep.subr.mxu0 %v182
    %958 = vmatpush1.msra.mxu0 %v181
    %959 = vmatprep.subr.mxu0 %v185
    %960 = vmatpush1.msra.mxu0 %v184
    %961 = vmatprep.subr.mxu0 %v188
    %962 = vmatpush1.msra.mxu0 %v187
    %963 = vmatprep.subr.mxu0 %v191
    %964 = vmatpush1.msra.mxu0 %v190
    %965 = vmatprep.subr.mxu0 %v194
    %966 = vmatpush1.msra.mxu0 %v193
    %967 = vmatprep.subr.mxu0 %v197
    %968 = vmatpush1.msra.mxu0 %v196
    %969 = vmatprep.subr.mxu0 %v200
    %970 = vmatpush1.msra.mxu0 %v199
    %971 = vmatprep.subr.mxu0 0.0
    %972 = vmatpush1.msra.mxu0 0.0
    %973 = vmatprep.subr.mxu0 0.0
    %974 = vmatpush1.msra.mxu0 0.0
    %975 = vmatprep.subr.mxu0 0.0
    %976 = vmatpush1.msra.mxu0 0.0
    %977 = vmatprep.subr.mxu0 0.0
    %978 = vmatpush1.msra.mxu0 0.0
    %979 = vmatprep.subr.mxu0 0.0
    %980 = vmatpush1.msra.mxu0 0.0
    %981 = vmatprep.subr.mxu0 0.0
    %982 = vmatpush1.msra.mxu0 0.0
    %983 = vmatprep.subr.mxu0 0.0
    %984 = vmatpush1.msra.mxu0 0.0
    %985 = vmatprep.subr.mxu0 0.0
    %986 = vmatpush1.msra.mxu0 0.0
    %987 = vmatprep.subr.mxu0 0.0
    %988 = vmatpush1.msra.mxu0 0.0
    %989 = vmatprep.subr.mxu0 0.0
    %990 = vmatpush1.msra.mxu0 0.0
    %991 = vmatprep.subr.mxu0 0.0
    %992 = vmatpush1.msra.mxu0 0.0
    %993 = vmatprep.subr.mxu0 0.0
    %994 = vmatpush1.msra.mxu0 0.0
    %995 = vmatprep.subr.mxu0 0.0
    %996 = vmatpush1.msra.mxu0 0.0
    %997 = vmatprep.subr.mxu0 0.0
    %998 = vmatpush1.msra.mxu0 0.0
    %999 = vmatprep.subr.mxu0 0.0
    %1000 = vmatpush1.msra.mxu0 0.0
    %1001 = vmatprep.subr.mxu0 0.0
    %1002 = vmatpush1.msra.mxu0 0.0
    %1003 = vmatprep.mubr.f32.mxu0 0.0
    %1004 = vmatmul.mubr.f32.gmra.mrb[0].mxu0 %v620
    %v1005 = vpop.f32.mrb[0].mxu0
    %v1006 = vadd.f32 0.0, %v1005
    %v1007 = vpop.f32.mrb[0].mxu0
    %v1008 = vadd.f32 0.0, %v1007
    %1009 = vdwg.mxu0
    %1010 = vmatprep.subr.mxu0 0.0
    %1011 = vmatpush1.msra.mxu0 %v156
    %1012 = vmatprep.subr.mxu0 0.0
    %1013 = vmatpush1.msra.mxu0 %v159
    %1014 = vmatprep.subr.mxu0 0.0
    %1015 = vmatpush1.msra.mxu0 %v162
    %1016 = vmatprep.subr.mxu0 0.0
    %1017 = vmatpush1.msra.mxu0 %v165
    %1018 = vmatprep.subr.mxu0 0.0
    %1019 = vmatpush1.msra.mxu0 %v168
    %1020 = vmatprep.subr.mxu0 0.0
    %1021 = vmatpush1.msra.mxu0 %v171
    %1022 = vmatprep.subr.mxu0 0.0
    %1023 = vmatpush1.msra.mxu0 %v174
    %1024 = vmatprep.subr.mxu0 0.0
    %1025 = vmatpush1.msra.mxu0 %v177
    %1026 = vmatprep.subr.mxu0 0.0
    %1027 = vmatpush1.msra.mxu0 %v180
    %1028 = vmatprep.subr.mxu0 0.0
    %1029 = vmatpush1.msra.mxu0 %v183
    %1030 = vmatprep.subr.mxu0 0.0
    %1031 = vmatpush1.msra.mxu0 %v186
    %1032 = vmatprep.subr.mxu0 0.0
    %1033 = vmatpush1.msra.mxu0 %v189
    %1034 = vmatprep.subr.mxu0 0.0
    %1035 = vmatpush1.msra.mxu0 %v192
    %1036 = vmatprep.subr.mxu0 0.0
    %1037 = vmatpush1.msra.mxu0 %v195
    %1038 = vmatprep.subr.mxu0 0.0
    %1039 = vmatpush1.msra.mxu0 %v198
    %1040 = vmatprep.subr.mxu0 0.0
    %1041 = vmatpush1.msra.mxu0 %v201
    %1042 = vmatprep.subr.mxu0 0.0
    %1043 = vmatpush1.msra.mxu0 0.0
    %1044 = vmatprep.subr.mxu0 0.0
    %1045 = vmatpush1.msra.mxu0 0.0
    %1046 = vmatprep.subr.mxu0 0.0
    %1047 = vmatpush1.msra.mxu0 0.0
    %1048 = vmatprep.subr.mxu0 0.0
    %1049 = vmatpush1.msra.mxu0 0.0
    %1050 = vmatprep.subr.mxu0 0.0
    %1051 = vmatpush1.msra.mxu0 0.0
    %1052 = vmatprep.subr.mxu0 0.0
    %1053 = vmatpush1.msra.mxu0 0.0
    %1054 = vmatprep.subr.mxu0 0.0
    %1055 = vmatpush1.msra.mxu0 0.0
    %1056 = vmatprep.subr.mxu0 0.0
    %1057 = vmatpush1.msra.mxu0 0.0
    %1058 = vmatprep.subr.mxu0 0.0
    %1059 = vmatpush1.msra.mxu0 0.0
    %1060 = vmatprep.subr.mxu0 0.0
    %1061 = vmatpush1.msra.mxu0 0.0
    %1062 = vmatprep.subr.mxu0 0.0
    %1063 = vmatpush1.msra.mxu0 0.0
    %1064 = vmatprep.subr.mxu0 0.0
    %1065 = vmatpush1.msra.mxu0 0.0
    %1066 = vmatprep.subr.mxu0 0.0
    %1067 = vmatpush1.msra.mxu0 0.0
    %1068 = vmatprep.subr.mxu0 0.0
    %1069 = vmatpush1.msra.mxu0 0.0
    %1070 = vmatprep.subr.mxu0 0.0
    %1071 = vmatpush1.msra.mxu0 0.0
    %1072 = vmatprep.subr.mxu0 0.0
    %1073 = vmatpush1.msra.mxu0 0.0
    %1074 = vmatprep.mubr.f32.mxu0 0.0
    %1075 = vmatmul.mubr.f32.gmra.mrb[0].mxu0 %v620
    %v1076 = vpop.f32.mrb[0].mxu0
    %v1077 = vadd.f32 0.0, %v1076
    %v1078 = vpop.f32.mrb[0].mxu0
    %1079 = vdwg.mxu0
    %v1080 = vadd.f32 %v865, %v1006
    %v1081 = vxor.u32 %v1080, 2147483648
    %v1082 = vmul.f32 %v1081, 1.442695
    %v1083 = vpow.pop %v1082
    %v1084 = vadd.f32 %v1083, 1.0
    %v1085 = vrcp.pop %v1084
    %v1086 = vmul.f32 1.0, %v1085
    %v1087 = vadd.f32 %v867, %v1008
    %v1088 = vxor.u32 %v1087, 2147483648
    %v1089 = vmul.f32 %v1088, 1.442695
    %v1090 = vpow.pop %v1089
    %v1091 = vadd.f32 %v1090, 1.0
    %v1092 = vrcp.pop %v1091
    %v1093 = vmul.f32 1.0, %v1092
    %v1094 = vadd.f32 %v1077, %v611
    %v1095 = vmul.f32 %v1086, %v1094
    %v1096 = vadd.f32 %v936, %v1095
    %v1097 = vtanh.pop %v1096
    %v1098 = vsub.f32 1.0, %v1093
    %v1099 = vmul.f32 %v1098, %v1097
    %v1100 = vmul.f32 %v1093, %v620
    %v1101 = vadd.f32 %v1099, %v1100
    %1102 = vmatprep.subr.mxu0 0.0
    %1103 = vmatpush1.msra.mxu0 %v204
    %1104 = vmatprep.subr.mxu0 0.0
    %1105 = vmatpush1.msra.mxu0 %v205
    %1106 = vmatprep.subr.mxu0 0.0
    %1107 = vmatpush1.msra.mxu0 %v206
    %1108 = vmatprep.subr.mxu0 0.0
    %1109 = vmatpush1.msra.mxu0 %v207
    %1110 = vmatprep.subr.mxu0 0.0
    %1111 = vmatpush1.msra.mxu0 %v208
    %1112 = vmatprep.subr.mxu0 0.0
    %1113 = vmatpush1.msra.mxu0 %v209
    %1114 = vmatprep.subr.mxu0 0.0
    %1115 = vmatpush1.msra.mxu0 %v210
    %1116 = vmatprep.subr.mxu0 0.0
    %1117 = vmatpush1.msra.mxu0 %v211
    %1118 = vmatprep.subr.mxu0 0.0
    %1119 = vmatpush1.msra.mxu0 %v212
    %1120 = vmatprep.subr.mxu0 0.0
    %1121 = vmatpush1.msra.mxu0 %v213
    %1122 = vmatprep.subr.mxu0 0.0
    %1123 = vmatpush1.msra.mxu0 %v214
    %1124 = vmatprep.subr.mxu0 0.0
    %1125 = vmatpush1.msra.mxu0 %v215
    %1126 = vmatprep.subr.mxu0 0.0
    %1127 = vmatpush1.msra.mxu0 %v216
    %1128 = vmatprep.subr.mxu0 0.0
    %1129 = vmatpush1.msra.mxu0 %v217
    %1130 = vmatprep.subr.mxu0 0.0
    %1131 = vmatpush1.msra.mxu0 %v218
    %1132 = vmatprep.subr.mxu0 0.0
    %1133 = vmatpush1.msra.mxu0 %v219
    %1134 = vmatprep.subr.mxu0 0.0
    %1135 = vmatpush1.msra.mxu0 0.0
    %1136 = vmatprep.subr.mxu0 0.0
    %1137 = vmatpush1.msra.mxu0 0.0
    %1138 = vmatprep.subr.mxu0 0.0
    %1139 = vmatpush1.msra.mxu0 0.0
    %1140 = vmatprep.subr.mxu0 0.0
    %1141 = vmatpush1.msra.mxu0 0.0
    %1142 = vmatprep.subr.mxu0 0.0
    %1143 = vmatpush1.msra.mxu0 0.0
    %1144 = vmatprep.subr.mxu0 0.0
    %1145 = vmatpush1.msra.mxu0 0.0
    %1146 = vmatprep.subr.mxu0 0.0
    %1147 = vmatpush1.msra.mxu0 0.0
    %1148 = vmatprep.subr.mxu0 0.0
    %1149 = vmatpush1.msra.mxu0 0.0
    %1150 = vmatprep.subr.mxu0 0.0
    %1151 = vmatpush1.msra.mxu0 0.0
    %1152 = vmatprep.subr.mxu0 0.0
    %1153 = vmatpush1.msra.mxu0 0.0
    %1154 = vmatprep.subr.mxu0 0.0
    %1155 = vmatpush1.msra.mxu0 0.0
    %1156 = vmatprep.subr.mxu0 0.0
    %1157 = vmatpush1.msra.mxu0 0.0
    %1158 = vmatprep.subr.mxu0 0.0
    %1159 = vmatpush1.msra.mxu0 0.0
    %1160 = vmatprep.subr.mxu0 0.0
    %1161 = vmatpush1.msra.mxu0 0.0
    %1162 = vmatprep.subr.mxu0 0.0
    %1163 = vmatpush1.msra.mxu0 0.0
    %1164 = vmatprep.subr.mxu0 0.0
    %1165 = vmatpush1.msra.mxu0 0.0
    %1166 = vmatprep.mubr.f32.mxu0 0.0
    %1167 = vmatmul.mubr.f32.gmra.mrb[0].mxu0 %v1101
    %v1168 = vpop.f32.mrb[0].mxu0
    %v1169 = vadd.f32 %v625, %v1168
    %v1170 = vpop.f32.mrb[0].mxu0
    %1171 = vdwg.mxu0
    %1172 = vmax.xlane.f32.xlu0 %v1169
    %v1173 = vpop.xlane.xlu0 %1172
    %v1174 = vsub.f32 %v1169, %v1173
    %v1175 = vmul.f32 %v1174, 1.442695
    %v1176 = vpow.pop %v1175
    %1177 = vadd.xlane.f32.xlu0 %v1176
    %v1178 = vpop.xlane.xlu0 %1177
    %v1179 = vlog2.pop %v1178
    %v1180 = vmul.f32 %v1179, 0.6931472
    %v1181 = vadd.f32 %v1180, %v1173
    %v1182 = vsub.f32 %v1169, %v1181
    %s1183 = scalar_lea.vmem [#allocation10], 8
    %1184 = vst [vmem:[%s1183] sm:$0xff] %v1182
    %vm1185 = vcmp.eq.f32.partialorder %v1169, %v1173
    %v1186 = vsel %vm1185, %v89, 128
    %v1187 = vand.u32 %v1186, 65535
    %v1188 = vshra.s32 %v1186, 16
    %v1189 = vcvt.s32.f32 %v1187
    %v1190 = vcvt.s32.f32 %v1188
    %1191 = vmin.xlane.f32.xlu0 %v1190
    %v1192 = vpop.xlane.xlu0 %1191
    %vm1193 = vcmp.eq.f32.partialorder %v1190, %v1192
    %v1194 = vsel %vm1193, %v1189, inf
    %1195 = vmin.xlane.f32.xlu0 %v1194
    %v1196 = vpop.xlane.xlu0 %1195
    %v1197 = vcvt.f32.s32 %v1196
    %v1198 = vcvt.f32.s32 %v1192
    %v1199 = vshll.u32 %v1198, 16
    %v1200 = vadd.s32 %v1199, %v1197
    %vm1201 = vcmp.eq.s32.totalorder %v89, %v1200
    %v1202 = vsel %vm1201, 1.0, 0.0
    %1203 = vmatprep.subr.mxu0 0.0
    %1204 = vmatpush1.msra.mxu0 %v90
    %1205 = vmatprep.subr.mxu0 0.0
    %1206 = vmatpush1.msra.mxu0 %v91
    %1207 = vmatprep.subr.mxu0 0.0
    %1208 = vmatpush1.msra.mxu0 %v92
    %1209 = vmatprep.subr.mxu0 0.0
    %1210 = vmatpush1.msra.mxu0 %v93
    %1211 = vmatprep.subr.mxu0 0.0
    %1212 = vmatpush1.msra.mxu0 %v94
    %1213 = vmatprep.subr.mxu0 0.0
    %1214 = vmatpush1.msra.mxu0 %v95
    %1215 = vmatprep.subr.mxu0 0.0
    %1216 = vmatpush1.msra.mxu0 %v96
    %1217 = vmatprep.subr.mxu0 0.0
    %1218 = vmatpush1.msra.mxu0 %v97
    %1219 = vmatprep.subr.mxu0 0.0
    %1220 = vmatpush1.msra.mxu0 %v98
    %1221 = vmatprep.subr.mxu0 0.0
    %1222 = vmatpush1.msra.mxu0 %v99
    %1223 = vmatprep.subr.mxu0 0.0
    %1224 = vmatpush1.msra.mxu0 %v100
    %1225 = vmatprep.subr.mxu0 0.0
    %1226 = vmatpush1.msra.mxu0 %v101
    %1227 = vmatprep.subr.mxu0 0.0
    %1228 = vmatpush1.msra.mxu0 %v102
    %1229 = vmatprep.subr.mxu0 0.0
    %1230 = vmatpush1.msra.mxu0 %v103
    %1231 = vmatprep.subr.mxu0 0.0
    %1232 = vmatpush1.msra.mxu0 %v104
    %1233 = vmatprep.subr.mxu0 0.0
    %1234 = vmatpush1.msra.mxu0 %v105
    %1235 = vmatprep.subr.mxu0 0.0
    %1236 = vmatpush1.msra.mxu0 0.0
    %1237 = vmatprep.subr.mxu0 0.0
    %1238 = vmatpush1.msra.mxu0 0.0
    %1239 = vmatprep.subr.mxu0 0.0
    %1240 = vmatpush1.msra.mxu0 0.0
    %1241 = vmatprep.subr.mxu0 0.0
    %1242 = vmatpush1.msra.mxu0 0.0
    %1243 = vmatprep.subr.mxu0 0.0
    %1244 = vmatpush1.msra.mxu0 0.0
    %1245 = vmatprep.subr.mxu0 0.0
    %1246 = vmatpush1.msra.mxu0 0.0
    %1247 = vmatprep.subr.mxu0 0.0
    %1248 = vmatpush1.msra.mxu0 0.0
    %1249 = vmatprep.subr.mxu0 0.0
    %1250 = vmatpush1.msra.mxu0 0.0
    %1251 = vmatprep.subr.mxu0 0.0
    %1252 = vmatpush1.msra.mxu0 0.0
    %1253 = vmatprep.subr.mxu0 0.0
    %1254 = vmatpush1.msra.mxu0 0.0
    %1255 = vmatprep.subr.mxu0 0.0
    %1256 = vmatpush1.msra.mxu0 0.0
    %1257 = vmatprep.subr.mxu0 0.0
    %1258 = vmatpush1.msra.mxu0 0.0
    %1259 = vmatprep.subr.mxu0 0.0
    %1260 = vmatpush1.msra.mxu0 0.0
    %1261 = vmatprep.subr.mxu0 0.0
    %1262 = vmatpush1.msra.mxu0 0.0
    %1263 = vmatprep.subr.mxu0 0.0
    %1264 = vmatpush1.msra.mxu0 0.0
    %1265 = vmatprep.subr.mxu0 0.0
    %1266 = vmatpush1.msra.mxu0 0.0
    %1267 = vmatprep.mubr.f32.mxu0 0.0
    %1268 = vmatmul.mubr.f32.gmra.mrb[0].mxu0 %v1202
    %v1269 = vpop.f32.mrb[0].mxu0
    %v1270 = vadd.f32 0.0, %v1269
    %v1271 = vpop.f32.mrb[0].mxu0
    %1272 = vdwg.mxu0
    %v1273 = vmax.f32 %v1270, 0.0
    %1274 = vmatprep.subr.mxu0 %v107
    %1275 = vmatpush1.msra.mxu0 %v106
    %1276 = vmatprep.subr.mxu0 %v110
    %1277 = vmatpush1.msra.mxu0 %v109
    %1278 = vmatprep.subr.mxu0 %v113
    %1279 = vmatpush1.msra.mxu0 %v112
    %1280 = vmatprep.subr.mxu0 %v116
    %1281 = vmatpush1.msra.mxu0 %v115
    %1282 = vmatprep.subr.mxu0 %v119
    %1283 = vmatpush1.msra.mxu0 %v118
    %1284 = vmatprep.subr.mxu0 %v122
    %1285 = vmatpush1.msra.mxu0 %v121
    %1286 = vmatprep.subr.mxu0 %v125
    %1287 = vmatpush1.msra.mxu0 %v124
    %1288 = vmatprep.subr.mxu0 %v128
    %1289 = vmatpush1.msra.mxu0 %v127
    %1290 = vmatprep.subr.mxu0 %v131
    %1291 = vmatpush1.msra.mxu0 %v130
    %1292 = vmatprep.subr.mxu0 %v134
    %1293 = vmatpush1.msra.mxu0 %v133
    %1294 = vmatprep.subr.mxu0 %v137
    %1295 = vmatpush1.msra.mxu0 %v136
    %1296 = vmatprep.subr.mxu0 %v140
    %1297 = vmatpush1.msra.mxu0 %v139
    %1298 = vmatprep.subr.mxu0 %v143
    %1299 = vmatpush1.msra.mxu0 %v142
    %1300 = vmatprep.subr.mxu0 %v146
    %1301 = vmatpush1.msra.mxu0 %v145
    %1302 = vmatprep.subr.mxu0 %v149
    %1303 = vmatpush1.msra.mxu0 %v148
    %1304 = vmatprep.subr.mxu0 %v152
    %1305 = vmatpush1.msra.mxu0 %v151
    %1306 = vmatprep.subr.mxu0 0.0
    %1307 = vmatpush1.msra.mxu0 0.0
    %1308 = vmatprep.subr.mxu0 0.0
    %1309 = vmatpush1.msra.mxu0 0.0
    %1310 = vmatprep.subr.mxu0 0.0
    %1311 = vmatpush1.msra.mxu0 0.0
    %1312 = vmatprep.subr.mxu0 0.0
    %1313 = vmatpush1.msra.mxu0 0.0
    %1314 = vmatprep.subr.mxu0 0.0
    %1315 = vmatpush1.msra.mxu0 0.0
    %1316 = vmatprep.subr.mxu0 0.0
    %1317 = vmatpush1.msra.mxu0 0.0
    %1318 = vmatprep.subr.mxu0 0.0
    %1319 = vmatpush1.msra.mxu0 0.0
    %1320 = vmatprep.subr.mxu0 0.0
    %1321 = vmatpush1.msra.mxu0 0.0
    %1322 = vmatprep.subr.mxu0 0.0
    %1323 = vmatpush1.msra.mxu0 0.0
    %1324 = vmatprep.subr.mxu0 0.0
    %1325 = vmatpush1.msra.mxu0 0.0
    %1326 = vmatprep.subr.mxu0 0.0
    %1327 = vmatpush1.msra.mxu0 0.0
    %1328 = vmatprep.subr.mxu0 0.0
    %1329 = vmatpush1.msra.mxu0 0.0
    %1330 = vmatprep.subr.mxu0 0.0
    %1331 = vmatpush1.msra.mxu0 0.0
    %1332 = vmatprep.subr.mxu0 0.0
    %1333 = vmatpush1.msra.mxu0 0.0
    %1334 = vmatprep.subr.mxu0 0.0
    %1335 = vmatpush1.msra.mxu0 0.0
    %1336 = vmatprep.subr.mxu0 0.0
    %1337 = vmatpush1.msra.mxu0 0.0
    %1338 = vmatprep.mubr.f32.mxu0 0.0
    %1339 = vmatmul.mubr.f32.gmra.mrb[0].mxu0 %v1273
    %v1340 = vpop.f32.mrb[0].mxu0
    %v1341 = vadd.f32 %v299, %v1340
    %v1342 = vpop.f32.mrb[0].mxu0
    %v1343 = vadd.f32 %v303, %v1342
    %1344 = vdwg.mxu0
    %1345 = vmatprep.subr.mxu0 0.0
    %1346 = vmatpush1.msra.mxu0 %v108
    %1347 = vmatprep.subr.mxu0 0.0
    %1348 = vmatpush1.msra.mxu0 %v111
    %1349 = vmatprep.subr.mxu0 0.0
    %1350 = vmatpush1.msra.mxu0 %v114
    %1351 = vmatprep.subr.mxu0 0.0
    %1352 = vmatpush1.msra.mxu0 %v117
    %1353 = vmatprep.subr.mxu0 0.0
    %1354 = vmatpush1.msra.mxu0 %v120
    %1355 = vmatprep.subr.mxu0 0.0
    %1356 = vmatpush1.msra.mxu0 %v123
    %1357 = vmatprep.subr.mxu0 0.0
    %1358 = vmatpush1.msra.mxu0 %v126
    %1359 = vmatprep.subr.mxu0 0.0
    %1360 = vmatpush1.msra.mxu0 %v129
    %1361 = vmatprep.subr.mxu0 0.0
    %1362 = vmatpush1.msra.mxu0 %v132
    %1363 = vmatprep.subr.mxu0 0.0
    %1364 = vmatpush1.msra.mxu0 %v135
    %1365 = vmatprep.subr.mxu0 0.0
    %1366 = vmatpush1.msra.mxu0 %v138
    %1367 = vmatprep.subr.mxu0 0.0
    %1368 = vmatpush1.msra.mxu0 %v141
    %1369 = vmatprep.subr.mxu0 0.0
    %1370 = vmatpush1.msra.mxu0 %v144
    %1371 = vmatprep.subr.mxu0 0.0
    %1372 = vmatpush1.msra.mxu0 %v147
    %1373 = vmatprep.subr.mxu0 0.0
    %1374 = vmatpush1.msra.mxu0 %v150
    %1375 = vmatprep.subr.mxu0 0.0
    %1376 = vmatpush1.msra.mxu0 %v153
    %1377 = vmatprep.subr.mxu0 0.0
    %1378 = vmatpush1.msra.mxu0 0.0
    %1379 = vmatprep.subr.mxu0 0.0
    %1380 = vmatpush1.msra.mxu0 0.0
    %1381 = vmatprep.subr.mxu0 0.0
    %1382 = vmatpush1.msra.mxu0 0.0
    %1383 = vmatprep.subr.mxu0 0.0
    %1384 = vmatpush1.msra.mxu0 0.0
    %1385 = vmatprep.subr.mxu0 0.0
    %1386 = vmatpush1.msra.mxu0 0.0
    %1387 = vmatprep.subr.mxu0 0.0
    %1388 = vmatpush1.msra.mxu0 0.0
    %1389 = vmatprep.subr.mxu0 0.0
    %1390 = vmatpush1.msra.mxu0 0.0
    %1391 = vmatprep.subr.mxu0 0.0
    %1392 = vmatpush1.msra.mxu0 0.0
    %1393 = vmatprep.subr.mxu0 0.0
    %1394 = vmatpush1.msra.mxu0 0.0
    %1395 = vmatprep.subr.mxu0 0.0
    %1396 = vmatpush1.msra.mxu0 0.0
    %1397 = vmatprep.subr.mxu0 0.0
    %1398 = vmatpush1.msra.mxu0 0.0
    %1399 = vmatprep.subr.mxu0 0.0
    %1400 = vmatpush1.msra.mxu0 0.0
    %1401 = vmatprep.subr.mxu0 0.0
    %1402 = vmatpush1.msra.mxu0 0.0
    %1403 = vmatprep.subr.mxu0 0.0
    %1404 = vmatpush1.msra.mxu0 0.0
    %1405 = vmatprep.subr.mxu0 0.0
    %1406 = vmatpush1.msra.mxu0 0.0
    %1407 = vmatprep.subr.mxu0 0.0
    %1408 = vmatpush1.msra.mxu0 0.0
    %1409 = vmatprep.mubr.f32.mxu0 0.0
    %1410 = vmatmul.mubr.f32.gmra.mrb[0].mxu0 %v1273
    %v1411 = vpop.f32.mrb[0].mxu0
    %v1412 = vadd.f32 %v307, %v1411
    %v1413 = vpop.f32.mrb[0].mxu0
    %1414 = vdwg.mxu0
    %1415 = vmatprep.subr.mxu0 %v155
    %1416 = vmatpush1.msra.mxu0 %v154
    %1417 = vmatprep.subr.mxu0 %v158
    %1418 = vmatpush1.msra.mxu0 %v157
    %1419 = vmatprep.subr.mxu0 %v161
    %1420 = vmatpush1.msra.mxu0 %v160
    %1421 = vmatprep.subr.mxu0 %v164
    %1422 = vmatpush1.msra.mxu0 %v163
    %1423 = vmatprep.subr.mxu0 %v167
    %1424 = vmatpush1.msra.mxu0 %v166
    %1425 = vmatprep.subr.mxu0 %v170
    %1426 = vmatpush1.msra.mxu0 %v169
    %1427 = vmatprep.subr.mxu0 %v173
    %1428 = vmatpush1.msra.mxu0 %v172
    %1429 = vmatprep.subr.mxu0 %v176
    %1430 = vmatpush1.msra.mxu0 %v175
    %1431 = vmatprep.subr.mxu0 %v179
    %1432 = vmatpush1.msra.mxu0 %v178
    %1433 = vmatprep.subr.mxu0 %v182
    %1434 = vmatpush1.msra.mxu0 %v181
    %1435 = vmatprep.subr.mxu0 %v185
    %1436 = vmatpush1.msra.mxu0 %v184
    %1437 = vmatprep.subr.mxu0 %v188
    %1438 = vmatpush1.msra.mxu0 %v187
    %1439 = vmatprep.subr.mxu0 %v191
    %1440 = vmatpush1.msra.mxu0 %v190
    %1441 = vmatprep.subr.mxu0 %v194
    %1442 = vmatpush1.msra.mxu0 %v193
    %1443 = vmatprep.subr.mxu0 %v197
    %1444 = vmatpush1.msra.mxu0 %v196
    %1445 = vmatprep.subr.mxu0 %v200
    %1446 = vmatpush1.msra.mxu0 %v199
    %1447 = vmatprep.subr.mxu0 0.0
    %1448 = vmatpush1.msra.mxu0 0.0
    %1449 = vmatprep.subr.mxu0 0.0
    %1450 = vmatpush1.msra.mxu0 0.0
    %1451 = vmatprep.subr.mxu0 0.0
    %1452 = vmatpush1.msra.mxu0 0.0
    %1453 = vmatprep.subr.mxu0 0.0
    %1454 = vmatpush1.msra.mxu0 0.0
    %1455 = vmatprep.subr.mxu0 0.0
    %1456 = vmatpush1.msra.mxu0 0.0
    %1457 = vmatprep.subr.mxu0 0.0
    %1458 = vmatpush1.msra.mxu0 0.0
    %1459 = vmatprep.subr.mxu0 0.0
    %1460 = vmatpush1.msra.mxu0 0.0
    %1461 = vmatprep.subr.mxu0 0.0
    %1462 = vmatpush1.msra.mxu0 0.0
    %1463 = vmatprep.subr.mxu0 0.0
    %1464 = vmatpush1.msra.mxu0 0.0
    %1465 = vmatprep.subr.mxu0 0.0
    %1466 = vmatpush1.msra.mxu0 0.0
    %1467 = vmatprep.subr.mxu0 0.0
    %1468 = vmatpush1.msra.mxu0 0.0
    %1469 = vmatprep.subr.mxu0 0.0
    %1470 = vmatpush1.msra.mxu0 0.0
    %1471 = vmatprep.subr.mxu0 0.0
    %1472 = vmatpush1.msra.mxu0 0.0
    %1473 = vmatprep.subr.mxu0 0.0
    %1474 = vmatpush1.msra.mxu0 0.0
    %1475 = vmatprep.subr.mxu0 0.0
    %1476 = vmatpush1.msra.mxu0 0.0
    %1477 = vmatprep.subr.mxu0 0.0
    %1478 = vmatpush1.msra.mxu0 0.0
    %1479 = vmatprep.mubr.f32.mxu0 0.0
    %1480 = vmatmul.mubr.f32.gmra.mrb[0].mxu0 %v1101
    %v1481 = vpop.f32.mrb[0].mxu0
    %v1482 = vadd.f32 0.0, %v1481
    %v1483 = vpop.f32.mrb[0].mxu0
    %v1484 = vadd.f32 0.0, %v1483
    %1485 = vdwg.mxu0
    %1486 = vmatprep.subr.mxu0 0.0
    %1487 = vmatpush1.msra.mxu0 %v156
    %1488 = vmatprep.subr.mxu0 0.0
    %1489 = vmatpush1.msra.mxu0 %v159
    %1490 = vmatprep.subr.mxu0 0.0
    %1491 = vmatpush1.msra.mxu0 %v162
    %1492 = vmatprep.subr.mxu0 0.0
    %1493 = vmatpush1.msra.mxu0 %v165
    %1494 = vmatprep.subr.mxu0 0.0
    %1495 = vmatpush1.msra.mxu0 %v168
    %1496 = vmatprep.subr.mxu0 0.0
    %1497 = vmatpush1.msra.mxu0 %v171
    %1498 = vmatprep.subr.mxu0 0.0
    %1499 = vmatpush1.msra.mxu0 %v174
    %1500 = vmatprep.subr.mxu0 0.0
    %1501 = vmatpush1.msra.mxu0 %v177
    %1502 = vmatprep.subr.mxu0 0.0
    %1503 = vmatpush1.msra.mxu0 %v180
    %1504 = vmatprep.subr.mxu0 0.0
    %1505 = vmatpush1.msra.mxu0 %v183
    %1506 = vmatprep.subr.mxu0 0.0
    %1507 = vmatpush1.msra.mxu0 %v186
    %1508 = vmatprep.subr.mxu0 0.0
    %1509 = vmatpush1.msra.mxu0 %v189
    %1510 = vmatprep.subr.mxu0 0.0
    %1511 = vmatpush1.msra.mxu0 %v192
    %1512 = vmatprep.subr.mxu0 0.0
    %1513 = vmatpush1.msra.mxu0 %v195
    %1514 = vmatprep.subr.mxu0 0.0
    %1515 = vmatpush1.msra.mxu0 %v198
    %1516 = vmatprep.subr.mxu0 0.0
    %1517 = vmatpush1.msra.mxu0 %v201
    %1518 = vmatprep.subr.mxu0 0.0
    %1519 = vmatpush1.msra.mxu0 0.0
    %1520 = vmatprep.subr.mxu0 0.0
    %1521 = vmatpush1.msra.mxu0 0.0
    %1522 = vmatprep.subr.mxu0 0.0
    %1523 = vmatpush1.msra.mxu0 0.0
    %1524 = vmatprep.subr.mxu0 0.0
    %1525 = vmatpush1.msra.mxu0 0.0
    %1526 = vmatprep.subr.mxu0 0.0
    %1527 = vmatpush1.msra.mxu0 0.0
    %1528 = vmatprep.subr.mxu0 0.0
    %1529 = vmatpush1.msra.mxu0 0.0
    %1530 = vmatprep.subr.mxu0 0.0
    %1531 = vmatpush1.msra.mxu0 0.0
    %1532 = vmatprep.subr.mxu0 0.0
    %1533 = vmatpush1.msra.mxu0 0.0
    %1534 = vmatprep.subr.mxu0 0.0
    %1535 = vmatpush1.msra.mxu0 0.0
    %1536 = vmatprep.subr.mxu0 0.0
    %1537 = vmatpush1.msra.mxu0 0.0
    %1538 = vmatprep.subr.mxu0 0.0
    %1539 = vmatpush1.msra.mxu0 0.0
    %1540 = vmatprep.subr.mxu0 0.0
    %1541 = vmatpush1.msra.mxu0 0.0
    %1542 = vmatprep.subr.mxu0 0.0
    %1543 = vmatpush1.msra.mxu0 0.0
    %1544 = vmatprep.subr.mxu0 0.0
    %1545 = vmatpush1.msra.mxu0 0.0
    %1546 = vmatprep.subr.mxu0 0.0
    %1547 = vmatpush1.msra.mxu0 0.0
    %1548 = vmatprep.subr.mxu0 0.0
    %1549 = vmatpush1.msra.mxu0 0.0
    %1550 = vmatprep.mubr.f32.mxu0 0.0
    %1551 = vmatmul.mubr.f32.gmra.mrb[0].mxu0 %v1101
    %v1552 = vpop.f32.mrb[0].mxu0
    %v1553 = vadd.f32 0.0, %v1552
    %v1554 = vpop.f32.mrb[0].mxu0
    %1555 = vdwg.mxu0
    %v1556 = vadd.f32 %v1341, %v1482
    %v1557 = vxor.u32 %v1556, 2147483648
    %v1558 = vmul.f32 %v1557, 1.442695
    %v1559 = vpow.pop %v1558
    %v1560 = vadd.f32 %v1559, 1.0
    %v1561 = vrcp.pop %v1560
    %v1562 = vmul.f32 1.0, %v1561
    %v1563 = vadd.f32 %v1343, %v1484
    %v1564 = vxor.u32 %v1563, 2147483648
    %v1565 = vmul.f32 %v1564, 1.442695
    %v1566 = vpow.pop %v1565
    %v1567 = vadd.f32 %v1566, 1.0
    %v1568 = vrcp.pop %v1567
    %v1569 = vmul.f32 1.0, %v1568
    %v1570 = vadd.f32 %v1553, %v611
    %v1571 = vmul.f32 %v1562, %v1570
    %v1572 = vadd.f32 %v1412, %v1571
    %v1573 = vtanh.pop %v1572
    %v1574 = vsub.f32 1.0, %v1569
    %v1575 = vmul.f32 %v1574, %v1573
    %v1576 = vmul.f32 %v1569, %v1101
    %v1577 = vadd.f32 %v1575, %v1576
    %1578 = vmatprep.subr.mxu0 0.0
    %1579 = vmatpush1.msra.mxu0 %v204
    %1580 = vmatprep.subr.mxu0 0.0
    %1581 = vmatpush1.msra.mxu0 %v205
    %1582 = vmatprep.subr.mxu0 0.0
    %1583 = vmatpush1.msra.mxu0 %v206
    %1584 = vmatprep.subr.mxu0 0.0
    %1585 = vmatpush1.msra.mxu0 %v207
    %1586 = vmatprep.subr.mxu0 0.0
    %1587 = vmatpush1.msra.mxu0 %v208
    %1588 = vmatprep.subr.mxu0 0.0
    %1589 = vmatpush1.msra.mxu0 %v209
    %1590 = vmatprep.subr.mxu0 0.0
    %1591 = vmatpush1.msra.mxu0 %v210
    %1592 = vmatprep.subr.mxu0 0.0
    %1593 = vmatpush1.msra.mxu0 %v211
    %1594 = vmatprep.subr.mxu0 0.0
    %1595 = vmatpush1.msra.mxu0 %v212
    %1596 = vmatprep.subr.mxu0 0.0
    %1597 = vmatpush1.msra.mxu0 %v213
    %1598 = vmatprep.subr.mxu0 0.0
    %1599 = vmatpush1.msra.mxu0 %v214
    %1600 = vmatprep.subr.mxu0 0.0
    %1601 = vmatpush1.msra.mxu0 %v215
    %1602 = vmatprep.subr.mxu0 0.0
    %1603 = vmatpush1.msra.mxu0 %v216
    %1604 = vmatprep.subr.mxu0 0.0
    %1605 = vmatpush1.msra.mxu0 %v217
    %1606 = vmatprep.subr.mxu0 0.0
    %1607 = vmatpush1.msra.mxu0 %v218
    %1608 = vmatprep.subr.mxu0 0.0
    %1609 = vmatpush1.msra.mxu0 %v219
    %1610 = vmatprep.subr.mxu0 0.0
    %1611 = vmatpush1.msra.mxu0 0.0
    %1612 = vmatprep.subr.mxu0 0.0
    %1613 = vmatpush1.msra.mxu0 0.0
    %1614 = vmatprep.subr.mxu0 0.0
    %1615 = vmatpush1.msra.mxu0 0.0
    %1616 = vmatprep.subr.mxu0 0.0
    %1617 = vmatpush1.msra.mxu0 0.0
    %1618 = vmatprep.subr.mxu0 0.0
    %1619 = vmatpush1.msra.mxu0 0.0
    %1620 = vmatprep.subr.mxu0 0.0
    %1621 = vmatpush1.msra.mxu0 0.0
    %1622 = vmatprep.subr.mxu0 0.0
    %1623 = vmatpush1.msra.mxu0 0.0
    %1624 = vmatprep.subr.mxu0 0.0
    %1625 = vmatpush1.msra.mxu0 0.0
    %1626 = vmatprep.subr.mxu0 0.0
    %1627 = vmatpush1.msra.mxu0 0.0
    %1628 = vmatprep.subr.mxu0 0.0
    %1629 = vmatpush1.msra.mxu0 0.0
    %1630 = vmatprep.subr.mxu0 0.0
    %1631 = vmatpush1.msra.mxu0 0.0
    %1632 = vmatprep.subr.mxu0 0.0
    %1633 = vmatpush1.msra.mxu0 0.0
    %1634 = vmatprep.subr.mxu0 0.0
    %1635 = vmatpush1.msra.mxu0 0.0
    %1636 = vmatprep.subr.mxu0 0.0
    %1637 = vmatpush1.msra.mxu0 0.0
    %1638 = vmatprep.subr.mxu0 0.0
    %1639 = vmatpush1.msra.mxu0 0.0
    %1640 = vmatprep.subr.mxu0 0.0
    %1641 = vmatpush1.msra.mxu0 0.0
    %1642 = vmatprep.mubr.f32.mxu0 0.0
    %1643 = vmatmul.mubr.f32.gmra.mrb[0].mxu0 %v1577
    %v1644 = vpop.f32.mrb[0].mxu0
    %v1645 = vadd.f32 %v625, %v1644
    %v1646 = vpop.f32.mrb[0].mxu0
    %1647 = vdwg.mxu0
    %1648 = vmax.xlane.f32.xlu0 %v1645
    %v1649 = vpop.xlane.xlu0 %1648
    %v1650 = vsub.f32 %v1645, %v1649
    %v1651 = vmul.f32 %v1650, 1.442695
    %v1652 = vpow.pop %v1651
    %1653 = vadd.xlane.f32.xlu0 %v1652
    %v1654 = vpop.xlane.xlu0 %1653
    %v1655 = vlog2.pop %v1654
    %v1656 = vmul.f32 %v1655, 0.6931472
    %v1657 = vadd.f32 %v1656, %v1649
    %v1658 = vsub.f32 %v1645, %v1657
    %s1659 = scalar_lea.vmem [#allocation10], 16
    %1660 = vst [vmem:[%s1659] sm:$0xff] %v1658
    %vm1661 = vcmp.eq.f32.partialorder %v1645, %v1649
    %v1662 = vsel %vm1661, %v89, 128
    %v1663 = vand.u32 %v1662, 65535
    %v1664 = vshra.s32 %v1662, 16
    %v1665 = vcvt.s32.f32 %v1663
    %v1666 = vcvt.s32.f32 %v1664
    %1667 = vmin.xlane.f32.xlu0 %v1666
    %v1668 = vpop.xlane.xlu0 %1667
    %vm1669 = vcmp.eq.f32.partialorder %v1666, %v1668
    %v1670 = vsel %vm1669, %v1665, inf
    %1671 = vmin.xlane.f32.xlu0 %v1670
    %v1672 = vpop.xlane.xlu0 %1671
    %v1673 = vcvt.f32.s32 %v1672
    %v1674 = vcvt.f32.s32 %v1668
    %v1675 = vshll.u32 %v1674, 16
    %v1676 = vadd.s32 %v1675, %v1673
    %vm1677 = vcmp.eq.s32.totalorder %v89, %v1676
    %v1678 = vsel %vm1677, 1.0, 0.0
    %1679 = vmatprep.subr.mxu0 0.0
    %1680 = vmatpush1.msra.mxu0 %v90
    %1681 = vmatprep.subr.mxu0 0.0
    %1682 = vmatpush1.msra.mxu0 %v91
    %1683 = vmatprep.subr.mxu0 0.0
    %1684 = vmatpush1.msra.mxu0 %v92
    %1685 = vmatprep.subr.mxu0 0.0
    %1686 = vmatpush1.msra.mxu0 %v93
    %1687 = vmatprep.subr.mxu0 0.0
    %1688 = vmatpush1.msra.mxu0 %v94
    %1689 = vmatprep.subr.mxu0 0.0
    %1690 = vmatpush1.msra.mxu0 %v95
    %1691 = vmatprep.subr.mxu0 0.0
    %1692 = vmatpush1.msra.mxu0 %v96
    %1693 = vmatprep.subr.mxu0 0.0
    %1694 = vmatpush1.msra.mxu0 %v97
    %1695 = vmatprep.subr.mxu0 0.0
    %1696 = vmatpush1.msra.mxu0 %v98
    %1697 = vmatprep.subr.mxu0 0.0
    %1698 = vmatpush1.msra.mxu0 %v99
    %1699 = vmatprep.subr.mxu0 0.0
    %1700 = vmatpush1.msra.mxu0 %v100
    %1701 = vmatprep.subr.mxu0 0.0
    %1702 = vmatpush1.msra.mxu0 %v101
    %1703 = vmatprep.subr.mxu0 0.0
    %1704 = vmatpush1.msra.mxu0 %v102
    %1705 = vmatprep.subr.mxu0 0.0
    %1706 = vmatpush1.msra.mxu0 %v103
    %1707 = vmatprep.subr.mxu0 0.0
    %1708 = vmatpush1.msra.mxu0 %v104
    %1709 = vmatprep.subr.mxu0 0.0
    %1710 = vmatpush1.msra.mxu0 %v105
    %1711 = vmatprep.subr.mxu0 0.0
    %1712 = vmatpush1.msra.mxu0 0.0
    %1713 = vmatprep.subr.mxu0 0.0
    %1714 = vmatpush1.msra.mxu0 0.0
    %1715 = vmatprep.subr.mxu0 0.0
    %1716 = vmatpush1.msra.mxu0 0.0
    %1717 = vmatprep.subr.mxu0 0.0
    %1718 = vmatpush1.msra.mxu0 0.0
    %1719 = vmatprep.subr.mxu0 0.0
    %1720 = vmatpush1.msra.mxu0 0.0
    %1721 = vmatprep.subr.mxu0 0.0
    %1722 = vmatpush1.msra.mxu0 0.0
    %1723 = vmatprep.subr.mxu0 0.0
    %1724 = vmatpush1.msra.mxu0 0.0
    %1725 = vmatprep.subr.mxu0 0.0
    %1726 = vmatpush1.msra.mxu0 0.0
    %1727 = vmatprep.subr.mxu0 0.0
    %1728 = vmatpush1.msra.mxu0 0.0
    %1729 = vmatprep.subr.mxu0 0.0
    %1730 = vmatpush1.msra.mxu0 0.0
    %1731 = vmatprep.subr.mxu0 0.0
    %1732 = vmatpush1.msra.mxu0 0.0
    %1733 = vmatprep.subr.mxu0 0.0
    %1734 = vmatpush1.msra.mxu0 0.0
    %1735 = vmatprep.subr.mxu0 0.0
    %1736 = vmatpush1.msra.mxu0 0.0
    %1737 = vmatprep.subr.mxu0 0.0
    %1738 = vmatpush1.msra.mxu0 0.0
    %1739 = vmatprep.subr.mxu0 0.0
    %1740 = vmatpush1.msra.mxu0 0.0
    %1741 = vmatprep.subr.mxu0 0.0
    %1742 = vmatpush1.msra.mxu0 0.0
    %1743 = vmatprep.mubr.f32.mxu0 0.0
    %1744 = vmatmul.mubr.f32.gmra.mrb[0].mxu0 %v1678
    %v1745 = vpop.f32.mrb[0].mxu0
    %v1746 = vadd.f32 0.0, %v1745
    %v1747 = vpop.f32.mrb[0].mxu0
    %1748 = vdwg.mxu0
    %v1749 = vmax.f32 %v1746, 0.0
    %1750 = vmatprep.subr.mxu0 %v107
    %1751 = vmatpush1.msra.mxu0 %v106
    %1752 = vmatprep.subr.mxu0 %v110
    %1753 = vmatpush1.msra.mxu0 %v109
    %1754 = vmatprep.subr.mxu0 %v113
    %1755 = vmatpush1.msra.mxu0 %v112
    %1756 = vmatprep.subr.mxu0 %v116
    %1757 = vmatpush1.msra.mxu0 %v115
    %1758 = vmatprep.subr.mxu0 %v119
    %1759 = vmatpush1.msra.mxu0 %v118
    %1760 = vmatprep.subr.mxu0 %v122
    %1761 = vmatpush1.msra.mxu0 %v121
    %1762 = vmatprep.subr.mxu0 %v125
    %1763 = vmatpush1.msra.mxu0 %v124
    %1764 = vmatprep.subr.mxu0 %v128
    %1765 = vmatpush1.msra.mxu0 %v127
    %1766 = vmatprep.subr.mxu0 %v131
    %1767 = vmatpush1.msra.mxu0 %v130
    %1768 = vmatprep.subr.mxu0 %v134
    %1769 = vmatpush1.msra.mxu0 %v133
    %1770 = vmatprep.subr.mxu0 %v137
    %1771 = vmatpush1.msra.mxu0 %v136
    %1772 = vmatprep.subr.mxu0 %v140
    %1773 = vmatpush1.msra.mxu0 %v139
    %1774 = vmatprep.subr.mxu0 %v143
    %1775 = vmatpush1.msra.mxu0 %v142
    %1776 = vmatprep.subr.mxu0 %v146
    %1777 = vmatpush1.msra.mxu0 %v145
    %1778 = vmatprep.subr.mxu0 %v149
    %1779 = vmatpush1.msra.mxu0 %v148
    %1780 = vmatprep.subr.mxu0 %v152
    %1781 = vmatpush1.msra.mxu0 %v151
    %1782 = vmatprep.subr.mxu0 0.0
    %1783 = vmatpush1.msra.mxu0 0.0
    %1784 = vmatprep.subr.mxu0 0.0
    %1785 = vmatpush1.msra.mxu0 0.0
    %1786 = vmatprep.subr.mxu0 0.0
    %1787 = vmatpush1.msra.mxu0 0.0
    %1788 = vmatprep.subr.mxu0 0.0
    %1789 = vmatpush1.msra.mxu0 0.0
    %1790 = vmatprep.subr.mxu0 0.0
    %1791 = vmatpush1.msra.mxu0 0.0
    %1792 = vmatprep.subr.mxu0 0.0
    %1793 = vmatpush1.msra.mxu0 0.0
    %1794 = vmatprep.subr.mxu0 0.0
    %1795 = vmatpush1.msra.mxu0 0.0
    %1796 = vmatprep.subr.mxu0 0.0
    %1797 = vmatpush1.msra.mxu0 0.0
    %1798 = vmatprep.subr.mxu0 0.0
    %1799 = vmatpush1.msra.mxu0 0.0
    %1800 = vmatprep.subr.mxu0 0.0
    %1801 = vmatpush1.msra.mxu0 0.0
    %1802 = vmatprep.subr.mxu0 0.0
    %1803 = vmatpush1.msra.mxu0 0.0
    %1804 = vmatprep.subr.mxu0 0.0
    %1805 = vmatpush1.msra.mxu0 0.0
    %1806 = vmatprep.subr.mxu0 0.0
    %1807 = vmatpush1.msra.mxu0 0.0
    %1808 = vmatprep.subr.mxu0 0.0
    %1809 = vmatpush1.msra.mxu0 0.0
    %1810 = vmatprep.subr.mxu0 0.0
    %1811 = vmatpush1.msra.mxu0 0.0
    %1812 = vmatprep.subr.mxu0 0.0
    %1813 = vmatpush1.msra.mxu0 0.0
    %1814 = vmatprep.mubr.f32.mxu0 0.0
    %1815 = vmatmul.mubr.f32.gmra.mrb[0].mxu0 %v1749
    %v1816 = vpop.f32.mrb[0].mxu0
    %v1817 = vadd.f32 %v299, %v1816
    %v1818 = vpop.f32.mrb[0].mxu0
    %v1819 = vadd.f32 %v303, %v1818
    %1820 = vdwg.mxu0
    %1821 = vmatprep.subr.mxu0 0.0
    %1822 = vmatpush1.msra.mxu0 %v108
    %1823 = vmatprep.subr.mxu0 0.0
    %1824 = vmatpush1.msra.mxu0 %v111
    %1825 = vmatprep.subr.mxu0 0.0
    %1826 = vmatpush1.msra.mxu0 %v114
    %1827 = vmatprep.subr.mxu0 0.0
    %1828 = vmatpush1.msra.mxu0 %v117
    %1829 = vmatprep.subr.mxu0 0.0
    %1830 = vmatpush1.msra.mxu0 %v120
    %1831 = vmatprep.subr.mxu0 0.0
    %1832 = vmatpush1.msra.mxu0 %v123
    %1833 = vmatprep.subr.mxu0 0.0
    %1834 = vmatpush1.msra.mxu0 %v126
    %1835 = vmatprep.subr.mxu0 0.0
    %1836 = vmatpush1.msra.mxu0 %v129
    %1837 = vmatprep.subr.mxu0 0.0
    %1838 = vmatpush1.msra.mxu0 %v132
    %1839 = vmatprep.subr.mxu0 0.0
    %1840 = vmatpush1.msra.mxu0 %v135
    %1841 = vmatprep.subr.mxu0 0.0
    %1842 = vmatpush1.msra.mxu0 %v138
    %1843 = vmatprep.subr.mxu0 0.0
    %1844 = vmatpush1.msra.mxu0 %v141
    %1845 = vmatprep.subr.mxu0 0.0
    %1846 = vmatpush1.msra.mxu0 %v144
    %1847 = vmatprep.subr.mxu0 0.0
    %1848 = vmatpush1.msra.mxu0 %v147
    %1849 = vmatprep.subr.mxu0 0.0
    %1850 = vmatpush1.msra.mxu0 %v150
    %1851 = vmatprep.subr.mxu0 0.0
    %1852 = vmatpush1.msra.mxu0 %v153
    %1853 = vmatprep.subr.mxu0 0.0
    %1854 = vmatpush1.msra.mxu0 0.0
    %1855 = vmatprep.subr.mxu0 0.0
    %1856 = vmatpush1.msra.mxu0 0.0
    %1857 = vmatprep.subr.mxu0 0.0
    %1858 = vmatpush1.msra.mxu0 0.0
    %1859 = vmatprep.subr.mxu0 0.0
    %1860 = vmatpush1.msra.mxu0 0.0
    %1861 = vmatprep.subr.mxu0 0.0
    %1862 = vmatpush1.msra.mxu0 0.0
    %1863 = vmatprep.subr.mxu0 0.0
    %1864 = vmatpush1.msra.mxu0 0.0
    %1865 = vmatprep.subr.mxu0 0.0
    %1866 = vmatpush1.msra.mxu0 0.0
    %1867 = vmatprep.subr.mxu0 0.0
    %1868 = vmatpush1.msra.mxu0 0.0
    %1869 = vmatprep.subr.mxu0 0.0
    %1870 = vmatpush1.msra.mxu0 0.0
    %1871 = vmatprep.subr.mxu0 0.0
    %1872 = vmatpush1.msra.mxu0 0.0
    %1873 = vmatprep.subr.mxu0 0.0
    %1874 = vmatpush1.msra.mxu0 0.0
    %1875 = vmatprep.subr.mxu0 0.0
    %1876 = vmatpush1.msra.mxu0 0.0
    %1877 = vmatprep.subr.mxu0 0.0
    %1878 = vmatpush1.msra.mxu0 0.0
    %1879 = vmatprep.subr.mxu0 0.0
    %1880 = vmatpush1.msra.mxu0 0.0
    %1881 = vmatprep.subr.mxu0 0.0
    %1882 = vmatpush1.msra.mxu0 0.0
    %1883 = vmatprep.subr.mxu0 0.0
    %1884 = vmatpush1.msra.mxu0 0.0
    %1885 = vmatprep.mubr.f32.mxu0 0.0
    %1886 = vmatmul.mubr.f32.gmra.mrb[0].mxu0 %v1749
    %v1887 = vpop.f32.mrb[0].mxu0
    %v1888 = vadd.f32 %v307, %v1887
    %v1889 = vpop.f32.mrb[0].mxu0
    %1890 = vdwg.mxu0
    %1891 = vmatprep.subr.mxu0 %v155
    %1892 = vmatpush1.msra.mxu0 %v154
    %1893 = vmatprep.subr.mxu0 %v158
    %1894 = vmatpush1.msra.mxu0 %v157
    %1895 = vmatprep.subr.mxu0 %v161
    %1896 = vmatpush1.msra.mxu0 %v160
    %1897 = vmatprep.subr.mxu0 %v164
    %1898 = vmatpush1.msra.mxu0 %v163
    %1899 = vmatprep.subr.mxu0 %v167
    %1900 = vmatpush1.msra.mxu0 %v166
    %1901 = vmatprep.subr.mxu0 %v170
    %1902 = vmatpush1.msra.mxu0 %v169
    %1903 = vmatprep.subr.mxu0 %v173
    %1904 = vmatpush1.msra.mxu0 %v172
    %1905 = vmatprep.subr.mxu0 %v176
    %1906 = vmatpush1.msra.mxu0 %v175
    %1907 = vmatprep.subr.mxu0 %v179
    %1908 = vmatpush1.msra.mxu0 %v178
    %1909 = vmatprep.subr.mxu0 %v182
    %1910 = vmatpush1.msra.mxu0 %v181
    %1911 = vmatprep.subr.mxu0 %v185
    %1912 = vmatpush1.msra.mxu0 %v184
    %1913 = vmatprep.subr.mxu0 %v188
    %1914 = vmatpush1.msra.mxu0 %v187
    %1915 = vmatprep.subr.mxu0 %v191
    %1916 = vmatpush1.msra.mxu0 %v190
    %1917 = vmatprep.subr.mxu0 %v194
    %1918 = vmatpush1.msra.mxu0 %v193
    %1919 = vmatprep.subr.mxu0 %v197
    %1920 = vmatpush1.msra.mxu0 %v196
    %1921 = vmatprep.subr.mxu0 %v200
    %1922 = vmatpush1.msra.mxu0 %v199
    %1923 = vmatprep.subr.mxu0 0.0
    %1924 = vmatpush1.msra.mxu0 0.0
    %1925 = vmatprep.subr.mxu0 0.0
    %1926 = vmatpush1.msra.mxu0 0.0
    %1927 = vmatprep.subr.mxu0 0.0
    %1928 = vmatpush1.msra.mxu0 0.0
    %1929 = vmatprep.subr.mxu0 0.0
    %1930 = vmatpush1.msra.mxu0 0.0
    %1931 = vmatprep.subr.mxu0 0.0
    %1932 = vmatpush1.msra.mxu0 0.0
    %1933 = vmatprep.subr.mxu0 0.0
    %1934 = vmatpush1.msra.mxu0 0.0
    %1935 = vmatprep.subr.mxu0 0.0
    %1936 = vmatpush1.msra.mxu0 0.0
    %1937 = vmatprep.subr.mxu0 0.0
    %1938 = vmatpush1.msra.mxu0 0.0
    %1939 = vmatprep.subr.mxu0 0.0
    %1940 = vmatpush1.msra.mxu0 0.0
    %1941 = vmatprep.subr.mxu0 0.0
    %1942 = vmatpush1.msra.mxu0 0.0
    %1943 = vmatprep.subr.mxu0 0.0
    %1944 = vmatpush1.msra.mxu0 0.0
    %1945 = vmatprep.subr.mxu0 0.0
    %1946 = vmatpush1.msra.mxu0 0.0
    %1947 = vmatprep.subr.mxu0 0.0
    %1948 = vmatpush1.msra.mxu0 0.0
    %1949 = vmatprep.subr.mxu0 0.0
    %1950 = vmatpush1.msra.mxu0 0.0
    %1951 = vmatprep.subr.mxu0 0.0
    %1952 = vmatpush1.msra.mxu0 0.0
    %1953 = vmatprep.subr.mxu0 0.0
    %1954 = vmatpush1.msra.mxu0 0.0
    %1955 = vmatprep.mubr.f32.mxu0 0.0
    %1956 = vmatmul.mubr.f32.gmra.mrb[0].mxu0 %v1577
    %v1957 = vpop.f32.mrb[0].mxu0
    %v1958 = vadd.f32 0.0, %v1957
    %v1959 = vpop.f32.mrb[0].mxu0
    %v1960 = vadd.f32 0.0, %v1959
    %1961 = vdwg.mxu0
    %1962 = vmatprep.subr.mxu0 0.0
    %1963 = vmatpush1.msra.mxu0 %v156
    %1964 = vmatprep.subr.mxu0 0.0
    %1965 = vmatpush1.msra.mxu0 %v159
    %1966 = vmatprep.subr.mxu0 0.0
    %1967 = vmatpush1.msra.mxu0 %v162
    %1968 = vmatprep.subr.mxu0 0.0
    %1969 = vmatpush1.msra.mxu0 %v165
    %1970 = vmatprep.subr.mxu0 0.0
    %1971 = vmatpush1.msra.mxu0 %v168
    %1972 = vmatprep.subr.mxu0 0.0
    %1973 = vmatpush1.msra.mxu0 %v171
    %1974 = vmatprep.subr.mxu0 0.0
    %1975 = vmatpush1.msra.mxu0 %v174
    %1976 = vmatprep.subr.mxu0 0.0
    %1977 = vmatpush1.msra.mxu0 %v177
    %1978 = vmatprep.subr.mxu0 0.0
    %1979 = vmatpush1.msra.mxu0 %v180
    %1980 = vmatprep.subr.mxu0 0.0
    %1981 = vmatpush1.msra.mxu0 %v183
    %1982 = vmatprep.subr.mxu0 0.0
    %1983 = vmatpush1.msra.mxu0 %v186
    %1984 = vmatprep.subr.mxu0 0.0
    %1985 = vmatpush1.msra.mxu0 %v189
    %1986 = vmatprep.subr.mxu0 0.0
    %1987 = vmatpush1.msra.mxu0 %v192
    %1988 = vmatprep.subr.mxu0 0.0
    %1989 = vmatpush1.msra.mxu0 %v195
    %1990 = vmatprep.subr.mxu0 0.0
    %1991 = vmatpush1.msra.mxu0 %v198
    %1992 = vmatprep.subr.mxu0 0.0
    %1993 = vmatpush1.msra.mxu0 %v201
    %1994 = vmatprep.subr.mxu0 0.0
    %1995 = vmatpush1.msra.mxu0 0.0
    %1996 = vmatprep.subr.mxu0 0.0
    %1997 = vmatpush1.msra.mxu0 0.0
    %1998 = vmatprep.subr.mxu0 0.0
    %1999 = vmatpush1.msra.mxu0 0.0
    %2000 = vmatprep.subr.mxu0 0.0
    %2001 = vmatpush1.msra.mxu0 0.0
    %2002 = vmatprep.subr.mxu0 0.0
    %2003 = vmatpush1.msra.mxu0 0.0
    %2004 = vmatprep.subr.mxu0 0.0
    %2005 = vmatpush1.msra.mxu0 0.0
    %2006 = vmatprep.subr.mxu0 0.0
    %2007 = vmatpush1.msra.mxu0 0.0
    %2008 = vmatprep.subr.mxu0 0.0
    %2009 = vmatpush1.msra.mxu0 0.0
    %2010 = vmatprep.subr.mxu0 0.0
    %2011 = vmatpush1.msra.mxu0 0.0
    %2012 = vmatprep.subr.mxu0 0.0
    %2013 = vmatpush1.msra.mxu0 0.0
    %2014 = vmatprep.subr.mxu0 0.0
    %2015 = vmatpush1.msra.mxu0 0.0
    %2016 = vmatprep.subr.mxu0 0.0
    %2017 = vmatpush1.msra.mxu0 0.0
    %2018 = vmatprep.subr.mxu0 0.0
    %2019 = vmatpush1.msra.mxu0 0.0
    %2020 = vmatprep.subr.mxu0 0.0
    %2021 = vmatpush1.msra.mxu0 0.0
    %2022 = vmatprep.subr.mxu0 0.0
    %2023 = vmatpush1.msra.mxu0 0.0
    %2024 = vmatprep.subr.mxu0 0.0
    %2025 = vmatpush1.msra.mxu0 0.0
    %2026 = vmatprep.mubr.f32.mxu0 0.0
    %2027 = vmatmul.mubr.f32.gmra.mrb[0].mxu0 %v1577
    %v2028 = vpop.f32.mrb[0].mxu0
    %v2029 = vadd.f32 0.0, %v2028
    %v2030 = vpop.f32.mrb[0].mxu0
    %2031 = vdwg.mxu0
    %v2032 = vadd.f32 %v1817, %v1958
    %v2033 = vxor.u32 %v2032, 2147483648
    %v2034 = vmul.f32 %v2033, 1.442695
    %v2035 = vpow.pop %v2034
    %v2036 = vadd.f32 %v2035, 1.0
    %v2037 = vrcp.pop %v2036
    %v2038 = vmul.f32 1.0, %v2037
    %v2039 = vadd.f32 %v1819, %v1960
    %v2040 = vxor.u32 %v2039, 2147483648
    %v2041 = vmul.f32 %v2040, 1.442695
    %v2042 = vpow.pop %v2041
    %v2043 = vadd.f32 %v2042, 1.0
    %v2044 = vrcp.pop %v2043
    %v2045 = vmul.f32 1.0, %v2044
    %v2046 = vadd.f32 %v2029, %v611
    %v2047 = vmul.f32 %v2038, %v2046
    %v2048 = vadd.f32 %v1888, %v2047
    %v2049 = vtanh.pop %v2048
    %v2050 = vsub.f32 1.0, %v2045
    %v2051 = vmul.f32 %v2050, %v2049
    %v2052 = vmul.f32 %v2045, %v1577
    %v2053 = vadd.f32 %v2051, %v2052
    %2054 = vmatprep.subr.mxu0 0.0
    %2055 = vmatpush1.msra.mxu0 %v204
    %2056 = vmatprep.subr.mxu0 0.0
    %2057 = vmatpush1.msra.mxu0 %v205
    %2058 = vmatprep.subr.mxu0 0.0
    %2059 = vmatpush1.msra.mxu0 %v206
    %2060 = vmatprep.subr.mxu0 0.0
    %2061 = vmatpush1.msra.mxu0 %v207
    %2062 = vmatprep.subr.mxu0 0.0
    %2063 = vmatpush1.msra.mxu0 %v208
    %2064 = vmatprep.subr.mxu0 0.0
    %2065 = vmatpush1.msra.mxu0 %v209
    %2066 = vmatprep.subr.mxu0 0.0
    %2067 = vmatpush1.msra.mxu0 %v210
    %2068 = vmatprep.subr.mxu0 0.0
    %2069 = vmatpush1.msra.mxu0 %v211
    %2070 = vmatprep.subr.mxu0 0.0
    %2071 = vmatpush1.msra.mxu0 %v212
    %2072 = vmatprep.subr.mxu0 0.0
    %2073 = vmatpush1.msra.mxu0 %v213
    %2074 = vmatprep.subr.mxu0 0.0
    %2075 = vmatpush1.msra.mxu0 %v214
    %2076 = vmatprep.subr.mxu0 0.0
    %2077 = vmatpush1.msra.mxu0 %v215
    %2078 = vmatprep.subr.mxu0 0.0
    %2079 = vmatpush1.msra.mxu0 %v216
    %2080 = vmatprep.subr.mxu0 0.0
    %2081 = vmatpush1.msra.mxu0 %v217
    %2082 = vmatprep.subr.mxu0 0.0
    %2083 = vmatpush1.msra.mxu0 %v218
    %2084 = vmatprep.subr.mxu0 0.0
    %2085 = vmatpush1.msra.mxu0 %v219
    %2086 = vmatprep.subr.mxu0 0.0
    %2087 = vmatpush1.msra.mxu0 0.0
    %2088 = vmatprep.subr.mxu0 0.0
    %2089 = vmatpush1.msra.mxu0 0.0
    %2090 = vmatprep.subr.mxu0 0.0
    %2091 = vmatpush1.msra.mxu0 0.0
    %2092 = vmatprep.subr.mxu0 0.0
    %2093 = vmatpush1.msra.mxu0 0.0
    %2094 = vmatprep.subr.mxu0 0.0
    %2095 = vmatpush1.msra.mxu0 0.0
    %2096 = vmatprep.subr.mxu0 0.0
    %2097 = vmatpush1.msra.mxu0 0.0
    %2098 = vmatprep.subr.mxu0 0.0
    %2099 = vmatpush1.msra.mxu0 0.0
    %2100 = vmatprep.subr.mxu0 0.0
    %2101 = vmatpush1.msra.mxu0 0.0
    %2102 = vmatprep.subr.mxu0 0.0
    %2103 = vmatpush1.msra.mxu0 0.0
    %2104 = vmatprep.subr.mxu0 0.0
    %2105 = vmatpush1.msra.mxu0 0.0
    %2106 = vmatprep.subr.mxu0 0.0
    %2107 = vmatpush1.msra.mxu0 0.0
    %2108 = vmatprep.subr.mxu0 0.0
    %2109 = vmatpush1.msra.mxu0 0.0
    %2110 = vmatprep.subr.mxu0 0.0
    %2111 = vmatpush1.msra.mxu0 0.0
    %2112 = vmatprep.subr.mxu0 0.0
    %2113 = vmatpush1.msra.mxu0 0.0
    %2114 = vmatprep.subr.mxu0 0.0
    %2115 = vmatpush1.msra.mxu0 0.0
    %2116 = vmatprep.subr.mxu0 0.0
    %2117 = vmatpush1.msra.mxu0 0.0
    %2118 = vmatprep.mubr.f32.mxu0 0.0
    %2119 = vmatmul.mubr.f32.gmra.mrb[0].mxu0 %v2053
    %v2120 = vpop.f32.mrb[0].mxu0
    %v2121 = vadd.f32 %v625, %v2120
    %v2122 = vpop.f32.mrb[0].mxu0
    %2123 = vdwg.mxu0
    %2124 = vmax.xlane.f32.xlu0 %v2121
    %v2125 = vpop.xlane.xlu0 %2124
    %v2126 = vsub.f32 %v2121, %v2125
    %v2127 = vmul.f32 %v2126, 1.442695
    %v2128 = vpow.pop %v2127
    %2129 = vadd.xlane.f32.xlu0 %v2128
    %v2130 = vpop.xlane.xlu0 %2129
    %v2131 = vlog2.pop %v2130
    %v2132 = vmul.f32 %v2131, 0.6931472
    %v2133 = vadd.f32 %v2132, %v2125
    %v2134 = vsub.f32 %v2121, %v2133
    %s2135 = scalar_lea.vmem [#allocation10], 24
    %2136 = vst [vmem:[%s2135] sm:$0xff] %v2134
    %vm2137 = vcmp.eq.f32.partialorder %v2121, %v2125
    %v2138 = vsel %vm2137, %v89, 128
    %v2139 = vand.u32 %v2138, 65535
    %v2140 = vshra.s32 %v2138, 16
    %v2141 = vcvt.s32.f32 %v2139
    %v2142 = vcvt.s32.f32 %v2140
    %2143 = vmin.xlane.f32.xlu0 %v2142
    %v2144 = vpop.xlane.xlu0 %2143
    %vm2145 = vcmp.eq.f32.partialorder %v2142, %v2144
    %v2146 = vsel %vm2145, %v2141, inf
    %2147 = vmin.xlane.f32.xlu0 %v2146
    %v2148 = vpop.xlane.xlu0 %2147
    %v2149 = vcvt.f32.s32 %v2148
    %v2150 = vcvt.f32.s32 %v2144
    %v2151 = vshll.u32 %v2150, 16
    %v2152 = vadd.s32 %v2151, %v2149
    %vm2153 = vcmp.eq.s32.totalorder %v89, %v2152
    %v2154 = vsel %vm2153, 1.0, 0.0
    %2155 = vmatprep.subr.mxu0 0.0
    %2156 = vmatpush1.msra.mxu0 %v90
    %2157 = vmatprep.subr.mxu0 0.0
    %2158 = vmatpush1.msra.mxu0 %v91
    %2159 = vmatprep.subr.mxu0 0.0
    %2160 = vmatpush1.msra.mxu0 %v92
    %2161 = vmatprep.subr.mxu0 0.0
    %2162 = vmatpush1.msra.mxu0 %v93
    %2163 = vmatprep.subr.mxu0 0.0
    %2164 = vmatpush1.msra.mxu0 %v94
    %2165 = vmatprep.subr.mxu0 0.0
    %2166 = vmatpush1.msra.mxu0 %v95
    %2167 = vmatprep.subr.mxu0 0.0
    %2168 = vmatpush1.msra.mxu0 %v96
    %2169 = vmatprep.subr.mxu0 0.0
    %2170 = vmatpush1.msra.mxu0 %v97
    %2171 = vmatprep.subr.mxu0 0.0
    %2172 = vmatpush1.msra.mxu0 %v98
    %2173 = vmatprep.subr.mxu0 0.0
    %2174 = vmatpush1.msra.mxu0 %v99
    %2175 = vmatprep.subr.mxu0 0.0
    %2176 = vmatpush1.msra.mxu0 %v100
    %2177 = vmatprep.subr.mxu0 0.0
    %2178 = vmatpush1.msra.mxu0 %v101
    %2179 = vmatprep.subr.mxu0 0.0
    %2180 = vmatpush1.msra.mxu0 %v102
    %2181 = vmatprep.subr.mxu0 0.0
    %2182 = vmatpush1.msra.mxu0 %v103
    %2183 = vmatprep.subr.mxu0 0.0
    %2184 = vmatpush1.msra.mxu0 %v104
    %2185 = vmatprep.subr.mxu0 0.0
    %2186 = vmatpush1.msra.mxu0 %v105
    %2187 = vmatprep.subr.mxu0 0.0
    %2188 = vmatpush1.msra.mxu0 0.0
    %2189 = vmatprep.subr.mxu0 0.0
    %2190 = vmatpush1.msra.mxu0 0.0
    %2191 = vmatprep.subr.mxu0 0.0
    %2192 = vmatpush1.msra.mxu0 0.0
    %2193 = vmatprep.subr.mxu0 0.0
    %2194 = vmatpush1.msra.mxu0 0.0
    %2195 = vmatprep.subr.mxu0 0.0
    %2196 = vmatpush1.msra.mxu0 0.0
    %2197 = vmatprep.subr.mxu0 0.0
    %2198 = vmatpush1.msra.mxu0 0.0
    %2199 = vmatprep.subr.mxu0 0.0
    %2200 = vmatpush1.msra.mxu0 0.0
    %2201 = vmatprep.subr.mxu0 0.0
    %2202 = vmatpush1.msra.mxu0 0.0
    %2203 = vmatprep.subr.mxu0 0.0
    %2204 = vmatpush1.msra.mxu0 0.0
    %2205 = vmatprep.subr.mxu0 0.0
    %2206 = vmatpush1.msra.mxu0 0.0
    %2207 = vmatprep.subr.mxu0 0.0
    %2208 = vmatpush1.msra.mxu0 0.0
    %2209 = vmatprep.subr.mxu0 0.0
    %2210 = vmatpush1.msra.mxu0 0.0
    %2211 = vmatprep.subr.mxu0 0.0
    %2212 = vmatpush1.msra.mxu0 0.0
    %2213 = vmatprep.subr.mxu0 0.0
    %2214 = vmatpush1.msra.mxu0 0.0
    %2215 = vmatprep.subr.mxu0 0.0
    %2216 = vmatpush1.msra.mxu0 0.0
    %2217 = vmatprep.subr.mxu0 0.0
    %2218 = vmatpush1.msra.mxu0 0.0
    %2219 = vmatprep.mubr.f32.mxu0 0.0
    %2220 = vmatmul.mubr.f32.gmra.mrb[0].mxu0 %v2154
    %v2221 = vpop.f32.mrb[0].mxu0
    %v2222 = vadd.f32 0.0, %v2221
    %v2223 = vpop.f32.mrb[0].mxu0
    %2224 = vdwg.mxu0
    %v2225 = vmax.f32 %v2222, 0.0
    %2226 = vmatprep.subr.mxu0 %v107
    %2227 = vmatpush1.msra.mxu0 %v106
    %2228 = vmatprep.subr.mxu0 %v110
    %2229 = vmatpush1.msra.mxu0 %v109
    %2230 = vmatprep.subr.mxu0 %v113
    %2231 = vmatpush1.msra.mxu0 %v112
    %2232 = vmatprep.subr.mxu0 %v116
    %2233 = vmatpush1.msra.mxu0 %v115
    %2234 = vmatprep.subr.mxu0 %v119
    %2235 = vmatpush1.msra.mxu0 %v118
    %2236 = vmatprep.subr.mxu0 %v122
    %2237 = vmatpush1.msra.mxu0 %v121
    %2238 = vmatprep.subr.mxu0 %v125
    %2239 = vmatpush1.msra.mxu0 %v124
    %2240 = vmatprep.subr.mxu0 %v128
    %2241 = vmatpush1.msra.mxu0 %v127
    %2242 = vmatprep.subr.mxu0 %v131
    %2243 = vmatpush1.msra.mxu0 %v130
    %2244 = vmatprep.subr.mxu0 %v134
    %2245 = vmatpush1.msra.mxu0 %v133
    %2246 = vmatprep.subr.mxu0 %v137
    %2247 = vmatpush1.msra.mxu0 %v136
    %2248 = vmatprep.subr.mxu0 %v140
    %2249 = vmatpush1.msra.mxu0 %v139
    %2250 = vmatprep.subr.mxu0 %v143
    %2251 = vmatpush1.msra.mxu0 %v142
    %2252 = vmatprep.subr.mxu0 %v146
    %2253 = vmatpush1.msra.mxu0 %v145
    %2254 = vmatprep.subr.mxu0 %v149
    %2255 = vmatpush1.msra.mxu0 %v148
    %2256 = vmatprep.subr.mxu0 %v152
    %2257 = vmatpush1.msra.mxu0 %v151
    %2258 = vmatprep.subr.mxu0 0.0
    %2259 = vmatpush1.msra.mxu0 0.0
    %2260 = vmatprep.subr.mxu0 0.0
    %2261 = vmatpush1.msra.mxu0 0.0
    %2262 = vmatprep.subr.mxu0 0.0
    %2263 = vmatpush1.msra.mxu0 0.0
    %2264 = vmatprep.subr.mxu0 0.0
    %2265 = vmatpush1.msra.mxu0 0.0
    %2266 = vmatprep.subr.mxu0 0.0
    %2267 = vmatpush1.msra.mxu0 0.0
    %2268 = vmatprep.subr.mxu0 0.0
    %2269 = vmatpush1.msra.mxu0 0.0
    %2270 = vmatprep.subr.mxu0 0.0
    %2271 = vmatpush1.msra.mxu0 0.0
    %2272 = vmatprep.subr.mxu0 0.0
    %2273 = vmatpush1.msra.mxu0 0.0
    %2274 = vmatprep.subr.mxu0 0.0
    %2275 = vmatpush1.msra.mxu0 0.0
    %2276 = vmatprep.subr.mxu0 0.0
    %2277 = vmatpush1.msra.mxu0 0.0
    %2278 = vmatprep.subr.mxu0 0.0
    %2279 = vmatpush1.msra.mxu0 0.0
    %2280 = vmatprep.subr.mxu0 0.0
    %2281 = vmatpush1.msra.mxu0 0.0
    %2282 = vmatprep.subr.mxu0 0.0
    %2283 = vmatpush1.msra.mxu0 0.0
    %2284 = vmatprep.subr.mxu0 0.0
    %2285 = vmatpush1.msra.mxu0 0.0
    %2286 = vmatprep.subr.mxu0 0.0
    %2287 = vmatpush1.msra.mxu0 0.0
    %2288 = vmatprep.subr.mxu0 0.0
    %2289 = vmatpush1.msra.mxu0 0.0
    %2290 = vmatprep.mubr.f32.mxu0 0.0
    %2291 = vmatmul.mubr.f32.gmra.mrb[0].mxu0 %v2225
    %v2292 = vpop.f32.mrb[0].mxu0
    %v2293 = vadd.f32 %v299, %v2292
    %v2294 = vpop.f32.mrb[0].mxu0
    %v2295 = vadd.f32 %v303, %v2294
    %2296 = vdwg.mxu0
    %2297 = vmatprep.subr.mxu0 0.0
    %2298 = vmatpush1.msra.mxu0 %v108
    %2299 = vmatprep.subr.mxu0 0.0
    %2300 = vmatpush1.msra.mxu0 %v111
    %2301 = vmatprep.subr.mxu0 0.0
    %2302 = vmatpush1.msra.mxu0 %v114
    %2303 = vmatprep.subr.mxu0 0.0
    %2304 = vmatpush1.msra.mxu0 %v117
    %2305 = vmatprep.subr.mxu0 0.0
    %2306 = vmatpush1.msra.mxu0 %v120
    %2307 = vmatprep.subr.mxu0 0.0
    %2308 = vmatpush1.msra.mxu0 %v123
    %2309 = vmatprep.subr.mxu0 0.0
    %2310 = vmatpush1.msra.mxu0 %v126
    %2311 = vmatprep.subr.mxu0 0.0
    %2312 = vmatpush1.msra.mxu0 %v129
    %2313 = vmatprep.subr.mxu0 0.0
    %2314 = vmatpush1.msra.mxu0 %v132
    %2315 = vmatprep.subr.mxu0 0.0
    %2316 = vmatpush1.msra.mxu0 %v135
    %2317 = vmatprep.subr.mxu0 0.0
    %2318 = vmatpush1.msra.mxu0 %v138
    %2319 = vmatprep.subr.mxu0 0.0
    %2320 = vmatpush1.msra.mxu0 %v141
    %2321 = vmatprep.subr.mxu0 0.0
    %2322 = vmatpush1.msra.mxu0 %v144
    %2323 = vmatprep.subr.mxu0 0.0
    %2324 = vmatpush1.msra.mxu0 %v147
    %2325 = vmatprep.subr.mxu0 0.0
    %2326 = vmatpush1.msra.mxu0 %v150
    %2327 = vmatprep.subr.mxu0 0.0
    %2328 = vmatpush1.msra.mxu0 %v153
    %2329 = vmatprep.subr.mxu0 0.0
    %2330 = vmatpush1.msra.mxu0 0.0
    %2331 = vmatprep.subr.mxu0 0.0
    %2332 = vmatpush1.msra.mxu0 0.0
    %2333 = vmatprep.subr.mxu0 0.0
    %2334 = vmatpush1.msra.mxu0 0.0
    %2335 = vmatprep.subr.mxu0 0.0
    %2336 = vmatpush1.msra.mxu0 0.0
    %2337 = vmatprep.subr.mxu0 0.0
    %2338 = vmatpush1.msra.mxu0 0.0
    %2339 = vmatprep.subr.mxu0 0.0
    %2340 = vmatpush1.msra.mxu0 0.0
    %2341 = vmatprep.subr.mxu0 0.0
    %2342 = vmatpush1.msra.mxu0 0.0
    %2343 = vmatprep.subr.mxu0 0.0
    %2344 = vmatpush1.msra.mxu0 0.0
    %2345 = vmatprep.subr.mxu0 0.0
    %2346 = vmatpush1.msra.mxu0 0.0
    %2347 = vmatprep.subr.mxu0 0.0
    %2348 = vmatpush1.msra.mxu0 0.0
    %2349 = vmatprep.subr.mxu0 0.0
    %2350 = vmatpush1.msra.mxu0 0.0
    %2351 = vmatprep.subr.mxu0 0.0
    %2352 = vmatpush1.msra.mxu0 0.0
    %2353 = vmatprep.subr.mxu0 0.0
    %2354 = vmatpush1.msra.mxu0 0.0
    %2355 = vmatprep.subr.mxu0 0.0
    %2356 = vmatpush1.msra.mxu0 0.0
    %2357 = vmatprep.subr.mxu0 0.0
    %2358 = vmatpush1.msra.mxu0 0.0
    %2359 = vmatprep.subr.mxu0 0.0
    %2360 = vmatpush1.msra.mxu0 0.0
    %2361 = vmatprep.mubr.f32.mxu0 0.0
    %2362 = vmatmul.mubr.f32.gmra.mrb[0].mxu0 %v2225
    %v2363 = vpop.f32.mrb[0].mxu0
    %v2364 = vadd.f32 %v307, %v2363
    %v2365 = vpop.f32.mrb[0].mxu0
    %2366 = vdwg.mxu0
    %2367 = vmatprep.subr.mxu0 %v155
    %2368 = vmatpush1.msra.mxu0 %v154
    %2369 = vmatprep.subr.mxu0 %v158
    %2370 = vmatpush1.msra.mxu0 %v157
    %2371 = vmatprep.subr.mxu0 %v161
    %2372 = vmatpush1.msra.mxu0 %v160
    %2373 = vmatprep.subr.mxu0 %v164
    %2374 = vmatpush1.msra.mxu0 %v163
    %2375 = vmatprep.subr.mxu0 %v167
    %2376 = vmatpush1.msra.mxu0 %v166
    %2377 = vmatprep.subr.mxu0 %v170
    %2378 = vmatpush1.msra.mxu0 %v169
    %2379 = vmatprep.subr.mxu0 %v173
    %2380 = vmatpush1.msra.mxu0 %v172
    %2381 = vmatprep.subr.mxu0 %v176
    %2382 = vmatpush1.msra.mxu0 %v175
    %2383 = vmatprep.subr.mxu0 %v179
    %2384 = vmatpush1.msra.mxu0 %v178
    %2385 = vmatprep.subr.mxu0 %v182
    %2386 = vmatpush1.msra.mxu0 %v181
    %2387 = vmatprep.subr.mxu0 %v185
    %2388 = vmatpush1.msra.mxu0 %v184
    %2389 = vmatprep.subr.mxu0 %v188
    %2390 = vmatpush1.msra.mxu0 %v187
    %2391 = vmatprep.subr.mxu0 %v191
    %2392 = vmatpush1.msra.mxu0 %v190
    %2393 = vmatprep.subr.mxu0 %v194
    %2394 = vmatpush1.msra.mxu0 %v193
    %2395 = vmatprep.subr.mxu0 %v197
    %2396 = vmatpush1.msra.mxu0 %v196
    %2397 = vmatprep.subr.mxu0 %v200
    %2398 = vmatpush1.msra.mxu0 %v199
    %2399 = vmatprep.subr.mxu0 0.0
    %2400 = vmatpush1.msra.mxu0 0.0
    %2401 = vmatprep.subr.mxu0 0.0
    %2402 = vmatpush1.msra.mxu0 0.0
    %2403 = vmatprep.subr.mxu0 0.0
    %2404 = vmatpush1.msra.mxu0 0.0
    %2405 = vmatprep.subr.mxu0 0.0
    %2406 = vmatpush1.msra.mxu0 0.0
    %2407 = vmatprep.subr.mxu0 0.0
    %2408 = vmatpush1.msra.mxu0 0.0
    %2409 = vmatprep.subr.mxu0 0.0
    %2410 = vmatpush1.msra.mxu0 0.0
    %2411 = vmatprep.subr.mxu0 0.0
    %2412 = vmatpush1.msra.mxu0 0.0
    %2413 = vmatprep.subr.mxu0 0.0
    %2414 = vmatpush1.msra.mxu0 0.0
    %2415 = vmatprep.subr.mxu0 0.0
    %2416 = vmatpush1.msra.mxu0 0.0
    %2417 = vmatprep.subr.mxu0 0.0
    %2418 = vmatpush1.msra.mxu0 0.0
    %2419 = vmatprep.subr.mxu0 0.0
    %2420 = vmatpush1.msra.mxu0 0.0
    %2421 = vmatprep.subr.mxu0 0.0
    %2422 = vmatpush1.msra.mxu0 0.0
    %2423 = vmatprep.subr.mxu0 0.0
    %2424 = vmatpush1.msra.mxu0 0.0
    %2425 = vmatprep.subr.mxu0 0.0
    %2426 = vmatpush1.msra.mxu0 0.0
    %2427 = vmatprep.subr.mxu0 0.0
    %2428 = vmatpush1.msra.mxu0 0.0
    %2429 = vmatprep.subr.mxu0 0.0
    %2430 = vmatpush1.msra.mxu0 0.0
    %2431 = vmatprep.mubr.f32.mxu0 0.0
    %2432 = vmatmul.mubr.f32.gmra.mrb[0].mxu0 %v2053
    %v2433 = vpop.f32.mrb[0].mxu0
    %v2434 = vadd.f32 0.0, %v2433
    %v2435 = vpop.f32.mrb[0].mxu0
    %v2436 = vadd.f32 0.0, %v2435
    %2437 = vdwg.mxu0
    %2438 = vmatprep.subr.mxu0 0.0
    %2439 = vmatpush1.msra.mxu0 %v156
    %2440 = vmatprep.subr.mxu0 0.0
    %2441 = vmatpush1.msra.mxu0 %v159
    %2442 = vmatprep.subr.mxu0 0.0
    %2443 = vmatpush1.msra.mxu0 %v162
    %2444 = vmatprep.subr.mxu0 0.0
    %2445 = vmatpush1.msra.mxu0 %v165
    %2446 = vmatprep.subr.mxu0 0.0
    %2447 = vmatpush1.msra.mxu0 %v168
    %2448 = vmatprep.subr.mxu0 0.0
    %2449 = vmatpush1.msra.mxu0 %v171
    %2450 = vmatprep.subr.mxu0 0.0
    %2451 = vmatpush1.msra.mxu0 %v174
    %2452 = vmatprep.subr.mxu0 0.0
    %2453 = vmatpush1.msra.mxu0 %v177
    %2454 = vmatprep.subr.mxu0 0.0
    %2455 = vmatpush1.msra.mxu0 %v180
    %2456 = vmatprep.subr.mxu0 0.0
    %2457 = vmatpush1.msra.mxu0 %v183
    %2458 = vmatprep.subr.mxu0 0.0
    %2459 = vmatpush1.msra.mxu0 %v186
    %2460 = vmatprep.subr.mxu0 0.0
    %2461 = vmatpush1.msra.mxu0 %v189
    %2462 = vmatprep.subr.mxu0 0.0
    %2463 = vmatpush1.msra.mxu0 %v192
    %2464 = vmatprep.subr.mxu0 0.0
    %2465 = vmatpush1.msra.mxu0 %v195
    %2466 = vmatprep.subr.mxu0 0.0
    %2467 = vmatpush1.msra.mxu0 %v198
    %2468 = vmatprep.subr.mxu0 0.0
    %2469 = vmatpush1.msra.mxu0 %v201
    %2470 = vmatprep.subr.mxu0 0.0
    %2471 = vmatpush1.msra.mxu0 0.0
    %2472 = vmatprep.subr.mxu0 0.0
    %2473 = vmatpush1.msra.mxu0 0.0
    %2474 = vmatprep.subr.mxu0 0.0
    %2475 = vmatpush1.msra.mxu0 0.0
    %2476 = vmatprep.subr.mxu0 0.0
    %2477 = vmatpush1.msra.mxu0 0.0
    %2478 = vmatprep.subr.mxu0 0.0
    %2479 = vmatpush1.msra.mxu0 0.0
    %2480 = vmatprep.subr.mxu0 0.0
    %2481 = vmatpush1.msra.mxu0 0.0
    %2482 = vmatprep.subr.mxu0 0.0
    %2483 = vmatpush1.msra.mxu0 0.0
    %2484 = vmatprep.subr.mxu0 0.0
    %2485 = vmatpush1.msra.mxu0 0.0
    %2486 = vmatprep.subr.mxu0 0.0
    %2487 = vmatpush1.msra.mxu0 0.0
    %2488 = vmatprep.subr.mxu0 0.0
    %2489 = vmatpush1.msra.mxu0 0.0
    %2490 = vmatprep.subr.mxu0 0.0
    %2491 = vmatpush1.msra.mxu0 0.0
    %2492 = vmatprep.subr.mxu0 0.0
    %2493 = vmatpush1.msra.mxu0 0.0
    %2494 = vmatprep.subr.mxu0 0.0
    %2495 = vmatpush1.msra.mxu0 0.0
    %2496 = vmatprep.subr.mxu0 0.0
    %2497 = vmatpush1.msra.mxu0 0.0
    %2498 = vmatprep.subr.mxu0 0.0
    %2499 = vmatpush1.msra.mxu0 0.0
    %2500 = vmatprep.subr.mxu0 0.0
    %2501 = vmatpush1.msra.mxu0 0.0
    %2502 = vmatprep.mubr.f32.mxu0 0.0
    %2503 = vmatmul.mubr.f32.gmra.mrb[0].mxu0 %v2053
    %v2504 = vpop.f32.mrb[0].mxu0
    %v2505 = vadd.f32 0.0, %v2504
    %v2506 = vpop.f32.mrb[0].mxu0
    %2507 = vdwg.mxu0
    %v2508 = vadd.f32 %v2293, %v2434
    %v2509 = vxor.u32 %v2508, 2147483648
    %v2510 = vmul.f32 %v2509, 1.442695
    %v2511 = vpow.pop %v2510
    %v2512 = vadd.f32 %v2511, 1.0
    %v2513 = vrcp.pop %v2512
    %v2514 = vmul.f32 1.0, %v2513
    %v2515 = vadd.f32 %v2295, %v2436
    %v2516 = vxor.u32 %v2515, 2147483648
    %v2517 = vmul.f32 %v2516, 1.442695
    %v2518 = vpow.pop %v2517
    %v2519 = vadd.f32 %v2518, 1.0
    %v2520 = vrcp.pop %v2519
    %v2521 = vmul.f32 1.0, %v2520
    %v2522 = vadd.f32 %v2505, %v611
    %v2523 = vmul.f32 %v2514, %v2522
    %v2524 = vadd.f32 %v2364, %v2523
    %v2525 = vtanh.pop %v2524
    %v2526 = vsub.f32 1.0, %v2521
    %v2527 = vmul.f32 %v2526, %v2525
    %v2528 = vmul.f32 %v2521, %v2053
    %v2529 = vadd.f32 %v2527, %v2528
    %2530 = vmatprep.subr.mxu0 0.0
    %2531 = vmatpush1.msra.mxu0 %v204
    %2532 = vmatprep.subr.mxu0 0.0
    %2533 = vmatpush1.msra.mxu0 %v205
    %2534 = vmatprep.subr.mxu0 0.0
    %2535 = vmatpush1.msra.mxu0 %v206
    %2536 = vmatprep.subr.mxu0 0.0
    %2537 = vmatpush1.msra.mxu0 %v207
    %2538 = vmatprep.subr.mxu0 0.0
    %2539 = vmatpush1.msra.mxu0 %v208
    %2540 = vmatprep.subr.mxu0 0.0
    %2541 = vmatpush1.msra.mxu0 %v209
    %2542 = vmatprep.subr.mxu0 0.0
    %2543 = vmatpush1.msra.mxu0 %v210
    %2544 = vmatprep.subr.mxu0 0.0
    %2545 = vmatpush1.msra.mxu0 %v211
    %2546 = vmatprep.subr.mxu0 0.0
    %2547 = vmatpush1.msra.mxu0 %v212
    %2548 = vmatprep.subr.mxu0 0.0
    %2549 = vmatpush1.msra.mxu0 %v213
    %2550 = vmatprep.subr.mxu0 0.0
    %2551 = vmatpush1.msra.mxu0 %v214
    %2552 = vmatprep.subr.mxu0 0.0
    %2553 = vmatpush1.msra.mxu0 %v215
    %2554 = vmatprep.subr.mxu0 0.0
    %2555 = vmatpush1.msra.mxu0 %v216
    %2556 = vmatprep.subr.mxu0 0.0
    %2557 = vmatpush1.msra.mxu0 %v217
    %2558 = vmatprep.subr.mxu0 0.0
    %2559 = vmatpush1.msra.mxu0 %v218
    %2560 = vmatprep.subr.mxu0 0.0
    %2561 = vmatpush1.msra.mxu0 %v219
    %2562 = vmatprep.subr.mxu0 0.0
    %2563 = vmatpush1.msra.mxu0 0.0
    %2564 = vmatprep.subr.mxu0 0.0
    %2565 = vmatpush1.msra.mxu0 0.0
    %2566 = vmatprep.subr.mxu0 0.0
    %2567 = vmatpush1.msra.mxu0 0.0
    %2568 = vmatprep.subr.mxu0 0.0
    %2569 = vmatpush1.msra.mxu0 0.0
    %2570 = vmatprep.subr.mxu0 0.0
    %2571 = vmatpush1.msra.mxu0 0.0
    %2572 = vmatprep.subr.mxu0 0.0
    %2573 = vmatpush1.msra.mxu0 0.0
    %2574 = vmatprep.subr.mxu0 0.0
    %2575 = vmatpush1.msra.mxu0 0.0
    %2576 = vmatprep.subr.mxu0 0.0
    %2577 = vmatpush1.msra.mxu0 0.0
    %2578 = vmatprep.subr.mxu0 0.0
    %2579 = vmatpush1.msra.mxu0 0.0
    %2580 = vmatprep.subr.mxu0 0.0
    %2581 = vmatpush1.msra.mxu0 0.0
    %2582 = vmatprep.subr.mxu0 0.0
    %2583 = vmatpush1.msra.mxu0 0.0
    %2584 = vmatprep.subr.mxu0 0.0
    %2585 = vmatpush1.msra.mxu0 0.0
    %2586 = vmatprep.subr.mxu0 0.0
    %2587 = vmatpush1.msra.mxu0 0.0
    %2588 = vmatprep.subr.mxu0 0.0
    %2589 = vmatpush1.msra.mxu0 0.0
    %2590 = vmatprep.subr.mxu0 0.0
    %2591 = vmatpush1.msra.mxu0 0.0
    %2592 = vmatprep.subr.mxu0 0.0
    %2593 = vmatpush1.msra.mxu0 0.0
    %2594 = vmatprep.mubr.f32.mxu0 0.0
    %2595 = vmatmul.mubr.f32.gmra.mrb[0].mxu0 %v2529
    %v2596 = vpop.f32.mrb[0].mxu0
    %v2597 = vadd.f32 %v625, %v2596
    %v2598 = vpop.f32.mrb[0].mxu0
    %2599 = vdwg.mxu0
    %2600 = vmax.xlane.f32.xlu0 %v2597
    %v2601 = vpop.xlane.xlu0 %2600
    %v2602 = vsub.f32 %v2597, %v2601
    %v2603 = vmul.f32 %v2602, 1.442695
    %v2604 = vpow.pop %v2603
    %2605 = vadd.xlane.f32.xlu0 %v2604
    %v2606 = vpop.xlane.xlu0 %2605
    %v2607 = vlog2.pop %v2606
    %v2608 = vmul.f32 %v2607, 0.6931472
    %v2609 = vadd.f32 %v2608, %v2601
    %v2610 = vsub.f32 %v2597, %v2609
    %s2611 = scalar_lea.vmem [#allocation10], 32
    %2612 = vst [vmem:[%s2611] sm:$0xff] %v2610
    %vm2613 = vcmp.eq.f32.partialorder %v2597, %v2601
    %v2614 = vsel %vm2613, %v89, 128
    %v2615 = vand.u32 %v2614, 65535
    %v2616 = vshra.s32 %v2614, 16
    %v2617 = vcvt.s32.f32 %v2615
    %v2618 = vcvt.s32.f32 %v2616
    %2619 = vmin.xlane.f32.xlu0 %v2618
    %v2620 = vpop.xlane.xlu0 %2619
    %vm2621 = vcmp.eq.f32.partialorder %v2618, %v2620
    %v2622 = vsel %vm2621, %v2617, inf
    %2623 = vmin.xlane.f32.xlu0 %v2622
    %v2624 = vpop.xlane.xlu0 %2623
    %v2625 = vcvt.f32.s32 %v2624
    %v2626 = vcvt.f32.s32 %v2620
    %v2627 = vshll.u32 %v2626, 16
    %v2628 = vadd.s32 %v2627, %v2625
    %vm2629 = vcmp.eq.s32.totalorder %v89, %v2628
    %v2630 = vsel %vm2629, 1.0, 0.0
    %2631 = vmatprep.subr.mxu0 0.0
    %2632 = vmatpush1.msra.mxu0 %v90
    %2633 = vmatprep.subr.mxu0 0.0
    %2634 = vmatpush1.msra.mxu0 %v91
    %2635 = vmatprep.subr.mxu0 0.0
    %2636 = vmatpush1.msra.mxu0 %v92
    %2637 = vmatprep.subr.mxu0 0.0
    %2638 = vmatpush1.msra.mxu0 %v93
    %2639 = vmatprep.subr.mxu0 0.0
    %2640 = vmatpush1.msra.mxu0 %v94
    %2641 = vmatprep.subr.mxu0 0.0
    %2642 = vmatpush1.msra.mxu0 %v95
    %2643 = vmatprep.subr.mxu0 0.0
    %2644 = vmatpush1.msra.mxu0 %v96
    %2645 = vmatprep.subr.mxu0 0.0
    %2646 = vmatpush1.msra.mxu0 %v97
    %2647 = vmatprep.subr.mxu0 0.0
    %2648 = vmatpush1.msra.mxu0 %v98
    %2649 = vmatprep.subr.mxu0 0.0
    %2650 = vmatpush1.msra.mxu0 %v99
    %2651 = vmatprep.subr.mxu0 0.0
    %2652 = vmatpush1.msra.mxu0 %v100
    %2653 = vmatprep.subr.mxu0 0.0
    %2654 = vmatpush1.msra.mxu0 %v101
    %2655 = vmatprep.subr.mxu0 0.0
    %2656 = vmatpush1.msra.mxu0 %v102
    %2657 = vmatprep.subr.mxu0 0.0
    %2658 = vmatpush1.msra.mxu0 %v103
    %2659 = vmatprep.subr.mxu0 0.0
    %2660 = vmatpush1.msra.mxu0 %v104
    %2661 = vmatprep.subr.mxu0 0.0
    %2662 = vmatpush1.msra.mxu0 %v105
    %2663 = vmatprep.subr.mxu0 0.0
    %2664 = vmatpush1.msra.mxu0 0.0
    %2665 = vmatprep.subr.mxu0 0.0
    %2666 = vmatpush1.msra.mxu0 0.0
    %2667 = vmatprep.subr.mxu0 0.0
    %2668 = vmatpush1.msra.mxu0 0.0
    %2669 = vmatprep.subr.mxu0 0.0
    %2670 = vmatpush1.msra.mxu0 0.0
    %2671 = vmatprep.subr.mxu0 0.0
    %2672 = vmatpush1.msra.mxu0 0.0
    %2673 = vmatprep.subr.mxu0 0.0
    %2674 = vmatpush1.msra.mxu0 0.0
    %2675 = vmatprep.subr.mxu0 0.0
    %2676 = vmatpush1.msra.mxu0 0.0
    %2677 = vmatprep.subr.mxu0 0.0
    %2678 = vmatpush1.msra.mxu0 0.0
    %2679 = vmatprep.subr.mxu0 0.0
    %2680 = vmatpush1.msra.mxu0 0.0
    %2681 = vmatprep.subr.mxu0 0.0
    %2682 = vmatpush1.msra.mxu0 0.0
    %2683 = vmatprep.subr.mxu0 0.0
    %2684 = vmatpush1.msra.mxu0 0.0
    %2685 = vmatprep.subr.mxu0 0.0
    %2686 = vmatpush1.msra.mxu0 0.0
    %2687 = vmatprep.subr.mxu0 0.0
    %2688 = vmatpush1.msra.mxu0 0.0
    %2689 = vmatprep.subr.mxu0 0.0
    %2690 = vmatpush1.msra.mxu0 0.0
    %2691 = vmatprep.subr.mxu0 0.0
    %2692 = vmatpush1.msra.mxu0 0.0
    %2693 = vmatprep.subr.mxu0 0.0
    %2694 = vmatpush1.msra.mxu0 0.0
    %2695 = vmatprep.mubr.f32.mxu0 0.0
    %2696 = vmatmul.mubr.f32.gmra.mrb[0].mxu0 %v2630
    %v2697 = vpop.f32.mrb[0].mxu0
    %v2698 = vadd.f32 0.0, %v2697
    %v2699 = vpop.f32.mrb[0].mxu0
    %2700 = vdwg.mxu0
    %v2701 = vmax.f32 %v2698, 0.0
    %2702 = vmatprep.subr.mxu0 %v107
    %2703 = vmatpush1.msra.mxu0 %v106
    %2704 = vmatprep.subr.mxu0 %v110
    %2705 = vmatpush1.msra.mxu0 %v109
    %2706 = vmatprep.subr.mxu0 %v113
    %2707 = vmatpush1.msra.mxu0 %v112
    %2708 = vmatprep.subr.mxu0 %v116
    %2709 = vmatpush1.msra.mxu0 %v115
    %2710 = vmatprep.subr.mxu0 %v119
    %2711 = vmatpush1.msra.mxu0 %v118
    %2712 = vmatprep.subr.mxu0 %v122
    %2713 = vmatpush1.msra.mxu0 %v121
    %2714 = vmatprep.subr.mxu0 %v125
    %2715 = vmatpush1.msra.mxu0 %v124
    %2716 = vmatprep.subr.mxu0 %v128
    %2717 = vmatpush1.msra.mxu0 %v127
    %2718 = vmatprep.subr.mxu0 %v131
    %2719 = vmatpush1.msra.mxu0 %v130
    %2720 = vmatprep.subr.mxu0 %v134
    %2721 = vmatpush1.msra.mxu0 %v133
    %2722 = vmatprep.subr.mxu0 %v137
    %2723 = vmatpush1.msra.mxu0 %v136
    %2724 = vmatprep.subr.mxu0 %v140
    %2725 = vmatpush1.msra.mxu0 %v139
    %2726 = vmatprep.subr.mxu0 %v143
    %2727 = vmatpush1.msra.mxu0 %v142
    %2728 = vmatprep.subr.mxu0 %v146
    %2729 = vmatpush1.msra.mxu0 %v145
    %2730 = vmatprep.subr.mxu0 %v149
    %2731 = vmatpush1.msra.mxu0 %v148
    %2732 = vmatprep.subr.mxu0 %v152
    %2733 = vmatpush1.msra.mxu0 %v151
    %2734 = vmatprep.subr.mxu0 0.0
    %2735 = vmatpush1.msra.mxu0 0.0
    %2736 = vmatprep.subr.mxu0 0.0
    %2737 = vmatpush1.msra.mxu0 0.0
    %2738 = vmatprep.subr.mxu0 0.0
    %2739 = vmatpush1.msra.mxu0 0.0
    %2740 = vmatprep.subr.mxu0 0.0
    %2741 = vmatpush1.msra.mxu0 0.0
    %2742 = vmatprep.subr.mxu0 0.0
    %2743 = vmatpush1.msra.mxu0 0.0
    %2744 = vmatprep.subr.mxu0 0.0
    %2745 = vmatpush1.msra.mxu0 0.0
    %2746 = vmatprep.subr.mxu0 0.0
    %2747 = vmatpush1.msra.mxu0 0.0
    %2748 = vmatprep.subr.mxu0 0.0
    %2749 = vmatpush1.msra.mxu0 0.0
    %2750 = vmatprep.subr.mxu0 0.0
    %2751 = vmatpush1.msra.mxu0 0.0
    %2752 = vmatprep.subr.mxu0 0.0
    %2753 = vmatpush1.msra.mxu0 0.0
    %2754 = vmatprep.subr.mxu0 0.0
    %2755 = vmatpush1.msra.mxu0 0.0
    %2756 = vmatprep.subr.mxu0 0.0
    %2757 = vmatpush1.msra.mxu0 0.0
    %2758 = vmatprep.subr.mxu0 0.0
    %2759 = vmatpush1.msra.mxu0 0.0
    %2760 = vmatprep.subr.mxu0 0.0
    %2761 = vmatpush1.msra.mxu0 0.0
    %2762 = vmatprep.subr.mxu0 0.0
    %2763 = vmatpush1.msra.mxu0 0.0
    %2764 = vmatprep.subr.mxu0 0.0
    %2765 = vmatpush1.msra.mxu0 0.0
    %2766 = vmatprep.mubr.f32.mxu0 0.0
    %2767 = vmatmul.mubr.f32.gmra.mrb[0].mxu0 %v2701
    %v2768 = vpop.f32.mrb[0].mxu0
    %v2769 = vadd.f32 %v299, %v2768
    %v2770 = vpop.f32.mrb[0].mxu0
    %v2771 = vadd.f32 %v303, %v2770
    %2772 = vdwg.mxu0
    %2773 = vmatprep.subr.mxu0 0.0
    %2774 = vmatpush1.msra.mxu0 %v108
    %2775 = vmatprep.subr.mxu0 0.0
    %2776 = vmatpush1.msra.mxu0 %v111
    %2777 = vmatprep.subr.mxu0 0.0
    %2778 = vmatpush1.msra.mxu0 %v114
    %2779 = vmatprep.subr.mxu0 0.0
    %2780 = vmatpush1.msra.mxu0 %v117
    %2781 = vmatprep.subr.mxu0 0.0
    %2782 = vmatpush1.msra.mxu0 %v120
    %2783 = vmatprep.subr.mxu0 0.0
    %2784 = vmatpush1.msra.mxu0 %v123
    %2785 = vmatprep.subr.mxu0 0.0
    %2786 = vmatpush1.msra.mxu0 %v126
    %2787 = vmatprep.subr.mxu0 0.0
    %2788 = vmatpush1.msra.mxu0 %v129
    %2789 = vmatprep.subr.mxu0 0.0
    %2790 = vmatpush1.msra.mxu0 %v132
    %2791 = vmatprep.subr.mxu0 0.0
    %2792 = vmatpush1.msra.mxu0 %v135
    %2793 = vmatprep.subr.mxu0 0.0
    %2794 = vmatpush1.msra.mxu0 %v138
    %2795 = vmatprep.subr.mxu0 0.0
    %2796 = vmatpush1.msra.mxu0 %v141
    %2797 = vmatprep.subr.mxu0 0.0
    %2798 = vmatpush1.msra.mxu0 %v144
    %2799 = vmatprep.subr.mxu0 0.0
    %2800 = vmatpush1.msra.mxu0 %v147
    %2801 = vmatprep.subr.mxu0 0.0
    %2802 = vmatpush1.msra.mxu0 %v150
    %2803 = vmatprep.subr.mxu0 0.0
    %2804 = vmatpush1.msra.mxu0 %v153
    %2805 = vmatprep.subr.mxu0 0.0
    %2806 = vmatpush1.msra.mxu0 0.0
    %2807 = vmatprep.subr.mxu0 0.0
    %2808 = vmatpush1.msra.mxu0 0.0
    %2809 = vmatprep.subr.mxu0 0.0
    %2810 = vmatpush1.msra.mxu0 0.0
    %2811 = vmatprep.subr.mxu0 0.0
    %2812 = vmatpush1.msra.mxu0 0.0
    %2813 = vmatprep.subr.mxu0 0.0
    %2814 = vmatpush1.msra.mxu0 0.0
    %2815 = vmatprep.subr.mxu0 0.0
    %2816 = vmatpush1.msra.mxu0 0.0
    %2817 = vmatprep.subr.mxu0 0.0
    %2818 = vmatpush1.msra.mxu0 0.0
    %2819 = vmatprep.subr.mxu0 0.0
    %2820 = vmatpush1.msra.mxu0 0.0
    %2821 = vmatprep.subr.mxu0 0.0
    %2822 = vmatpush1.msra.mxu0 0.0
    %2823 = vmatprep.subr.mxu0 0.0
    %2824 = vmatpush1.msra.mxu0 0.0
    %2825 = vmatprep.subr.mxu0 0.0
    %2826 = vmatpush1.msra.mxu0 0.0
    %2827 = vmatprep.subr.mxu0 0.0
    %2828 = vmatpush1.msra.mxu0 0.0
    %2829 = vmatprep.subr.mxu0 0.0
    %2830 = vmatpush1.msra.mxu0 0.0
    %2831 = vmatprep.subr.mxu0 0.0
    %2832 = vmatpush1.msra.mxu0 0.0
    %2833 = vmatprep.subr.mxu0 0.0
    %2834 = vmatpush1.msra.mxu0 0.0
    %2835 = vmatprep.subr.mxu0 0.0
    %2836 = vmatpush1.msra.mxu0 0.0
    %2837 = vmatprep.mubr.f32.mxu0 0.0
    %2838 = vmatmul.mubr.f32.gmra.mrb[0].mxu0 %v2701
    %v2839 = vpop.f32.mrb[0].mxu0
    %v2840 = vadd.f32 %v307, %v2839
    %v2841 = vpop.f32.mrb[0].mxu0
    %2842 = vdwg.mxu0
    %2843 = vmatprep.subr.mxu0 %v155
    %2844 = vmatpush1.msra.mxu0 %v154
    %2845 = vmatprep.subr.mxu0 %v158
    %2846 = vmatpush1.msra.mxu0 %v157
    %2847 = vmatprep.subr.mxu0 %v161
    %2848 = vmatpush1.msra.mxu0 %v160
    %2849 = vmatprep.subr.mxu0 %v164
    %2850 = vmatpush1.msra.mxu0 %v163
    %2851 = vmatprep.subr.mxu0 %v167
    %2852 = vmatpush1.msra.mxu0 %v166
    %2853 = vmatprep.subr.mxu0 %v170
    %2854 = vmatpush1.msra.mxu0 %v169
    %2855 = vmatprep.subr.mxu0 %v173
    %2856 = vmatpush1.msra.mxu0 %v172
    %2857 = vmatprep.subr.mxu0 %v176
    %2858 = vmatpush1.msra.mxu0 %v175
    %2859 = vmatprep.subr.mxu0 %v179
    %2860 = vmatpush1.msra.mxu0 %v178
    %2861 = vmatprep.subr.mxu0 %v182
    %2862 = vmatpush1.msra.mxu0 %v181
    %2863 = vmatprep.subr.mxu0 %v185
    %2864 = vmatpush1.msra.mxu0 %v184
    %2865 = vmatprep.subr.mxu0 %v188
    %2866 = vmatpush1.msra.mxu0 %v187
    %2867 = vmatprep.subr.mxu0 %v191
    %2868 = vmatpush1.msra.mxu0 %v190
    %2869 = vmatprep.subr.mxu0 %v194
    %2870 = vmatpush1.msra.mxu0 %v193
    %2871 = vmatprep.subr.mxu0 %v197
    %2872 = vmatpush1.msra.mxu0 %v196
    %2873 = vmatprep.subr.mxu0 %v200
    %2874 = vmatpush1.msra.mxu0 %v199
    %2875 = vmatprep.subr.mxu0 0.0
    %2876 = vmatpush1.msra.mxu0 0.0
    %2877 = vmatprep.subr.mxu0 0.0
    %2878 = vmatpush1.msra.mxu0 0.0
    %2879 = vmatprep.subr.mxu0 0.0
    %2880 = vmatpush1.msra.mxu0 0.0
    %2881 = vmatprep.subr.mxu0 0.0
    %2882 = vmatpush1.msra.mxu0 0.0
    %2883 = vmatprep.subr.mxu0 0.0
    %2884 = vmatpush1.msra.mxu0 0.0
    %2885 = vmatprep.subr.mxu0 0.0
    %2886 = vmatpush1.msra.mxu0 0.0
    %2887 = vmatprep.subr.mxu0 0.0
    %2888 = vmatpush1.msra.mxu0 0.0
    %2889 = vmatprep.subr.mxu0 0.0
    %2890 = vmatpush1.msra.mxu0 0.0
    %2891 = vmatprep.subr.mxu0 0.0
    %2892 = vmatpush1.msra.mxu0 0.0
    %2893 = vmatprep.subr.mxu0 0.0
    %2894 = vmatpush1.msra.mxu0 0.0
    %2895 = vmatprep.subr.mxu0 0.0
    %2896 = vmatpush1.msra.mxu0 0.0
    %2897 = vmatprep.subr.mxu0 0.0
    %2898 = vmatpush1.msra.mxu0 0.0
    %2899 = vmatprep.subr.mxu0 0.0
    %2900 = vmatpush1.msra.mxu0 0.0
    %2901 = vmatprep.subr.mxu0 0.0
    %2902 = vmatpush1.msra.mxu0 0.0
    %2903 = vmatprep.subr.mxu0 0.0
    %2904 = vmatpush1.msra.mxu0 0.0
    %2905 = vmatprep.subr.mxu0 0.0
    %2906 = vmatpush1.msra.mxu0 0.0
    %2907 = vmatprep.mubr.f32.mxu0 0.0
    %2908 = vmatmul.mubr.f32.gmra.mrb[0].mxu0 %v2529
    %v2909 = vpop.f32.mrb[0].mxu0
    %v2910 = vadd.f32 0.0, %v2909
    %v2911 = vpop.f32.mrb[0].mxu0
    %v2912 = vadd.f32 0.0, %v2911
    %2913 = vdwg.mxu0
    %2914 = vmatprep.subr.mxu0 0.0
    %2915 = vmatpush1.msra.mxu0 %v156
    %2916 = vmatprep.subr.mxu0 0.0
    %2917 = vmatpush1.msra.mxu0 %v159
    %2918 = vmatprep.subr.mxu0 0.0
    %2919 = vmatpush1.msra.mxu0 %v162
    %2920 = vmatprep.subr.mxu0 0.0
    %2921 = vmatpush1.msra.mxu0 %v165
    %2922 = vmatprep.subr.mxu0 0.0
    %2923 = vmatpush1.msra.mxu0 %v168
    %2924 = vmatprep.subr.mxu0 0.0
    %2925 = vmatpush1.msra.mxu0 %v171
    %2926 = vmatprep.subr.mxu0 0.0
    %2927 = vmatpush1.msra.mxu0 %v174
    %2928 = vmatprep.subr.mxu0 0.0
    %2929 = vmatpush1.msra.mxu0 %v177
    %2930 = vmatprep.subr.mxu0 0.0
    %2931 = vmatpush1.msra.mxu0 %v180
    %2932 = vmatprep.subr.mxu0 0.0
    %2933 = vmatpush1.msra.mxu0 %v183
    %2934 = vmatprep.subr.mxu0 0.0
    %2935 = vmatpush1.msra.mxu0 %v186
    %2936 = vmatprep.subr.mxu0 0.0
    %2937 = vmatpush1.msra.mxu0 %v189
    %2938 = vmatprep.subr.mxu0 0.0
    %2939 = vmatpush1.msra.mxu0 %v192
    %2940 = vmatprep.subr.mxu0 0.0
    %2941 = vmatpush1.msra.mxu0 %v195
    %2942 = vmatprep.subr.mxu0 0.0
    %2943 = vmatpush1.msra.mxu0 %v198
    %2944 = vmatprep.subr.mxu0 0.0
    %2945 = vmatpush1.msra.mxu0 %v201
    %2946 = vmatprep.subr.mxu0 0.0
    %2947 = vmatpush1.msra.mxu0 0.0
    %2948 = vmatprep.subr.mxu0 0.0
    %2949 = vmatpush1.msra.mxu0 0.0
    %2950 = vmatprep.subr.mxu0 0.0
    %2951 = vmatpush1.msra.mxu0 0.0
    %2952 = vmatprep.subr.mxu0 0.0
    %2953 = vmatpush1.msra.mxu0 0.0
    %2954 = vmatprep.subr.mxu0 0.0
    %2955 = vmatpush1.msra.mxu0 0.0
    %2956 = vmatprep.subr.mxu0 0.0
    %2957 = vmatpush1.msra.mxu0 0.0
    %2958 = vmatprep.subr.mxu0 0.0
    %2959 = vmatpush1.msra.mxu0 0.0
    %2960 = vmatprep.subr.mxu0 0.0
    %2961 = vmatpush1.msra.mxu0 0.0
    %2962 = vmatprep.subr.mxu0 0.0
    %2963 = vmatpush1.msra.mxu0 0.0
    %2964 = vmatprep.subr.mxu0 0.0
    %2965 = vmatpush1.msra.mxu0 0.0
    %2966 = vmatprep.subr.mxu0 0.0
    %2967 = vmatpush1.msra.mxu0 0.0
    %2968 = vmatprep.subr.mxu0 0.0
    %2969 = vmatpush1.msra.mxu0 0.0
    %2970 = vmatprep.subr.mxu0 0.0
    %2971 = vmatpush1.msra.mxu0 0.0
    %2972 = vmatprep.subr.mxu0 0.0
    %2973 = vmatpush1.msra.mxu0 0.0
    %2974 = vmatprep.subr.mxu0 0.0
    %2975 = vmatpush1.msra.mxu0 0.0
    %2976 = vmatprep.subr.mxu0 0.0
    %2977 = vmatpush1.msra.mxu0 0.0
    %2978 = vmatprep.mubr.f32.mxu0 0.0
    %2979 = vmatmul.mubr.f32.gmra.mrb[0].mxu0 %v2529
    %v2980 = vpop.f32.mrb[0].mxu0
    %v2981 = vadd.f32 0.0, %v2980
    %v2982 = vpop.f32.mrb[0].mxu0
    %2983 = vdwg.mxu0
    %v2984 = vadd.f32 %v2769, %v2910
    %v2985 = vxor.u32 %v2984, 2147483648
    %v2986 = vmul.f32 %v2985, 1.442695
    %v2987 = vpow.pop %v2986
    %v2988 = vadd.f32 %v2987, 1.0
    %v2989 = vrcp.pop %v2988
    %v2990 = vmul.f32 1.0, %v2989
    %v2991 = vadd.f32 %v2771, %v2912
    %v2992 = vxor.u32 %v2991, 2147483648
    %v2993 = vmul.f32 %v2992, 1.442695
    %v2994 = vpow.pop %v2993
    %v2995 = vadd.f32 %v2994, 1.0
    %v2996 = vrcp.pop %v2995
    %v2997 = vmul.f32 1.0, %v2996
    %v2998 = vadd.f32 %v2981, %v611
    %v2999 = vmul.f32 %v2990, %v2998
    %v3000 = vadd.f32 %v2840, %v2999
    %v3001 = vtanh.pop %v3000
    %v3002 = vsub.f32 1.0, %v2997
    %v3003 = vmul.f32 %v3002, %v3001
    %v3004 = vmul.f32 %v2997, %v2529
    %v3005 = vadd.f32 %v3003, %v3004
    %3006 = vmatprep.subr.mxu0 0.0
    %3007 = vmatpush1.msra.mxu0 %v204
    %3008 = vmatprep.subr.mxu0 0.0
    %3009 = vmatpush1.msra.mxu0 %v205
    %3010 = vmatprep.subr.mxu0 0.0
    %3011 = vmatpush1.msra.mxu0 %v206
    %3012 = vmatprep.subr.mxu0 0.0
    %3013 = vmatpush1.msra.mxu0 %v207
    %3014 = vmatprep.subr.mxu0 0.0
    %3015 = vmatpush1.msra.mxu0 %v208
    %3016 = vmatprep.subr.mxu0 0.0
    %3017 = vmatpush1.msra.mxu0 %v209
    %3018 = vmatprep.subr.mxu0 0.0
    %3019 = vmatpush1.msra.mxu0 %v210
    %3020 = vmatprep.subr.mxu0 0.0
    %3021 = vmatpush1.msra.mxu0 %v211
    %3022 = vmatprep.subr.mxu0 0.0
    %3023 = vmatpush1.msra.mxu0 %v212
    %3024 = vmatprep.subr.mxu0 0.0
    %3025 = vmatpush1.msra.mxu0 %v213
    %3026 = vmatprep.subr.mxu0 0.0
    %3027 = vmatpush1.msra.mxu0 %v214
    %3028 = vmatprep.subr.mxu0 0.0
    %3029 = vmatpush1.msra.mxu0 %v215
    %3030 = vmatprep.subr.mxu0 0.0
    %3031 = vmatpush1.msra.mxu0 %v216
    %3032 = vmatprep.subr.mxu0 0.0
    %3033 = vmatpush1.msra.mxu0 %v217
    %3034 = vmatprep.subr.mxu0 0.0
    %3035 = vmatpush1.msra.mxu0 %v218
    %3036 = vmatprep.subr.mxu0 0.0
    %3037 = vmatpush1.msra.mxu0 %v219
    %3038 = vmatprep.subr.mxu0 0.0
    %3039 = vmatpush1.msra.mxu0 0.0
    %3040 = vmatprep.subr.mxu0 0.0
    %3041 = vmatpush1.msra.mxu0 0.0
    %3042 = vmatprep.subr.mxu0 0.0
    %3043 = vmatpush1.msra.mxu0 0.0
    %3044 = vmatprep.subr.mxu0 0.0
    %3045 = vmatpush1.msra.mxu0 0.0
    %3046 = vmatprep.subr.mxu0 0.0
    %3047 = vmatpush1.msra.mxu0 0.0
    %3048 = vmatprep.subr.mxu0 0.0
    %3049 = vmatpush1.msra.mxu0 0.0
    %3050 = vmatprep.subr.mxu0 0.0
    %3051 = vmatpush1.msra.mxu0 0.0
    %3052 = vmatprep.subr.mxu0 0.0
    %3053 = vmatpush1.msra.mxu0 0.0
    %3054 = vmatprep.subr.mxu0 0.0
    %3055 = vmatpush1.msra.mxu0 0.0
    %3056 = vmatprep.subr.mxu0 0.0
    %3057 = vmatpush1.msra.mxu0 0.0
    %3058 = vmatprep.subr.mxu0 0.0
    %3059 = vmatpush1.msra.mxu0 0.0
    %3060 = vmatprep.subr.mxu0 0.0
    %3061 = vmatpush1.msra.mxu0 0.0
    %3062 = vmatprep.subr.mxu0 0.0
    %3063 = vmatpush1.msra.mxu0 0.0
    %3064 = vmatprep.subr.mxu0 0.0
    %3065 = vmatpush1.msra.mxu0 0.0
    %3066 = vmatprep.subr.mxu0 0.0
    %3067 = vmatpush1.msra.mxu0 0.0
    %3068 = vmatprep.subr.mxu0 0.0
    %3069 = vmatpush1.msra.mxu0 0.0
    %3070 = vmatprep.mubr.f32.mxu0 0.0
    %3071 = vmatmul.mubr.f32.gmra.mrb[0].mxu0 %v3005
    %v3072 = vpop.f32.mrb[0].mxu0
    %v3073 = vadd.f32 %v625, %v3072
    %v3074 = vpop.f32.mrb[0].mxu0
    %3075 = vdwg.mxu0
    %3076 = vmax.xlane.f32.xlu0 %v3073
    %v3077 = vpop.xlane.xlu0 %3076
    %v3078 = vsub.f32 %v3073, %v3077
    %v3079 = vmul.f32 %v3078, 1.442695
    %v3080 = vpow.pop %v3079
    %3081 = vadd.xlane.f32.xlu0 %v3080
    %v3082 = vpop.xlane.xlu0 %3081
    %v3083 = vlog2.pop %v3082
    %v3084 = vmul.f32 %v3083, 0.6931472
    %v3085 = vadd.f32 %v3084, %v3077
    %v3086 = vsub.f32 %v3073, %v3085
    %s3087 = scalar_lea.vmem [#allocation10], 40
    %3088 = vst [vmem:[%s3087] sm:$0xff] %v3086
    %vm3089 = vcmp.eq.f32.partialorder %v3073, %v3077
    %v3090 = vsel %vm3089, %v89, 128
    %v3091 = vand.u32 %v3090, 65535
    %v3092 = vshra.s32 %v3090, 16
    %v3093 = vcvt.s32.f32 %v3091
    %v3094 = vcvt.s32.f32 %v3092
    %3095 = vmin.xlane.f32.xlu0 %v3094
    %v3096 = vpop.xlane.xlu0 %3095
    %vm3097 = vcmp.eq.f32.partialorder %v3094, %v3096
    %v3098 = vsel %vm3097, %v3093, inf
    %3099 = vmin.xlane.f32.xlu0 %v3098
    %v3100 = vpop.xlane.xlu0 %3099
    %v3101 = vcvt.f32.s32 %v3100
    %v3102 = vcvt.f32.s32 %v3096
    %v3103 = vshll.u32 %v3102, 16
    %v3104 = vadd.s32 %v3103, %v3101
    %vm3105 = vcmp.eq.s32.totalorder %v89, %v3104
    %v3106 = vsel %vm3105, 1.0, 0.0
    %3107 = vmatprep.subr.mxu0 0.0
    %3108 = vmatpush1.msra.mxu0 %v90
    %3109 = vmatprep.subr.mxu0 0.0
    %3110 = vmatpush1.msra.mxu0 %v91
    %3111 = vmatprep.subr.mxu0 0.0
    %3112 = vmatpush1.msra.mxu0 %v92
    %3113 = vmatprep.subr.mxu0 0.0
    %3114 = vmatpush1.msra.mxu0 %v93
    %3115 = vmatprep.subr.mxu0 0.0
    %3116 = vmatpush1.msra.mxu0 %v94
    %3117 = vmatprep.subr.mxu0 0.0
    %3118 = vmatpush1.msra.mxu0 %v95
    %3119 = vmatprep.subr.mxu0 0.0
    %3120 = vmatpush1.msra.mxu0 %v96
    %3121 = vmatprep.subr.mxu0 0.0
    %3122 = vmatpush1.msra.mxu0 %v97
    %3123 = vmatprep.subr.mxu0 0.0
    %3124 = vmatpush1.msra.mxu0 %v98
    %3125 = vmatprep.subr.mxu0 0.0
    %3126 = vmatpush1.msra.mxu0 %v99
    %3127 = vmatprep.subr.mxu0 0.0
    %3128 = vmatpush1.msra.mxu0 %v100
    %3129 = vmatprep.subr.mxu0 0.0
    %3130 = vmatpush1.msra.mxu0 %v101
    %3131 = vmatprep.subr.mxu0 0.0
    %3132 = vmatpush1.msra.mxu0 %v102
    %3133 = vmatprep.subr.mxu0 0.0
    %3134 = vmatpush1.msra.mxu0 %v103
    %3135 = vmatprep.subr.mxu0 0.0
    %3136 = vmatpush1.msra.mxu0 %v104
    %3137 = vmatprep.subr.mxu0 0.0
    %3138 = vmatpush1.msra.mxu0 %v105
    %3139 = vmatprep.subr.mxu0 0.0
    %3140 = vmatpush1.msra.mxu0 0.0
    %3141 = vmatprep.subr.mxu0 0.0
    %3142 = vmatpush1.msra.mxu0 0.0
    %3143 = vmatprep.subr.mxu0 0.0
    %3144 = vmatpush1.msra.mxu0 0.0
    %3145 = vmatprep.subr.mxu0 0.0
    %3146 = vmatpush1.msra.mxu0 0.0
    %3147 = vmatprep.subr.mxu0 0.0
    %3148 = vmatpush1.msra.mxu0 0.0
    %3149 = vmatprep.subr.mxu0 0.0
    %3150 = vmatpush1.msra.mxu0 0.0
    %3151 = vmatprep.subr.mxu0 0.0
    %3152 = vmatpush1.msra.mxu0 0.0
    %3153 = vmatprep.subr.mxu0 0.0
    %3154 = vmatpush1.msra.mxu0 0.0
    %3155 = vmatprep.subr.mxu0 0.0
    %3156 = vmatpush1.msra.mxu0 0.0
    %3157 = vmatprep.subr.mxu0 0.0
    %3158 = vmatpush1.msra.mxu0 0.0
    %3159 = vmatprep.subr.mxu0 0.0
    %3160 = vmatpush1.msra.mxu0 0.0
    %3161 = vmatprep.subr.mxu0 0.0
    %3162 = vmatpush1.msra.mxu0 0.0
    %3163 = vmatprep.subr.mxu0 0.0
    %3164 = vmatpush1.msra.mxu0 0.0
    %3165 = vmatprep.subr.mxu0 0.0
    %3166 = vmatpush1.msra.mxu0 0.0
    %3167 = vmatprep.subr.mxu0 0.0
    %3168 = vmatpush1.msra.mxu0 0.0
    %3169 = vmatprep.subr.mxu0 0.0
    %3170 = vmatpush1.msra.mxu0 0.0
    %3171 = vmatprep.mubr.f32.mxu0 0.0
    %3172 = vmatmul.mubr.f32.gmra.mrb[0].mxu0 %v3106
    %v3173 = vpop.f32.mrb[0].mxu0
    %v3174 = vadd.f32 0.0, %v3173
    %v3175 = vpop.f32.mrb[0].mxu0
    %3176 = vdwg.mxu0
    %v3177 = vmax.f32 %v3174, 0.0
    %3178 = vmatprep.subr.mxu0 %v107
    %3179 = vmatpush1.msra.mxu0 %v106
    %3180 = vmatprep.subr.mxu0 %v110
    %3181 = vmatpush1.msra.mxu0 %v109
    %3182 = vmatprep.subr.mxu0 %v113
    %3183 = vmatpush1.msra.mxu0 %v112
    %3184 = vmatprep.subr.mxu0 %v116
    %3185 = vmatpush1.msra.mxu0 %v115
    %3186 = vmatprep.subr.mxu0 %v119
    %3187 = vmatpush1.msra.mxu0 %v118
    %3188 = vmatprep.subr.mxu0 %v122
    %3189 = vmatpush1.msra.mxu0 %v121
    %3190 = vmatprep.subr.mxu0 %v125
    %3191 = vmatpush1.msra.mxu0 %v124
    %3192 = vmatprep.subr.mxu0 %v128
    %3193 = vmatpush1.msra.mxu0 %v127
    %3194 = vmatprep.subr.mxu0 %v131
    %3195 = vmatpush1.msra.mxu0 %v130
    %3196 = vmatprep.subr.mxu0 %v134
    %3197 = vmatpush1.msra.mxu0 %v133
    %3198 = vmatprep.subr.mxu0 %v137
    %3199 = vmatpush1.msra.mxu0 %v136
    %3200 = vmatprep.subr.mxu0 %v140
    %3201 = vmatpush1.msra.mxu0 %v139
    %3202 = vmatprep.subr.mxu0 %v143
    %3203 = vmatpush1.msra.mxu0 %v142
    %3204 = vmatprep.subr.mxu0 %v146
    %3205 = vmatpush1.msra.mxu0 %v145
    %3206 = vmatprep.subr.mxu0 %v149
    %3207 = vmatpush1.msra.mxu0 %v148
    %3208 = vmatprep.subr.mxu0 %v152
    %3209 = vmatpush1.msra.mxu0 %v151
    %3210 = vmatprep.subr.mxu0 0.0
    %3211 = vmatpush1.msra.mxu0 0.0
    %3212 = vmatprep.subr.mxu0 0.0
    %3213 = vmatpush1.msra.mxu0 0.0
    %3214 = vmatprep.subr.mxu0 0.0
    %3215 = vmatpush1.msra.mxu0 0.0
    %3216 = vmatprep.subr.mxu0 0.0
    %3217 = vmatpush1.msra.mxu0 0.0
    %3218 = vmatprep.subr.mxu0 0.0
    %3219 = vmatpush1.msra.mxu0 0.0
    %3220 = vmatprep.subr.mxu0 0.0
    %3221 = vmatpush1.msra.mxu0 0.0
    %3222 = vmatprep.subr.mxu0 0.0
    %3223 = vmatpush1.msra.mxu0 0.0
    %3224 = vmatprep.subr.mxu0 0.0
    %3225 = vmatpush1.msra.mxu0 0.0
    %3226 = vmatprep.subr.mxu0 0.0
    %3227 = vmatpush1.msra.mxu0 0.0
    %3228 = vmatprep.subr.mxu0 0.0
    %3229 = vmatpush1.msra.mxu0 0.0
    %3230 = vmatprep.subr.mxu0 0.0
    %3231 = vmatpush1.msra.mxu0 0.0
    %3232 = vmatprep.subr.mxu0 0.0
    %3233 = vmatpush1.msra.mxu0 0.0
    %3234 = vmatprep.subr.mxu0 0.0
    %3235 = vmatpush1.msra.mxu0 0.0
    %3236 = vmatprep.subr.mxu0 0.0
    %3237 = vmatpush1.msra.mxu0 0.0
    %3238 = vmatprep.subr.mxu0 0.0
    %3239 = vmatpush1.msra.mxu0 0.0
    %3240 = vmatprep.subr.mxu0 0.0
    %3241 = vmatpush1.msra.mxu0 0.0
    %3242 = vmatprep.mubr.f32.mxu0 0.0
    %3243 = vmatmul.mubr.f32.gmra.mrb[0].mxu0 %v3177
    %v3244 = vpop.f32.mrb[0].mxu0
    %v3245 = vadd.f32 %v299, %v3244
    %v3246 = vpop.f32.mrb[0].mxu0
    %v3247 = vadd.f32 %v303, %v3246
    %3248 = vdwg.mxu0
    %3249 = vmatprep.subr.mxu0 0.0
    %3250 = vmatpush1.msra.mxu0 %v108
    %3251 = vmatprep.subr.mxu0 0.0
    %3252 = vmatpush1.msra.mxu0 %v111
    %3253 = vmatprep.subr.mxu0 0.0
    %3254 = vmatpush1.msra.mxu0 %v114
    %3255 = vmatprep.subr.mxu0 0.0
    %3256 = vmatpush1.msra.mxu0 %v117
    %3257 = vmatprep.subr.mxu0 0.0
    %3258 = vmatpush1.msra.mxu0 %v120
    %3259 = vmatprep.subr.mxu0 0.0
    %3260 = vmatpush1.msra.mxu0 %v123
    %3261 = vmatprep.subr.mxu0 0.0
    %3262 = vmatpush1.msra.mxu0 %v126
    %3263 = vmatprep.subr.mxu0 0.0
    %3264 = vmatpush1.msra.mxu0 %v129
    %3265 = vmatprep.subr.mxu0 0.0
    %3266 = vmatpush1.msra.mxu0 %v132
    %3267 = vmatprep.subr.mxu0 0.0
    %3268 = vmatpush1.msra.mxu0 %v135
    %3269 = vmatprep.subr.mxu0 0.0
    %3270 = vmatpush1.msra.mxu0 %v138
    %3271 = vmatprep.subr.mxu0 0.0
    %3272 = vmatpush1.msra.mxu0 %v141
    %3273 = vmatprep.subr.mxu0 0.0
    %3274 = vmatpush1.msra.mxu0 %v144
    %3275 = vmatprep.subr.mxu0 0.0
    %3276 = vmatpush1.msra.mxu0 %v147
    %3277 = vmatprep.subr.mxu0 0.0
    %3278 = vmatpush1.msra.mxu0 %v150
    %3279 = vmatprep.subr.mxu0 0.0
    %3280 = vmatpush1.msra.mxu0 %v153
    %3281 = vmatprep.subr.mxu0 0.0
    %3282 = vmatpush1.msra.mxu0 0.0
    %3283 = vmatprep.subr.mxu0 0.0
    %3284 = vmatpush1.msra.mxu0 0.0
    %3285 = vmatprep.subr.mxu0 0.0
    %3286 = vmatpush1.msra.mxu0 0.0
    %3287 = vmatprep.subr.mxu0 0.0
    %3288 = vmatpush1.msra.mxu0 0.0
    %3289 = vmatprep.subr.mxu0 0.0
    %3290 = vmatpush1.msra.mxu0 0.0
    %3291 = vmatprep.subr.mxu0 0.0
    %3292 = vmatpush1.msra.mxu0 0.0
    %3293 = vmatprep.subr.mxu0 0.0
    %3294 = vmatpush1.msra.mxu0 0.0
    %3295 = vmatprep.subr.mxu0 0.0
    %3296 = vmatpush1.msra.mxu0 0.0
    %3297 = vmatprep.subr.mxu0 0.0
    %3298 = vmatpush1.msra.mxu0 0.0
    %3299 = vmatprep.subr.mxu0 0.0
    %3300 = vmatpush1.msra.mxu0 0.0
    %3301 = vmatprep.subr.mxu0 0.0
    %3302 = vmatpush1.msra.mxu0 0.0
    %3303 = vmatprep.subr.mxu0 0.0
    %3304 = vmatpush1.msra.mxu0 0.0
    %3305 = vmatprep.subr.mxu0 0.0
    %3306 = vmatpush1.msra.mxu0 0.0
    %3307 = vmatprep.subr.mxu0 0.0
    %3308 = vmatpush1.msra.mxu0 0.0
    %3309 = vmatprep.subr.mxu0 0.0
    %3310 = vmatpush1.msra.mxu0 0.0
    %3311 = vmatprep.subr.mxu0 0.0
    %3312 = vmatpush1.msra.mxu0 0.0
    %3313 = vmatprep.mubr.f32.mxu0 0.0
    %3314 = vmatmul.mubr.f32.gmra.mrb[0].mxu0 %v3177
    %v3315 = vpop.f32.mrb[0].mxu0
    %v3316 = vadd.f32 %v307, %v3315
    %v3317 = vpop.f32.mrb[0].mxu0
    %3318 = vdwg.mxu0
    %3319 = vmatprep.subr.mxu0 %v155
    %3320 = vmatpush1.msra.mxu0 %v154
    %3321 = vmatprep.subr.mxu0 %v158
    %3322 = vmatpush1.msra.mxu0 %v157
    %3323 = vmatprep.subr.mxu0 %v161
    %3324 = vmatpush1.msra.mxu0 %v160
    %3325 = vmatprep.subr.mxu0 %v164
    %3326 = vmatpush1.msra.mxu0 %v163
    %3327 = vmatprep.subr.mxu0 %v167
    %3328 = vmatpush1.msra.mxu0 %v166
    %3329 = vmatprep.subr.mxu0 %v170
    %3330 = vmatpush1.msra.mxu0 %v169
    %3331 = vmatprep.subr.mxu0 %v173
    %3332 = vmatpush1.msra.mxu0 %v172
    %3333 = vmatprep.subr.mxu0 %v176
    %3334 = vmatpush1.msra.mxu0 %v175
    %3335 = vmatprep.subr.mxu0 %v179
    %3336 = vmatpush1.msra.mxu0 %v178
    %3337 = vmatprep.subr.mxu0 %v182
    %3338 = vmatpush1.msra.mxu0 %v181
    %3339 = vmatprep.subr.mxu0 %v185
    %3340 = vmatpush1.msra.mxu0 %v184
    %3341 = vmatprep.subr.mxu0 %v188
    %3342 = vmatpush1.msra.mxu0 %v187
    %3343 = vmatprep.subr.mxu0 %v191
    %3344 = vmatpush1.msra.mxu0 %v190
    %3345 = vmatprep.subr.mxu0 %v194
    %3346 = vmatpush1.msra.mxu0 %v193
    %3347 = vmatprep.subr.mxu0 %v197
    %3348 = vmatpush1.msra.mxu0 %v196
    %3349 = vmatprep.subr.mxu0 %v200
    %3350 = vmatpush1.msra.mxu0 %v199
    %3351 = vmatprep.subr.mxu0 0.0
    %3352 = vmatpush1.msra.mxu0 0.0
    %3353 = vmatprep.subr.mxu0 0.0
    %3354 = vmatpush1.msra.mxu0 0.0
    %3355 = vmatprep.subr.mxu0 0.0
    %3356 = vmatpush1.msra.mxu0 0.0
    %3357 = vmatprep.subr.mxu0 0.0
    %3358 = vmatpush1.msra.mxu0 0.0
    %3359 = vmatprep.subr.mxu0 0.0
    %3360 = vmatpush1.msra.mxu0 0.0
    %3361 = vmatprep.subr.mxu0 0.0
    %3362 = vmatpush1.msra.mxu0 0.0
    %3363 = vmatprep.subr.mxu0 0.0
    %3364 = vmatpush1.msra.mxu0 0.0
    %3365 = vmatprep.subr.mxu0 0.0
    %3366 = vmatpush1.msra.mxu0 0.0
    %3367 = vmatprep.subr.mxu0 0.0
    %3368 = vmatpush1.msra.mxu0 0.0
    %3369 = vmatprep.subr.mxu0 0.0
    %3370 = vmatpush1.msra.mxu0 0.0
    %3371 = vmatprep.subr.mxu0 0.0
    %3372 = vmatpush1.msra.mxu0 0.0
    %3373 = vmatprep.subr.mxu0 0.0
    %3374 = vmatpush1.msra.mxu0 0.0
    %3375 = vmatprep.subr.mxu0 0.0
    %3376 = vmatpush1.msra.mxu0 0.0
    %3377 = vmatprep.subr.mxu0 0.0
    %3378 = vmatpush1.msra.mxu0 0.0
    %3379 = vmatprep.subr.mxu0 0.0
    %3380 = vmatpush1.msra.mxu0 0.0
    %3381 = vmatprep.subr.mxu0 0.0
    %3382 = vmatpush1.msra.mxu0 0.0
    %3383 = vmatprep.mubr.f32.mxu0 0.0
    %3384 = vmatmul.mubr.f32.gmra.mrb[0].mxu0 %v3005
    %v3385 = vpop.f32.mrb[0].mxu0
    %v3386 = vadd.f32 0.0, %v3385
    %v3387 = vpop.f32.mrb[0].mxu0
    %v3388 = vadd.f32 0.0, %v3387
    %3389 = vdwg.mxu0
    %3390 = vmatprep.subr.mxu0 0.0
    %3391 = vmatpush1.msra.mxu0 %v156
    %3392 = vmatprep.subr.mxu0 0.0
    %3393 = vmatpush1.msra.mxu0 %v159
    %3394 = vmatprep.subr.mxu0 0.0
    %3395 = vmatpush1.msra.mxu0 %v162
    %3396 = vmatprep.subr.mxu0 0.0
    %3397 = vmatpush1.msra.mxu0 %v165
    %3398 = vmatprep.subr.mxu0 0.0
    %3399 = vmatpush1.msra.mxu0 %v168
    %3400 = vmatprep.subr.mxu0 0.0
    %3401 = vmatpush1.msra.mxu0 %v171
    %3402 = vmatprep.subr.mxu0 0.0
    %3403 = vmatpush1.msra.mxu0 %v174
    %3404 = vmatprep.subr.mxu0 0.0
    %3405 = vmatpush1.msra.mxu0 %v177
    %3406 = vmatprep.subr.mxu0 0.0
    %3407 = vmatpush1.msra.mxu0 %v180
    %3408 = vmatprep.subr.mxu0 0.0
    %3409 = vmatpush1.msra.mxu0 %v183
    %3410 = vmatprep.subr.mxu0 0.0
    %3411 = vmatpush1.msra.mxu0 %v186
    %3412 = vmatprep.subr.mxu0 0.0
    %3413 = vmatpush1.msra.mxu0 %v189
    %3414 = vmatprep.subr.mxu0 0.0
    %3415 = vmatpush1.msra.mxu0 %v192
    %3416 = vmatprep.subr.mxu0 0.0
    %3417 = vmatpush1.msra.mxu0 %v195
    %3418 = vmatprep.subr.mxu0 0.0
    %3419 = vmatpush1.msra.mxu0 %v198
    %3420 = vmatprep.subr.mxu0 0.0
    %3421 = vmatpush1.msra.mxu0 %v201
    %3422 = vmatprep.subr.mxu0 0.0
    %3423 = vmatpush1.msra.mxu0 0.0
    %3424 = vmatprep.subr.mxu0 0.0
    %3425 = vmatpush1.msra.mxu0 0.0
    %3426 = vmatprep.subr.mxu0 0.0
    %3427 = vmatpush1.msra.mxu0 0.0
    %3428 = vmatprep.subr.mxu0 0.0
    %3429 = vmatpush1.msra.mxu0 0.0
    %3430 = vmatprep.subr.mxu0 0.0
    %3431 = vmatpush1.msra.mxu0 0.0
    %3432 = vmatprep.subr.mxu0 0.0
    %3433 = vmatpush1.msra.mxu0 0.0
    %3434 = vmatprep.subr.mxu0 0.0
    %3435 = vmatpush1.msra.mxu0 0.0
    %3436 = vmatprep.subr.mxu0 0.0
    %3437 = vmatpush1.msra.mxu0 0.0
    %3438 = vmatprep.subr.mxu0 0.0
    %3439 = vmatpush1.msra.mxu0 0.0
    %3440 = vmatprep.subr.mxu0 0.0
    %3441 = vmatpush1.msra.mxu0 0.0
    %3442 = vmatprep.subr.mxu0 0.0
    %3443 = vmatpush1.msra.mxu0 0.0
    %3444 = vmatprep.subr.mxu0 0.0
    %3445 = vmatpush1.msra.mxu0 0.0
    %3446 = vmatprep.subr.mxu0 0.0
    %3447 = vmatpush1.msra.mxu0 0.0
    %3448 = vmatprep.subr.mxu0 0.0
    %3449 = vmatpush1.msra.mxu0 0.0
    %3450 = vmatprep.subr.mxu0 0.0
    %3451 = vmatpush1.msra.mxu0 0.0
    %3452 = vmatprep.subr.mxu0 0.0
    %3453 = vmatpush1.msra.mxu0 0.0
    %3454 = vmatprep.mubr.f32.mxu0 0.0
    %3455 = vmatmul.mubr.f32.gmra.mrb[0].mxu0 %v3005
    %v3456 = vpop.f32.mrb[0].mxu0
    %v3457 = vadd.f32 0.0, %v3456
    %v3458 = vpop.f32.mrb[0].mxu0
    %3459 = vdwg.mxu0
    %v3460 = vadd.f32 %v3245, %v3386
    %v3461 = vxor.u32 %v3460, 2147483648
    %v3462 = vmul.f32 %v3461, 1.442695
    %v3463 = vpow.pop %v3462
    %v3464 = vadd.f32 %v3463, 1.0
    %v3465 = vrcp.pop %v3464
    %v3466 = vmul.f32 1.0, %v3465
    %v3467 = vadd.f32 %v3247, %v3388
    %v3468 = vxor.u32 %v3467, 2147483648
    %v3469 = vmul.f32 %v3468, 1.442695
    %v3470 = vpow.pop %v3469
    %v3471 = vadd.f32 %v3470, 1.0
    %v3472 = vrcp.pop %v3471
    %v3473 = vmul.f32 1.0, %v3472
    %v3474 = vadd.f32 %v3457, %v611
    %v3475 = vmul.f32 %v3466, %v3474
    %v3476 = vadd.f32 %v3316, %v3475
    %v3477 = vtanh.pop %v3476
    %v3478 = vsub.f32 1.0, %v3473
    %v3479 = vmul.f32 %v3478, %v3477
    %v3480 = vmul.f32 %v3473, %v3005
    %v3481 = vadd.f32 %v3479, %v3480
    %3482 = vmatprep.subr.mxu0 0.0
    %3483 = vmatpush1.msra.mxu0 %v204
    %3484 = vmatprep.subr.mxu0 0.0
    %3485 = vmatpush1.msra.mxu0 %v205
    %3486 = vmatprep.subr.mxu0 0.0
    %3487 = vmatpush1.msra.mxu0 %v206
    %3488 = vmatprep.subr.mxu0 0.0
    %3489 = vmatpush1.msra.mxu0 %v207
    %3490 = vmatprep.subr.mxu0 0.0
    %3491 = vmatpush1.msra.mxu0 %v208
    %3492 = vmatprep.subr.mxu0 0.0
    %3493 = vmatpush1.msra.mxu0 %v209
    %3494 = vmatprep.subr.mxu0 0.0
    %3495 = vmatpush1.msra.mxu0 %v210
    %3496 = vmatprep.subr.mxu0 0.0
    %3497 = vmatpush1.msra.mxu0 %v211
    %3498 = vmatprep.subr.mxu0 0.0
    %3499 = vmatpush1.msra.mxu0 %v212
    %3500 = vmatprep.subr.mxu0 0.0
    %3501 = vmatpush1.msra.mxu0 %v213
    %3502 = vmatprep.subr.mxu0 0.0
    %3503 = vmatpush1.msra.mxu0 %v214
    %3504 = vmatprep.subr.mxu0 0.0
    %3505 = vmatpush1.msra.mxu0 %v215
    %3506 = vmatprep.subr.mxu0 0.0
    %3507 = vmatpush1.msra.mxu0 %v216
    %3508 = vmatprep.subr.mxu0 0.0
    %3509 = vmatpush1.msra.mxu0 %v217
    %3510 = vmatprep.subr.mxu0 0.0
    %3511 = vmatpush1.msra.mxu0 %v218
    %3512 = vmatprep.subr.mxu0 0.0
    %3513 = vmatpush1.msra.mxu0 %v219
    %3514 = vmatprep.subr.mxu0 0.0
    %3515 = vmatpush1.msra.mxu0 0.0
    %3516 = vmatprep.subr.mxu0 0.0
    %3517 = vmatpush1.msra.mxu0 0.0
    %3518 = vmatprep.subr.mxu0 0.0
    %3519 = vmatpush1.msra.mxu0 0.0
    %3520 = vmatprep.subr.mxu0 0.0
    %3521 = vmatpush1.msra.mxu0 0.0
    %3522 = vmatprep.subr.mxu0 0.0
    %3523 = vmatpush1.msra.mxu0 0.0
    %3524 = vmatprep.subr.mxu0 0.0
    %3525 = vmatpush1.msra.mxu0 0.0
    %3526 = vmatprep.subr.mxu0 0.0
    %3527 = vmatpush1.msra.mxu0 0.0
    %3528 = vmatprep.subr.mxu0 0.0
    %3529 = vmatpush1.msra.mxu0 0.0
    %3530 = vmatprep.subr.mxu0 0.0
    %3531 = vmatpush1.msra.mxu0 0.0
    %3532 = vmatprep.subr.mxu0 0.0
    %3533 = vmatpush1.msra.mxu0 0.0
    %3534 = vmatprep.subr.mxu0 0.0
    %3535 = vmatpush1.msra.mxu0 0.0
    %3536 = vmatprep.subr.mxu0 0.0
    %3537 = vmatpush1.msra.mxu0 0.0
    %3538 = vmatprep.subr.mxu0 0.0
    %3539 = vmatpush1.msra.mxu0 0.0
    %3540 = vmatprep.subr.mxu0 0.0
    %3541 = vmatpush1.msra.mxu0 0.0
    %3542 = vmatprep.subr.mxu0 0.0
    %3543 = vmatpush1.msra.mxu0 0.0
    %3544 = vmatprep.subr.mxu0 0.0
    %3545 = vmatpush1.msra.mxu0 0.0
    %3546 = vmatprep.mubr.f32.mxu0 0.0
    %3547 = vmatmul.mubr.f32.gmra.mrb[0].mxu0 %v3481
    %v3548 = vpop.f32.mrb[0].mxu0
    %v3549 = vadd.f32 %v625, %v3548
    %v3550 = vpop.f32.mrb[0].mxu0
    %3551 = vdwg.mxu0
    %3552 = vmax.xlane.f32.xlu0 %v3549
    %v3553 = vpop.xlane.xlu0 %3552
    %v3554 = vsub.f32 %v3549, %v3553
    %v3555 = vmul.f32 %v3554, 1.442695
    %v3556 = vpow.pop %v3555
    %3557 = vadd.xlane.f32.xlu0 %v3556
    %v3558 = vpop.xlane.xlu0 %3557
    %v3559 = vlog2.pop %v3558
    %v3560 = vmul.f32 %v3559, 0.6931472
    %v3561 = vadd.f32 %v3560, %v3553
    %v3562 = vsub.f32 %v3549, %v3561
    %s3563 = scalar_lea.vmem [#allocation10], 48
    %3564 = vst [vmem:[%s3563] sm:$0xff] %v3562
    %vm3565 = vcmp.eq.f32.partialorder %v3549, %v3553
    %v3566 = vsel %vm3565, %v89, 128
    %v3567 = vand.u32 %v3566, 65535
    %v3568 = vshra.s32 %v3566, 16
    %v3569 = vcvt.s32.f32 %v3567
    %v3570 = vcvt.s32.f32 %v3568
    %3571 = vmin.xlane.f32.xlu0 %v3570
    %v3572 = vpop.xlane.xlu0 %3571
    %vm3573 = vcmp.eq.f32.partialorder %v3570, %v3572
    %v3574 = vsel %vm3573, %v3569, inf
    %3575 = vmin.xlane.f32.xlu0 %v3574
    %v3576 = vpop.xlane.xlu0 %3575
    %v3577 = vcvt.f32.s32 %v3576
    %v3578 = vcvt.f32.s32 %v3572
    %v3579 = vshll.u32 %v3578, 16
    %v3580 = vadd.s32 %v3579, %v3577
    %vm3581 = vcmp.eq.s32.totalorder %v89, %v3580
    %v3582 = vsel %vm3581, 1.0, 0.0
    %3583 = vmatprep.subr.mxu0 0.0
    %3584 = vmatpush1.msra.mxu0 %v90
    %3585 = vmatprep.subr.mxu0 0.0
    %3586 = vmatpush1.msra.mxu0 %v91
    %3587 = vmatprep.subr.mxu0 0.0
    %3588 = vmatpush1.msra.mxu0 %v92
    %3589 = vmatprep.subr.mxu0 0.0
    %3590 = vmatpush1.msra.mxu0 %v93
    %3591 = vmatprep.subr.mxu0 0.0
    %3592 = vmatpush1.msra.mxu0 %v94
    %3593 = vmatprep.subr.mxu0 0.0
    %3594 = vmatpush1.msra.mxu0 %v95
    %3595 = vmatprep.subr.mxu0 0.0
    %3596 = vmatpush1.msra.mxu0 %v96
    %3597 = vmatprep.subr.mxu0 0.0
    %3598 = vmatpush1.msra.mxu0 %v97
    %3599 = vmatprep.subr.mxu0 0.0
    %3600 = vmatpush1.msra.mxu0 %v98
    %3601 = vmatprep.subr.mxu0 0.0
    %3602 = vmatpush1.msra.mxu0 %v99
    %3603 = vmatprep.subr.mxu0 0.0
    %3604 = vmatpush1.msra.mxu0 %v100
    %3605 = vmatprep.subr.mxu0 0.0
    %3606 = vmatpush1.msra.mxu0 %v101
    %3607 = vmatprep.subr.mxu0 0.0
    %3608 = vmatpush1.msra.mxu0 %v102
    %3609 = vmatprep.subr.mxu0 0.0
    %3610 = vmatpush1.msra.mxu0 %v103
    %3611 = vmatprep.subr.mxu0 0.0
    %3612 = vmatpush1.msra.mxu0 %v104
    %3613 = vmatprep.subr.mxu0 0.0
    %3614 = vmatpush1.msra.mxu0 %v105
    %3615 = vmatprep.subr.mxu0 0.0
    %3616 = vmatpush1.msra.mxu0 0.0
    %3617 = vmatprep.subr.mxu0 0.0
    %3618 = vmatpush1.msra.mxu0 0.0
    %3619 = vmatprep.subr.mxu0 0.0
    %3620 = vmatpush1.msra.mxu0 0.0
    %3621 = vmatprep.subr.mxu0 0.0
    %3622 = vmatpush1.msra.mxu0 0.0
    %3623 = vmatprep.subr.mxu0 0.0
    %3624 = vmatpush1.msra.mxu0 0.0
    %3625 = vmatprep.subr.mxu0 0.0
    %3626 = vmatpush1.msra.mxu0 0.0
    %3627 = vmatprep.subr.mxu0 0.0
    %3628 = vmatpush1.msra.mxu0 0.0
    %3629 = vmatprep.subr.mxu0 0.0
    %3630 = vmatpush1.msra.mxu0 0.0
    %3631 = vmatprep.subr.mxu0 0.0
    %3632 = vmatpush1.msra.mxu0 0.0
    %3633 = vmatprep.subr.mxu0 0.0
    %3634 = vmatpush1.msra.mxu0 0.0
    %3635 = vmatprep.subr.mxu0 0.0
    %3636 = vmatpush1.msra.mxu0 0.0
    %3637 = vmatprep.subr.mxu0 0.0
    %3638 = vmatpush1.msra.mxu0 0.0
    %3639 = vmatprep.subr.mxu0 0.0
    %3640 = vmatpush1.msra.mxu0 0.0
    %3641 = vmatprep.subr.mxu0 0.0
    %3642 = vmatpush1.msra.mxu0 0.0
    %3643 = vmatprep.subr.mxu0 0.0
    %3644 = vmatpush1.msra.mxu0 0.0
    %3645 = vmatprep.subr.mxu0 0.0
    %3646 = vmatpush1.msra.mxu0 0.0
    %3647 = vmatprep.mubr.f32.mxu0 0.0
    %3648 = vmatmul.mubr.f32.gmra.mrb[0].mxu0 %v3582
    %v3649 = vpop.f32.mrb[0].mxu0
    %v3650 = vadd.f32 0.0, %v3649
    %v3651 = vpop.f32.mrb[0].mxu0
    %3652 = vdwg.mxu0
    %v3653 = vmax.f32 %v3650, 0.0
    %3654 = vmatprep.subr.mxu0 %v107
    %3655 = vmatpush1.msra.mxu0 %v106
    %3656 = vmatprep.subr.mxu0 %v110
    %3657 = vmatpush1.msra.mxu0 %v109
    %3658 = vmatprep.subr.mxu0 %v113
    %3659 = vmatpush1.msra.mxu0 %v112
    %3660 = vmatprep.subr.mxu0 %v116
    %3661 = vmatpush1.msra.mxu0 %v115
    %3662 = vmatprep.subr.mxu0 %v119
    %3663 = vmatpush1.msra.mxu0 %v118
    %3664 = vmatprep.subr.mxu0 %v122
    %3665 = vmatpush1.msra.mxu0 %v121
    %3666 = vmatprep.subr.mxu0 %v125
    %3667 = vmatpush1.msra.mxu0 %v124
    %3668 = vmatprep.subr.mxu0 %v128
    %3669 = vmatpush1.msra.mxu0 %v127
    %3670 = vmatprep.subr.mxu0 %v131
    %3671 = vmatpush1.msra.mxu0 %v130
    %3672 = vmatprep.subr.mxu0 %v134
    %3673 = vmatpush1.msra.mxu0 %v133
    %3674 = vmatprep.subr.mxu0 %v137
    %3675 = vmatpush1.msra.mxu0 %v136
    %3676 = vmatprep.subr.mxu0 %v140
    %3677 = vmatpush1.msra.mxu0 %v139
    %3678 = vmatprep.subr.mxu0 %v143
    %3679 = vmatpush1.msra.mxu0 %v142
    %3680 = vmatprep.subr.mxu0 %v146
    %3681 = vmatpush1.msra.mxu0 %v145
    %3682 = vmatprep.subr.mxu0 %v149
    %3683 = vmatpush1.msra.mxu0 %v148
    %3684 = vmatprep.subr.mxu0 %v152
    %3685 = vmatpush1.msra.mxu0 %v151
    %3686 = vmatprep.subr.mxu0 0.0
    %3687 = vmatpush1.msra.mxu0 0.0
    %3688 = vmatprep.subr.mxu0 0.0
    %3689 = vmatpush1.msra.mxu0 0.0
    %3690 = vmatprep.subr.mxu0 0.0
    %3691 = vmatpush1.msra.mxu0 0.0
    %3692 = vmatprep.subr.mxu0 0.0
    %3693 = vmatpush1.msra.mxu0 0.0
    %3694 = vmatprep.subr.mxu0 0.0
    %3695 = vmatpush1.msra.mxu0 0.0
    %3696 = vmatprep.subr.mxu0 0.0
    %3697 = vmatpush1.msra.mxu0 0.0
    %3698 = vmatprep.subr.mxu0 0.0
    %3699 = vmatpush1.msra.mxu0 0.0
    %3700 = vmatprep.subr.mxu0 0.0
    %3701 = vmatpush1.msra.mxu0 0.0
    %3702 = vmatprep.subr.mxu0 0.0
    %3703 = vmatpush1.msra.mxu0 0.0
    %3704 = vmatprep.subr.mxu0 0.0
    %3705 = vmatpush1.msra.mxu0 0.0
    %3706 = vmatprep.subr.mxu0 0.0
    %3707 = vmatpush1.msra.mxu0 0.0
    %3708 = vmatprep.subr.mxu0 0.0
    %3709 = vmatpush1.msra.mxu0 0.0
    %3710 = vmatprep.subr.mxu0 0.0
    %3711 = vmatpush1.msra.mxu0 0.0
    %3712 = vmatprep.subr.mxu0 0.0
    %3713 = vmatpush1.msra.mxu0 0.0
    %3714 = vmatprep.subr.mxu0 0.0
    %3715 = vmatpush1.msra.mxu0 0.0
    %3716 = vmatprep.subr.mxu0 0.0
    %3717 = vmatpush1.msra.mxu0 0.0
    %3718 = vmatprep.mubr.f32.mxu0 0.0
    %3719 = vmatmul.mubr.f32.gmra.mrb[0].mxu0 %v3653
    %v3720 = vpop.f32.mrb[0].mxu0
    %v3721 = vadd.f32 %v299, %v3720
    %v3722 = vpop.f32.mrb[0].mxu0
    %v3723 = vadd.f32 %v303, %v3722
    %3724 = vdwg.mxu0
    %3725 = vmatprep.subr.mxu0 0.0
    %3726 = vmatpush1.msra.mxu0 %v108
    %3727 = vmatprep.subr.mxu0 0.0
    %3728 = vmatpush1.msra.mxu0 %v111
    %3729 = vmatprep.subr.mxu0 0.0
    %3730 = vmatpush1.msra.mxu0 %v114
    %3731 = vmatprep.subr.mxu0 0.0
    %3732 = vmatpush1.msra.mxu0 %v117
    %3733 = vmatprep.subr.mxu0 0.0
    %3734 = vmatpush1.msra.mxu0 %v120
    %3735 = vmatprep.subr.mxu0 0.0
    %3736 = vmatpush1.msra.mxu0 %v123
    %3737 = vmatprep.subr.mxu0 0.0
    %3738 = vmatpush1.msra.mxu0 %v126
    %3739 = vmatprep.subr.mxu0 0.0
    %3740 = vmatpush1.msra.mxu0 %v129
    %3741 = vmatprep.subr.mxu0 0.0
    %3742 = vmatpush1.msra.mxu0 %v132
    %3743 = vmatprep.subr.mxu0 0.0
    %3744 = vmatpush1.msra.mxu0 %v135
    %3745 = vmatprep.subr.mxu0 0.0
    %3746 = vmatpush1.msra.mxu0 %v138
    %3747 = vmatprep.subr.mxu0 0.0
    %3748 = vmatpush1.msra.mxu0 %v141
    %3749 = vmatprep.subr.mxu0 0.0
    %3750 = vmatpush1.msra.mxu0 %v144
    %3751 = vmatprep.subr.mxu0 0.0
    %3752 = vmatpush1.msra.mxu0 %v147
    %3753 = vmatprep.subr.mxu0 0.0
    %3754 = vmatpush1.msra.mxu0 %v150
    %3755 = vmatprep.subr.mxu0 0.0
    %3756 = vmatpush1.msra.mxu0 %v153
    %3757 = vmatprep.subr.mxu0 0.0
    %3758 = vmatpush1.msra.mxu0 0.0
    %3759 = vmatprep.subr.mxu0 0.0
    %3760 = vmatpush1.msra.mxu0 0.0
    %3761 = vmatprep.subr.mxu0 0.0
    %3762 = vmatpush1.msra.mxu0 0.0
    %3763 = vmatprep.subr.mxu0 0.0
    %3764 = vmatpush1.msra.mxu0 0.0
    %3765 = vmatprep.subr.mxu0 0.0
    %3766 = vmatpush1.msra.mxu0 0.0
    %3767 = vmatprep.subr.mxu0 0.0
    %3768 = vmatpush1.msra.mxu0 0.0
    %3769 = vmatprep.subr.mxu0 0.0
    %3770 = vmatpush1.msra.mxu0 0.0
    %3771 = vmatprep.subr.mxu0 0.0
    %3772 = vmatpush1.msra.mxu0 0.0
    %3773 = vmatprep.subr.mxu0 0.0
    %3774 = vmatpush1.msra.mxu0 0.0
    %3775 = vmatprep.subr.mxu0 0.0
    %3776 = vmatpush1.msra.mxu0 0.0
    %3777 = vmatprep.subr.mxu0 0.0
    %3778 = vmatpush1.msra.mxu0 0.0
    %3779 = vmatprep.subr.mxu0 0.0
    %3780 = vmatpush1.msra.mxu0 0.0
    %3781 = vmatprep.subr.mxu0 0.0
    %3782 = vmatpush1.msra.mxu0 0.0
    %3783 = vmatprep.subr.mxu0 0.0
    %3784 = vmatpush1.msra.mxu0 0.0
    %3785 = vmatprep.subr.mxu0 0.0
    %3786 = vmatpush1.msra.mxu0 0.0
    %3787 = vmatprep.subr.mxu0 0.0
    %3788 = vmatpush1.msra.mxu0 0.0
    %3789 = vmatprep.mubr.f32.mxu0 0.0
    %3790 = vmatmul.mubr.f32.gmra.mrb[0].mxu0 %v3653
    %v3791 = vpop.f32.mrb[0].mxu0
    %v3792 = vadd.f32 %v307, %v3791
    %v3793 = vpop.f32.mrb[0].mxu0
    %3794 = vdwg.mxu0
    %3795 = vmatprep.subr.mxu0 %v155
    %3796 = vmatpush1.msra.mxu0 %v154
    %3797 = vmatprep.subr.mxu0 %v158
    %3798 = vmatpush1.msra.mxu0 %v157
    %3799 = vmatprep.subr.mxu0 %v161
    %3800 = vmatpush1.msra.mxu0 %v160
    %3801 = vmatprep.subr.mxu0 %v164
    %3802 = vmatpush1.msra.mxu0 %v163
    %3803 = vmatprep.subr.mxu0 %v167
    %3804 = vmatpush1.msra.mxu0 %v166
    %3805 = vmatprep.subr.mxu0 %v170
    %3806 = vmatpush1.msra.mxu0 %v169
    %3807 = vmatprep.subr.mxu0 %v173
    %3808 = vmatpush1.msra.mxu0 %v172
    %3809 = vmatprep.subr.mxu0 %v176
    %3810 = vmatpush1.msra.mxu0 %v175
    %3811 = vmatprep.subr.mxu0 %v179
    %3812 = vmatpush1.msra.mxu0 %v178
    %3813 = vmatprep.subr.mxu0 %v182
    %3814 = vmatpush1.msra.mxu0 %v181
    %3815 = vmatprep.subr.mxu0 %v185
    %3816 = vmatpush1.msra.mxu0 %v184
    %3817 = vmatprep.subr.mxu0 %v188
    %3818 = vmatpush1.msra.mxu0 %v187
    %3819 = vmatprep.subr.mxu0 %v191
    %3820 = vmatpush1.msra.mxu0 %v190
    %3821 = vmatprep.subr.mxu0 %v194
    %3822 = vmatpush1.msra.mxu0 %v193
    %3823 = vmatprep.subr.mxu0 %v197
    %3824 = vmatpush1.msra.mxu0 %v196
    %3825 = vmatprep.subr.mxu0 %v200
    %3826 = vmatpush1.msra.mxu0 %v199
    %3827 = vmatprep.subr.mxu0 0.0
    %3828 = vmatpush1.msra.mxu0 0.0
    %3829 = vmatprep.subr.mxu0 0.0
    %3830 = vmatpush1.msra.mxu0 0.0
    %3831 = vmatprep.subr.mxu0 0.0
    %3832 = vmatpush1.msra.mxu0 0.0
    %3833 = vmatprep.subr.mxu0 0.0
    %3834 = vmatpush1.msra.mxu0 0.0
    %3835 = vmatprep.subr.mxu0 0.0
    %3836 = vmatpush1.msra.mxu0 0.0
    %3837 = vmatprep.subr.mxu0 0.0
    %3838 = vmatpush1.msra.mxu0 0.0
    %3839 = vmatprep.subr.mxu0 0.0
    %3840 = vmatpush1.msra.mxu0 0.0
    %3841 = vmatprep.subr.mxu0 0.0
    %3842 = vmatpush1.msra.mxu0 0.0
    %3843 = vmatprep.subr.mxu0 0.0
    %3844 = vmatpush1.msra.mxu0 0.0
    %3845 = vmatprep.subr.mxu0 0.0
    %3846 = vmatpush1.msra.mxu0 0.0
    %3847 = vmatprep.subr.mxu0 0.0
    %3848 = vmatpush1.msra.mxu0 0.0
    %3849 = vmatprep.subr.mxu0 0.0
    %3850 = vmatpush1.msra.mxu0 0.0
    %3851 = vmatprep.subr.mxu0 0.0
    %3852 = vmatpush1.msra.mxu0 0.0
    %3853 = vmatprep.subr.mxu0 0.0
    %3854 = vmatpush1.msra.mxu0 0.0
    %3855 = vmatprep.subr.mxu0 0.0
    %3856 = vmatpush1.msra.mxu0 0.0
    %3857 = vmatprep.subr.mxu0 0.0
    %3858 = vmatpush1.msra.mxu0 0.0
    %3859 = vmatprep.mubr.f32.mxu0 0.0
    %3860 = vmatmul.mubr.f32.gmra.mrb[0].mxu0 %v3481
    %v3861 = vpop.f32.mrb[0].mxu0
    %v3862 = vadd.f32 0.0, %v3861
    %v3863 = vpop.f32.mrb[0].mxu0
    %v3864 = vadd.f32 0.0, %v3863
    %3865 = vdwg.mxu0
    %3866 = vmatprep.subr.mxu0 0.0
    %3867 = vmatpush1.msra.mxu0 %v156
    %3868 = vmatprep.subr.mxu0 0.0
    %3869 = vmatpush1.msra.mxu0 %v159
    %3870 = vmatprep.subr.mxu0 0.0
    %3871 = vmatpush1.msra.mxu0 %v162
    %3872 = vmatprep.subr.mxu0 0.0
    %3873 = vmatpush1.msra.mxu0 %v165
    %3874 = vmatprep.subr.mxu0 0.0
    %3875 = vmatpush1.msra.mxu0 %v168
    %3876 = vmatprep.subr.mxu0 0.0
    %3877 = vmatpush1.msra.mxu0 %v171
    %3878 = vmatprep.subr.mxu0 0.0
    %3879 = vmatpush1.msra.mxu0 %v174
    %3880 = vmatprep.subr.mxu0 0.0
    %3881 = vmatpush1.msra.mxu0 %v177
    %3882 = vmatprep.subr.mxu0 0.0
    %3883 = vmatpush1.msra.mxu0 %v180
    %3884 = vmatprep.subr.mxu0 0.0
    %3885 = vmatpush1.msra.mxu0 %v183
    %3886 = vmatprep.subr.mxu0 0.0
    %3887 = vmatpush1.msra.mxu0 %v186
    %3888 = vmatprep.subr.mxu0 0.0
    %3889 = vmatpush1.msra.mxu0 %v189
    %3890 = vmatprep.subr.mxu0 0.0
    %3891 = vmatpush1.msra.mxu0 %v192
    %3892 = vmatprep.subr.mxu0 0.0
    %3893 = vmatpush1.msra.mxu0 %v195
    %3894 = vmatprep.subr.mxu0 0.0
    %3895 = vmatpush1.msra.mxu0 %v198
    %3896 = vmatprep.subr.mxu0 0.0
    %3897 = vmatpush1.msra.mxu0 %v201
    %3898 = vmatprep.subr.mxu0 0.0
    %3899 = vmatpush1.msra.mxu0 0.0
    %3900 = vmatprep.subr.mxu0 0.0
    %3901 = vmatpush1.msra.mxu0 0.0
    %3902 = vmatprep.subr.mxu0 0.0
    %3903 = vmatpush1.msra.mxu0 0.0
    %3904 = vmatprep.subr.mxu0 0.0
    %3905 = vmatpush1.msra.mxu0 0.0
    %3906 = vmatprep.subr.mxu0 0.0
    %3907 = vmatpush1.msra.mxu0 0.0
    %3908 = vmatprep.subr.mxu0 0.0
    %3909 = vmatpush1.msra.mxu0 0.0
    %3910 = vmatprep.subr.mxu0 0.0
    %3911 = vmatpush1.msra.mxu0 0.0
    %3912 = vmatprep.subr.mxu0 0.0
    %3913 = vmatpush1.msra.mxu0 0.0
    %3914 = vmatprep.subr.mxu0 0.0
    %3915 = vmatpush1.msra.mxu0 0.0
    %3916 = vmatprep.subr.mxu0 0.0
    %3917 = vmatpush1.msra.mxu0 0.0
    %3918 = vmatprep.subr.mxu0 0.0
    %3919 = vmatpush1.msra.mxu0 0.0
    %3920 = vmatprep.subr.mxu0 0.0
    %3921 = vmatpush1.msra.mxu0 0.0
    %3922 = vmatprep.subr.mxu0 0.0
    %3923 = vmatpush1.msra.mxu0 0.0
    %3924 = vmatprep.subr.mxu0 0.0
    %3925 = vmatpush1.msra.mxu0 0.0
    %3926 = vmatprep.subr.mxu0 0.0
    %3927 = vmatpush1.msra.mxu0 0.0
    %3928 = vmatprep.subr.mxu0 0.0
    %3929 = vmatpush1.msra.mxu0 0.0
    %3930 = vmatprep.mubr.f32.mxu0 0.0
    %3931 = vmatmul.mubr.f32.gmra.mrb[0].mxu0 %v3481
    %v3932 = vpop.f32.mrb[0].mxu0
    %v3933 = vadd.f32 0.0, %v3932
    %v3934 = vpop.f32.mrb[0].mxu0
    %3935 = vdwg.mxu0
    %v3936 = vadd.f32 %v3721, %v3862
    %v3937 = vxor.u32 %v3936, 2147483648
    %v3938 = vmul.f32 %v3937, 1.442695
    %v3939 = vpow.pop %v3938
    %v3940 = vadd.f32 %v3939, 1.0
    %v3941 = vrcp.pop %v3940
    %v3942 = vmul.f32 1.0, %v3941
    %v3943 = vadd.f32 %v3723, %v3864
    %v3944 = vxor.u32 %v3943, 2147483648
    %v3945 = vmul.f32 %v3944, 1.442695
    %v3946 = vpow.pop %v3945
    %v3947 = vadd.f32 %v3946, 1.0
    %v3948 = vrcp.pop %v3947
    %v3949 = vmul.f32 1.0, %v3948
    %v3950 = vadd.f32 %v3933, %v611
    %v3951 = vmul.f32 %v3942, %v3950
    %v3952 = vadd.f32 %v3792, %v3951
    %v3953 = vtanh.pop %v3952
    %v3954 = vsub.f32 1.0, %v3949
    %v3955 = vmul.f32 %v3954, %v3953
    %v3956 = vmul.f32 %v3949, %v3481
    %v3957 = vadd.f32 %v3955, %v3956
    %3958 = vmatprep.subr.mxu0 0.0
    %3959 = vmatpush1.msra.mxu0 %v204
    %3960 = vmatprep.subr.mxu0 0.0
    %3961 = vmatpush1.msra.mxu0 %v205
    %3962 = vmatprep.subr.mxu0 0.0
    %3963 = vmatpush1.msra.mxu0 %v206
    %3964 = vmatprep.subr.mxu0 0.0
    %3965 = vmatpush1.msra.mxu0 %v207
    %3966 = vmatprep.subr.mxu0 0.0
    %3967 = vmatpush1.msra.mxu0 %v208
    %3968 = vmatprep.subr.mxu0 0.0
    %3969 = vmatpush1.msra.mxu0 %v209
    %3970 = vmatprep.subr.mxu0 0.0
    %3971 = vmatpush1.msra.mxu0 %v210
    %3972 = vmatprep.subr.mxu0 0.0
    %3973 = vmatpush1.msra.mxu0 %v211
    %3974 = vmatprep.subr.mxu0 0.0
    %3975 = vmatpush1.msra.mxu0 %v212
    %3976 = vmatprep.subr.mxu0 0.0
    %3977 = vmatpush1.msra.mxu0 %v213
    %3978 = vmatprep.subr.mxu0 0.0
    %3979 = vmatpush1.msra.mxu0 %v214
    %3980 = vmatprep.subr.mxu0 0.0
    %3981 = vmatpush1.msra.mxu0 %v215
    %3982 = vmatprep.subr.mxu0 0.0
    %3983 = vmatpush1.msra.mxu0 %v216
    %3984 = vmatprep.subr.mxu0 0.0
    %3985 = vmatpush1.msra.mxu0 %v217
    %3986 = vmatprep.subr.mxu0 0.0
    %3987 = vmatpush1.msra.mxu0 %v218
    %3988 = vmatprep.subr.mxu0 0.0
    %3989 = vmatpush1.msra.mxu0 %v219
    %3990 = vmatprep.subr.mxu0 0.0
    %3991 = vmatpush1.msra.mxu0 0.0
    %3992 = vmatprep.subr.mxu0 0.0
    %3993 = vmatpush1.msra.mxu0 0.0
    %3994 = vmatprep.subr.mxu0 0.0
    %3995 = vmatpush1.msra.mxu0 0.0
    %3996 = vmatprep.subr.mxu0 0.0
    %3997 = vmatpush1.msra.mxu0 0.0
    %3998 = vmatprep.subr.mxu0 0.0
    %3999 = vmatpush1.msra.mxu0 0.0
    %4000 = vmatprep.subr.mxu0 0.0
    %4001 = vmatpush1.msra.mxu0 0.0
    %4002 = vmatprep.subr.mxu0 0.0
    %4003 = vmatpush1.msra.mxu0 0.0
    %4004 = vmatprep.subr.mxu0 0.0
    %4005 = vmatpush1.msra.mxu0 0.0
    %4006 = vmatprep.subr.mxu0 0.0
    %4007 = vmatpush1.msra.mxu0 0.0
    %4008 = vmatprep.subr.mxu0 0.0
    %4009 = vmatpush1.msra.mxu0 0.0
    %4010 = vmatprep.subr.mxu0 0.0
    %4011 = vmatpush1.msra.mxu0 0.0
    %4012 = vmatprep.subr.mxu0 0.0
    %4013 = vmatpush1.msra.mxu0 0.0
    %4014 = vmatprep.subr.mxu0 0.0
    %4015 = vmatpush1.msra.mxu0 0.0
    %4016 = vmatprep.subr.mxu0 0.0
    %4017 = vmatpush1.msra.mxu0 0.0
    %4018 = vmatprep.subr.mxu0 0.0
    %4019 = vmatpush1.msra.mxu0 0.0
    %4020 = vmatprep.subr.mxu0 0.0
    %4021 = vmatpush1.msra.mxu0 0.0
    %4022 = vmatprep.mubr.f32.mxu0 0.0
    %4023 = vmatmul.mubr.f32.gmra.mrb[0].mxu0 %v3957
    %v4024 = vpop.f32.mrb[0].mxu0
    %v4025 = vadd.f32 %v625, %v4024
    %v4026 = vpop.f32.mrb[0].mxu0
    %4027 = vdwg.mxu0
    %4028 = vmax.xlane.f32.xlu0 %v4025
    %v4029 = vpop.xlane.xlu0 %4028
    %v4030 = vsub.f32 %v4025, %v4029
    %v4031 = vmul.f32 %v4030, 1.442695
    %v4032 = vpow.pop %v4031
    %4033 = vadd.xlane.f32.xlu0 %v4032
    %v4034 = vpop.xlane.xlu0 %4033
    %v4035 = vlog2.pop %v4034
    %v4036 = vmul.f32 %v4035, 0.6931472
    %v4037 = vadd.f32 %v4036, %v4029
    %v4038 = vsub.f32 %v4025, %v4037
    %s4039 = scalar_lea.vmem [#allocation10], 56
    %4040 = vst [vmem:[%s4039] sm:$0xff] %v4038
    %vm4041 = vcmp.eq.f32.partialorder %v4025, %v4029
    %v4042 = vsel %vm4041, %v89, 128
    %v4043 = vand.u32 %v4042, 65535
    %v4044 = vshra.s32 %v4042, 16
    %v4045 = vcvt.s32.f32 %v4043
    %v4046 = vcvt.s32.f32 %v4044
    %4047 = vmin.xlane.f32.xlu0 %v4046
    %v4048 = vpop.xlane.xlu0 %4047
    %vm4049 = vcmp.eq.f32.partialorder %v4046, %v4048
    %v4050 = vsel %vm4049, %v4045, inf
    %4051 = vmin.xlane.f32.xlu0 %v4050
    %v4052 = vpop.xlane.xlu0 %4051
    %v4053 = vcvt.f32.s32 %v4052
    %v4054 = vcvt.f32.s32 %v4048
    %v4055 = vshll.u32 %v4054, 16
    %v4056 = vadd.s32 %v4055, %v4053
    %vm4057 = vcmp.eq.s32.totalorder %v89, %v4056
    %v4058 = vsel %vm4057, 1.0, 0.0
    %4059 = vmatprep.subr.mxu0 0.0
    %4060 = vmatpush1.msra.mxu0 %v90
    %4061 = vmatprep.subr.mxu0 0.0
    %4062 = vmatpush1.msra.mxu0 %v91
    %4063 = vmatprep.subr.mxu0 0.0
    %4064 = vmatpush1.msra.mxu0 %v92
    %4065 = vmatprep.subr.mxu0 0.0
    %4066 = vmatpush1.msra.mxu0 %v93
    %4067 = vmatprep.subr.mxu0 0.0
    %4068 = vmatpush1.msra.mxu0 %v94
    %4069 = vmatprep.subr.mxu0 0.0
    %4070 = vmatpush1.msra.mxu0 %v95
    %4071 = vmatprep.subr.mxu0 0.0
    %4072 = vmatpush1.msra.mxu0 %v96
    %4073 = vmatprep.subr.mxu0 0.0
    %4074 = vmatpush1.msra.mxu0 %v97
    %4075 = vmatprep.subr.mxu0 0.0
    %4076 = vmatpush1.msra.mxu0 %v98
    %4077 = vmatprep.subr.mxu0 0.0
    %4078 = vmatpush1.msra.mxu0 %v99
    %4079 = vmatprep.subr.mxu0 0.0
    %4080 = vmatpush1.msra.mxu0 %v100
    %4081 = vmatprep.subr.mxu0 0.0
    %4082 = vmatpush1.msra.mxu0 %v101
    %4083 = vmatprep.subr.mxu0 0.0
    %4084 = vmatpush1.msra.mxu0 %v102
    %4085 = vmatprep.subr.mxu0 0.0
    %4086 = vmatpush1.msra.mxu0 %v103
    %4087 = vmatprep.subr.mxu0 0.0
    %4088 = vmatpush1.msra.mxu0 %v104
    %4089 = vmatprep.subr.mxu0 0.0
    %4090 = vmatpush1.msra.mxu0 %v105
    %4091 = vmatprep.subr.mxu0 0.0
    %4092 = vmatpush1.msra.mxu0 0.0
    %4093 = vmatprep.subr.mxu0 0.0
    %4094 = vmatpush1.msra.mxu0 0.0
    %4095 = vmatprep.subr.mxu0 0.0
    %4096 = vmatpush1.msra.mxu0 0.0
    %4097 = vmatprep.subr.mxu0 0.0
    %4098 = vmatpush1.msra.mxu0 0.0
    %4099 = vmatprep.subr.mxu0 0.0
    %4100 = vmatpush1.msra.mxu0 0.0
    %4101 = vmatprep.subr.mxu0 0.0
    %4102 = vmatpush1.msra.mxu0 0.0
    %4103 = vmatprep.subr.mxu0 0.0
    %4104 = vmatpush1.msra.mxu0 0.0
    %4105 = vmatprep.subr.mxu0 0.0
    %4106 = vmatpush1.msra.mxu0 0.0
    %4107 = vmatprep.subr.mxu0 0.0
    %4108 = vmatpush1.msra.mxu0 0.0
    %4109 = vmatprep.subr.mxu0 0.0
    %4110 = vmatpush1.msra.mxu0 0.0
    %4111 = vmatprep.subr.mxu0 0.0
    %4112 = vmatpush1.msra.mxu0 0.0
    %4113 = vmatprep.subr.mxu0 0.0
    %4114 = vmatpush1.msra.mxu0 0.0
    %4115 = vmatprep.subr.mxu0 0.0
    %4116 = vmatpush1.msra.mxu0 0.0
    %4117 = vmatprep.subr.mxu0 0.0
    %4118 = vmatpush1.msra.mxu0 0.0
    %4119 = vmatprep.subr.mxu0 0.0
    %4120 = vmatpush1.msra.mxu0 0.0
    %4121 = vmatprep.subr.mxu0 0.0
    %4122 = vmatpush1.msra.mxu0 0.0
    %4123 = vmatprep.mubr.f32.mxu0 0.0
    %4124 = vmatmul.mubr.f32.gmra.mrb[0].mxu0 %v4058
    %v4125 = vpop.f32.mrb[0].mxu0
    %v4126 = vadd.f32 0.0, %v4125
    %v4127 = vpop.f32.mrb[0].mxu0
    %4128 = vdwg.mxu0
    %v4129 = vmax.f32 %v4126, 0.0
    %4130 = vmatprep.subr.mxu0 %v107
    %4131 = vmatpush1.msra.mxu0 %v106
    %4132 = vmatprep.subr.mxu0 %v110
    %4133 = vmatpush1.msra.mxu0 %v109
    %4134 = vmatprep.subr.mxu0 %v113
    %4135 = vmatpush1.msra.mxu0 %v112
    %4136 = vmatprep.subr.mxu0 %v116
    %4137 = vmatpush1.msra.mxu0 %v115
    %4138 = vmatprep.subr.mxu0 %v119
    %4139 = vmatpush1.msra.mxu0 %v118
    %4140 = vmatprep.subr.mxu0 %v122
    %4141 = vmatpush1.msra.mxu0 %v121
    %4142 = vmatprep.subr.mxu0 %v125
    %4143 = vmatpush1.msra.mxu0 %v124
    %4144 = vmatprep.subr.mxu0 %v128
    %4145 = vmatpush1.msra.mxu0 %v127
    %4146 = vmatprep.subr.mxu0 %v131
    %4147 = vmatpush1.msra.mxu0 %v130
    %4148 = vmatprep.subr.mxu0 %v134
    %4149 = vmatpush1.msra.mxu0 %v133
    %4150 = vmatprep.subr.mxu0 %v137
    %4151 = vmatpush1.msra.mxu0 %v136
    %4152 = vmatprep.subr.mxu0 %v140
    %4153 = vmatpush1.msra.mxu0 %v139
    %4154 = vmatprep.subr.mxu0 %v143
    %4155 = vmatpush1.msra.mxu0 %v142
    %4156 = vmatprep.subr.mxu0 %v146
    %4157 = vmatpush1.msra.mxu0 %v145
    %4158 = vmatprep.subr.mxu0 %v149
    %4159 = vmatpush1.msra.mxu0 %v148
    %4160 = vmatprep.subr.mxu0 %v152
    %4161 = vmatpush1.msra.mxu0 %v151
    %4162 = vmatprep.subr.mxu0 0.0
    %4163 = vmatpush1.msra.mxu0 0.0
    %4164 = vmatprep.subr.mxu0 0.0
    %4165 = vmatpush1.msra.mxu0 0.0
    %4166 = vmatprep.subr.mxu0 0.0
    %4167 = vmatpush1.msra.mxu0 0.0
    %4168 = vmatprep.subr.mxu0 0.0
    %4169 = vmatpush1.msra.mxu0 0.0
    %4170 = vmatprep.subr.mxu0 0.0
    %4171 = vmatpush1.msra.mxu0 0.0
    %4172 = vmatprep.subr.mxu0 0.0
    %4173 = vmatpush1.msra.mxu0 0.0
    %4174 = vmatprep.subr.mxu0 0.0
    %4175 = vmatpush1.msra.mxu0 0.0
    %4176 = vmatprep.subr.mxu0 0.0
    %4177 = vmatpush1.msra.mxu0 0.0
    %4178 = vmatprep.subr.mxu0 0.0
    %4179 = vmatpush1.msra.mxu0 0.0
    %4180 = vmatprep.subr.mxu0 0.0
    %4181 = vmatpush1.msra.mxu0 0.0
    %4182 = vmatprep.subr.mxu0 0.0
    %4183 = vmatpush1.msra.mxu0 0.0
    %4184 = vmatprep.subr.mxu0 0.0
    %4185 = vmatpush1.msra.mxu0 0.0
    %4186 = vmatprep.subr.mxu0 0.0
    %4187 = vmatpush1.msra.mxu0 0.0
    %4188 = vmatprep.subr.mxu0 0.0
    %4189 = vmatpush1.msra.mxu0 0.0
    %4190 = vmatprep.subr.mxu0 0.0
    %4191 = vmatpush1.msra.mxu0 0.0
    %4192 = vmatprep.subr.mxu0 0.0
    %4193 = vmatpush1.msra.mxu0 0.0
    %4194 = vmatprep.mubr.f32.mxu0 0.0
    %4195 = vmatmul.mubr.f32.gmra.mrb[0].mxu0 %v4129
    %v4196 = vpop.f32.mrb[0].mxu0
    %v4197 = vadd.f32 %v299, %v4196
    %v4198 = vpop.f32.mrb[0].mxu0
    %v4199 = vadd.f32 %v303, %v4198
    %4200 = vdwg.mxu0
    %4201 = vmatprep.subr.mxu0 0.0
    %4202 = vmatpush1.msra.mxu0 %v108
    %4203 = vmatprep.subr.mxu0 0.0
    %4204 = vmatpush1.msra.mxu0 %v111
    %4205 = vmatprep.subr.mxu0 0.0
    %4206 = vmatpush1.msra.mxu0 %v114
    %4207 = vmatprep.subr.mxu0 0.0
    %4208 = vmatpush1.msra.mxu0 %v117
    %4209 = vmatprep.subr.mxu0 0.0
    %4210 = vmatpush1.msra.mxu0 %v120
    %4211 = vmatprep.subr.mxu0 0.0
    %4212 = vmatpush1.msra.mxu0 %v123
    %4213 = vmatprep.subr.mxu0 0.0
    %4214 = vmatpush1.msra.mxu0 %v126
    %4215 = vmatprep.subr.mxu0 0.0
    %4216 = vmatpush1.msra.mxu0 %v129
    %4217 = vmatprep.subr.mxu0 0.0
    %4218 = vmatpush1.msra.mxu0 %v132
    %4219 = vmatprep.subr.mxu0 0.0
    %4220 = vmatpush1.msra.mxu0 %v135
    %4221 = vmatprep.subr.mxu0 0.0
    %4222 = vmatpush1.msra.mxu0 %v138
    %4223 = vmatprep.subr.mxu0 0.0
    %4224 = vmatpush1.msra.mxu0 %v141
    %4225 = vmatprep.subr.mxu0 0.0
    %4226 = vmatpush1.msra.mxu0 %v144
    %4227 = vmatprep.subr.mxu0 0.0
    %4228 = vmatpush1.msra.mxu0 %v147
    %4229 = vmatprep.subr.mxu0 0.0
    %4230 = vmatpush1.msra.mxu0 %v150
    %4231 = vmatprep.subr.mxu0 0.0
    %4232 = vmatpush1.msra.mxu0 %v153
    %4233 = vmatprep.subr.mxu0 0.0
    %4234 = vmatpush1.msra.mxu0 0.0
    %4235 = vmatprep.subr.mxu0 0.0
    %4236 = vmatpush1.msra.mxu0 0.0
    %4237 = vmatprep.subr.mxu0 0.0
    %4238 = vmatpush1.msra.mxu0 0.0
    %4239 = vmatprep.subr.mxu0 0.0
    %4240 = vmatpush1.msra.mxu0 0.0
    %4241 = vmatprep.subr.mxu0 0.0
    %4242 = vmatpush1.msra.mxu0 0.0
    %4243 = vmatprep.subr.mxu0 0.0
    %4244 = vmatpush1.msra.mxu0 0.0
    %4245 = vmatprep.subr.mxu0 0.0
    %4246 = vmatpush1.msra.mxu0 0.0
    %4247 = vmatprep.subr.mxu0 0.0
    %4248 = vmatpush1.msra.mxu0 0.0
    %4249 = vmatprep.subr.mxu0 0.0
    %4250 = vmatpush1.msra.mxu0 0.0
    %4251 = vmatprep.subr.mxu0 0.0
    %4252 = vmatpush1.msra.mxu0 0.0
    %4253 = vmatprep.subr.mxu0 0.0
    %4254 = vmatpush1.msra.mxu0 0.0
    %4255 = vmatprep.subr.mxu0 0.0
    %4256 = vmatpush1.msra.mxu0 0.0
    %4257 = vmatprep.subr.mxu0 0.0
    %4258 = vmatpush1.msra.mxu0 0.0
    %4259 = vmatprep.subr.mxu0 0.0
    %4260 = vmatpush1.msra.mxu0 0.0
    %4261 = vmatprep.subr.mxu0 0.0
    %4262 = vmatpush1.msra.mxu0 0.0
    %4263 = vmatprep.subr.mxu0 0.0
    %4264 = vmatpush1.msra.mxu0 0.0
    %4265 = vmatprep.mubr.f32.mxu0 0.0
    %4266 = vmatmul.mubr.f32.gmra.mrb[0].mxu0 %v4129
    %v4267 = vpop.f32.mrb[0].mxu0
    %v4268 = vadd.f32 %v307, %v4267
    %v4269 = vpop.f32.mrb[0].mxu0
    %4270 = vdwg.mxu0
    %4271 = vmatprep.subr.mxu0 %v155
    %4272 = vmatpush1.msra.mxu0 %v154
    %4273 = vmatprep.subr.mxu0 %v158
    %4274 = vmatpush1.msra.mxu0 %v157
    %4275 = vmatprep.subr.mxu0 %v161
    %4276 = vmatpush1.msra.mxu0 %v160
    %4277 = vmatprep.subr.mxu0 %v164
    %4278 = vmatpush1.msra.mxu0 %v163
    %4279 = vmatprep.subr.mxu0 %v167
    %4280 = vmatpush1.msra.mxu0 %v166
    %4281 = vmatprep.subr.mxu0 %v170
    %4282 = vmatpush1.msra.mxu0 %v169
    %4283 = vmatprep.subr.mxu0 %v173
    %4284 = vmatpush1.msra.mxu0 %v172
    %4285 = vmatprep.subr.mxu0 %v176
    %4286 = vmatpush1.msra.mxu0 %v175
    %4287 = vmatprep.subr.mxu0 %v179
    %4288 = vmatpush1.msra.mxu0 %v178
    %4289 = vmatprep.subr.mxu0 %v182
    %4290 = vmatpush1.msra.mxu0 %v181
    %4291 = vmatprep.subr.mxu0 %v185
    %4292 = vmatpush1.msra.mxu0 %v184
    %4293 = vmatprep.subr.mxu0 %v188
    %4294 = vmatpush1.msra.mxu0 %v187
    %4295 = vmatprep.subr.mxu0 %v191
    %4296 = vmatpush1.msra.mxu0 %v190
    %4297 = vmatprep.subr.mxu0 %v194
    %4298 = vmatpush1.msra.mxu0 %v193
    %4299 = vmatprep.subr.mxu0 %v197
    %4300 = vmatpush1.msra.mxu0 %v196
    %4301 = vmatprep.subr.mxu0 %v200
    %4302 = vmatpush1.msra.mxu0 %v199
    %4303 = vmatprep.subr.mxu0 0.0
    %4304 = vmatpush1.msra.mxu0 0.0
    %4305 = vmatprep.subr.mxu0 0.0
    %4306 = vmatpush1.msra.mxu0 0.0
    %4307 = vmatprep.subr.mxu0 0.0
    %4308 = vmatpush1.msra.mxu0 0.0
    %4309 = vmatprep.subr.mxu0 0.0
    %4310 = vmatpush1.msra.mxu0 0.0
    %4311 = vmatprep.subr.mxu0 0.0
    %4312 = vmatpush1.msra.mxu0 0.0
    %4313 = vmatprep.subr.mxu0 0.0
    %4314 = vmatpush1.msra.mxu0 0.0
    %4315 = vmatprep.subr.mxu0 0.0
    %4316 = vmatpush1.msra.mxu0 0.0
    %4317 = vmatprep.subr.mxu0 0.0
    %4318 = vmatpush1.msra.mxu0 0.0
    %4319 = vmatprep.subr.mxu0 0.0
    %4320 = vmatpush1.msra.mxu0 0.0
    %4321 = vmatprep.subr.mxu0 0.0
    %4322 = vmatpush1.msra.mxu0 0.0
    %4323 = vmatprep.subr.mxu0 0.0
    %4324 = vmatpush1.msra.mxu0 0.0
    %4325 = vmatprep.subr.mxu0 0.0
    %4326 = vmatpush1.msra.mxu0 0.0
    %4327 = vmatprep.subr.mxu0 0.0
    %4328 = vmatpush1.msra.mxu0 0.0
    %4329 = vmatprep.subr.mxu0 0.0
    %4330 = vmatpush1.msra.mxu0 0.0
    %4331 = vmatprep.subr.mxu0 0.0
    %4332 = vmatpush1.msra.mxu0 0.0
    %4333 = vmatprep.subr.mxu0 0.0
    %4334 = vmatpush1.msra.mxu0 0.0
    %4335 = vmatprep.mubr.f32.mxu0 0.0
    %4336 = vmatmul.mubr.f32.gmra.mrb[0].mxu0 %v3957
    %v4337 = vpop.f32.mrb[0].mxu0
    %v4338 = vadd.f32 0.0, %v4337
    %v4339 = vpop.f32.mrb[0].mxu0
    %v4340 = vadd.f32 0.0, %v4339
    %4341 = vdwg.mxu0
    %4342 = vmatprep.subr.mxu0 0.0
    %4343 = vmatpush1.msra.mxu0 %v156
    %4344 = vmatprep.subr.mxu0 0.0
    %4345 = vmatpush1.msra.mxu0 %v159
    %4346 = vmatprep.subr.mxu0 0.0
    %4347 = vmatpush1.msra.mxu0 %v162
    %4348 = vmatprep.subr.mxu0 0.0
    %4349 = vmatpush1.msra.mxu0 %v165
    %4350 = vmatprep.subr.mxu0 0.0
    %4351 = vmatpush1.msra.mxu0 %v168
    %4352 = vmatprep.subr.mxu0 0.0
    %4353 = vmatpush1.msra.mxu0 %v171
    %4354 = vmatprep.subr.mxu0 0.0
    %4355 = vmatpush1.msra.mxu0 %v174
    %4356 = vmatprep.subr.mxu0 0.0
    %4357 = vmatpush1.msra.mxu0 %v177
    %4358 = vmatprep.subr.mxu0 0.0
    %4359 = vmatpush1.msra.mxu0 %v180
    %4360 = vmatprep.subr.mxu0 0.0
    %4361 = vmatpush1.msra.mxu0 %v183
    %4362 = vmatprep.subr.mxu0 0.0
    %4363 = vmatpush1.msra.mxu0 %v186
    %4364 = vmatprep.subr.mxu0 0.0
    %4365 = vmatpush1.msra.mxu0 %v189
    %4366 = vmatprep.subr.mxu0 0.0
    %4367 = vmatpush1.msra.mxu0 %v192
    %4368 = vmatprep.subr.mxu0 0.0
    %4369 = vmatpush1.msra.mxu0 %v195
    %4370 = vmatprep.subr.mxu0 0.0
    %4371 = vmatpush1.msra.mxu0 %v198
    %4372 = vmatprep.subr.mxu0 0.0
    %4373 = vmatpush1.msra.mxu0 %v201
    %4374 = vmatprep.subr.mxu0 0.0
    %4375 = vmatpush1.msra.mxu0 0.0
    %4376 = vmatprep.subr.mxu0 0.0
    %4377 = vmatpush1.msra.mxu0 0.0
    %4378 = vmatprep.subr.mxu0 0.0
    %4379 = vmatpush1.msra.mxu0 0.0
    %4380 = vmatprep.subr.mxu0 0.0
    %4381 = vmatpush1.msra.mxu0 0.0
    %4382 = vmatprep.subr.mxu0 0.0
    %4383 = vmatpush1.msra.mxu0 0.0
    %4384 = vmatprep.subr.mxu0 0.0
    %4385 = vmatpush1.msra.mxu0 0.0
    %4386 = vmatprep.subr.mxu0 0.0
    %4387 = vmatpush1.msra.mxu0 0.0
    %4388 = vmatprep.subr.mxu0 0.0
    %4389 = vmatpush1.msra.mxu0 0.0
    %4390 = vmatprep.subr.mxu0 0.0
    %4391 = vmatpush1.msra.mxu0 0.0
    %4392 = vmatprep.subr.mxu0 0.0
    %4393 = vmatpush1.msra.mxu0 0.0
    %4394 = vmatprep.subr.mxu0 0.0
    %4395 = vmatpush1.msra.mxu0 0.0
    %4396 = vmatprep.subr.mxu0 0.0
    %4397 = vmatpush1.msra.mxu0 0.0
    %4398 = vmatprep.subr.mxu0 0.0
    %4399 = vmatpush1.msra.mxu0 0.0
    %4400 = vmatprep.subr.mxu0 0.0
    %4401 = vmatpush1.msra.mxu0 0.0
    %4402 = vmatprep.subr.mxu0 0.0
    %4403 = vmatpush1.msra.mxu0 0.0
    %4404 = vmatprep.subr.mxu0 0.0
    %4405 = vmatpush1.msra.mxu0 0.0
    %4406 = vmatprep.mubr.f32.mxu0 0.0
    %4407 = vmatmul.mubr.f32.gmra.mrb[0].mxu0 %v3957
    %v4408 = vpop.f32.mrb[0].mxu0
    %v4409 = vadd.f32 0.0, %v4408
    %v4410 = vpop.f32.mrb[0].mxu0
    %4411 = vdwg.mxu0
    %v4412 = vadd.f32 %v4197, %v4338
    %v4413 = vxor.u32 %v4412, 2147483648
    %v4414 = vmul.f32 %v4413, 1.442695
    %v4415 = vpow.pop %v4414
    %v4416 = vadd.f32 %v4415, 1.0
    %v4417 = vrcp.pop %v4416
    %v4418 = vmul.f32 1.0, %v4417
    %v4419 = vadd.f32 %v4199, %v4340
    %v4420 = vxor.u32 %v4419, 2147483648
    %v4421 = vmul.f32 %v4420, 1.442695
    %v4422 = vpow.pop %v4421
    %v4423 = vadd.f32 %v4422, 1.0
    %v4424 = vrcp.pop %v4423
    %v4425 = vmul.f32 1.0, %v4424
    %v4426 = vadd.f32 %v4409, %v611
    %v4427 = vmul.f32 %v4418, %v4426
    %v4428 = vadd.f32 %v4268, %v4427
    %v4429 = vtanh.pop %v4428
    %v4430 = vsub.f32 1.0, %v4425
    %v4431 = vmul.f32 %v4430, %v4429
    %v4432 = vmul.f32 %v4425, %v3957
    %v4433 = vadd.f32 %v4431, %v4432
    %4434 = vmatprep.subr.mxu0 0.0
    %4435 = vmatpush1.msra.mxu0 %v204
    %4436 = vmatprep.subr.mxu0 0.0
    %4437 = vmatpush1.msra.mxu0 %v205
    %4438 = vmatprep.subr.mxu0 0.0
    %4439 = vmatpush1.msra.mxu0 %v206
    %4440 = vmatprep.subr.mxu0 0.0
    %4441 = vmatpush1.msra.mxu0 %v207
    %4442 = vmatprep.subr.mxu0 0.0
    %4443 = vmatpush1.msra.mxu0 %v208
    %4444 = vmatprep.subr.mxu0 0.0
    %4445 = vmatpush1.msra.mxu0 %v209
    %4446 = vmatprep.subr.mxu0 0.0
    %4447 = vmatpush1.msra.mxu0 %v210
    %4448 = vmatprep.subr.mxu0 0.0
    %4449 = vmatpush1.msra.mxu0 %v211
    %4450 = vmatprep.subr.mxu0 0.0
    %4451 = vmatpush1.msra.mxu0 %v212
    %4452 = vmatprep.subr.mxu0 0.0
    %4453 = vmatpush1.msra.mxu0 %v213
    %4454 = vmatprep.subr.mxu0 0.0
    %4455 = vmatpush1.msra.mxu0 %v214
    %4456 = vmatprep.subr.mxu0 0.0
    %4457 = vmatpush1.msra.mxu0 %v215
    %4458 = vmatprep.subr.mxu0 0.0
    %4459 = vmatpush1.msra.mxu0 %v216
    %4460 = vmatprep.subr.mxu0 0.0
    %4461 = vmatpush1.msra.mxu0 %v217
    %4462 = vmatprep.subr.mxu0 0.0
    %4463 = vmatpush1.msra.mxu0 %v218
    %4464 = vmatprep.subr.mxu0 0.0
    %4465 = vmatpush1.msra.mxu0 %v219
    %4466 = vmatprep.subr.mxu0 0.0
    %4467 = vmatpush1.msra.mxu0 0.0
    %4468 = vmatprep.subr.mxu0 0.0
    %4469 = vmatpush1.msra.mxu0 0.0
    %4470 = vmatprep.subr.mxu0 0.0
    %4471 = vmatpush1.msra.mxu0 0.0
    %4472 = vmatprep.subr.mxu0 0.0
    %4473 = vmatpush1.msra.mxu0 0.0
    %4474 = vmatprep.subr.mxu0 0.0
    %4475 = vmatpush1.msra.mxu0 0.0
    %4476 = vmatprep.subr.mxu0 0.0
    %4477 = vmatpush1.msra.mxu0 0.0
    %4478 = vmatprep.subr.mxu0 0.0
    %4479 = vmatpush1.msra.mxu0 0.0
    %4480 = vmatprep.subr.mxu0 0.0
    %4481 = vmatpush1.msra.mxu0 0.0
    %4482 = vmatprep.subr.mxu0 0.0
    %4483 = vmatpush1.msra.mxu0 0.0
    %4484 = vmatprep.subr.mxu0 0.0
    %4485 = vmatpush1.msra.mxu0 0.0
    %4486 = vmatprep.subr.mxu0 0.0
    %4487 = vmatpush1.msra.mxu0 0.0
    %4488 = vmatprep.subr.mxu0 0.0
    %4489 = vmatpush1.msra.mxu0 0.0
    %4490 = vmatprep.subr.mxu0 0.0
    %4491 = vmatpush1.msra.mxu0 0.0
    %4492 = vmatprep.subr.mxu0 0.0
    %4493 = vmatpush1.msra.mxu0 0.0
    %4494 = vmatprep.subr.mxu0 0.0
    %4495 = vmatpush1.msra.mxu0 0.0
    %4496 = vmatprep.subr.mxu0 0.0
    %4497 = vmatpush1.msra.mxu0 0.0
    %4498 = vmatprep.mubr.f32.mxu0 0.0
    %4499 = vmatmul.mubr.f32.gmra.mrb[0].mxu0 %v4433
    %v4500 = vpop.f32.mrb[0].mxu0
    %v4501 = vadd.f32 %v625, %v4500
    %v4502 = vpop.f32.mrb[0].mxu0
    %4503 = vdwg.mxu0
    %4504 = vmax.xlane.f32.xlu0 %v4501
    %v4505 = vpop.xlane.xlu0 %4504
    %v4506 = vsub.f32 %v4501, %v4505
    %v4507 = vmul.f32 %v4506, 1.442695
    %v4508 = vpow.pop %v4507
    %4509 = vadd.xlane.f32.xlu0 %v4508
    %v4510 = vpop.xlane.xlu0 %4509
    %v4511 = vlog2.pop %v4510
    %v4512 = vmul.f32 %v4511, 0.6931472
    %v4513 = vadd.f32 %v4512, %v4505
    %v4514 = vsub.f32 %v4501, %v4513
    %s4515 = scalar_lea.vmem [#allocation10], 64
    %4516 = vst [vmem:[%s4515] sm:$0xff] %v4514
    %vm4517 = vcmp.eq.f32.partialorder %v4501, %v4505
    %v4518 = vsel %vm4517, %v89, 128
    %v4519 = vand.u32 %v4518, 65535
    %v4520 = vshra.s32 %v4518, 16
    %v4521 = vcvt.s32.f32 %v4519
    %v4522 = vcvt.s32.f32 %v4520
    %4523 = vmin.xlane.f32.xlu0 %v4522
    %v4524 = vpop.xlane.xlu0 %4523
    %vm4525 = vcmp.eq.f32.partialorder %v4522, %v4524
    %v4526 = vsel %vm4525, %v4521, inf
    %4527 = vmin.xlane.f32.xlu0 %v4526
    %v4528 = vpop.xlane.xlu0 %4527
    %v4529 = vcvt.f32.s32 %v4528
    %v4530 = vcvt.f32.s32 %v4524
    %v4531 = vshll.u32 %v4530, 16
    %v4532 = vadd.s32 %v4531, %v4529
    %vm4533 = vcmp.eq.s32.totalorder %v89, %v4532
    %v4534 = vsel %vm4533, 1.0, 0.0
    %4535 = vmatprep.subr.mxu0 0.0
    %4536 = vmatpush1.msra.mxu0 %v90
    %4537 = vmatprep.subr.mxu0 0.0
    %4538 = vmatpush1.msra.mxu0 %v91
    %4539 = vmatprep.subr.mxu0 0.0
    %4540 = vmatpush1.msra.mxu0 %v92
    %4541 = vmatprep.subr.mxu0 0.0
    %4542 = vmatpush1.msra.mxu0 %v93
    %4543 = vmatprep.subr.mxu0 0.0
    %4544 = vmatpush1.msra.mxu0 %v94
    %4545 = vmatprep.subr.mxu0 0.0
    %4546 = vmatpush1.msra.mxu0 %v95
    %4547 = vmatprep.subr.mxu0 0.0
    %4548 = vmatpush1.msra.mxu0 %v96
    %4549 = vmatprep.subr.mxu0 0.0
    %4550 = vmatpush1.msra.mxu0 %v97
    %4551 = vmatprep.subr.mxu0 0.0
    %4552 = vmatpush1.msra.mxu0 %v98
    %4553 = vmatprep.subr.mxu0 0.0
    %4554 = vmatpush1.msra.mxu0 %v99
    %4555 = vmatprep.subr.mxu0 0.0
    %4556 = vmatpush1.msra.mxu0 %v100
    %4557 = vmatprep.subr.mxu0 0.0
    %4558 = vmatpush1.msra.mxu0 %v101
    %4559 = vmatprep.subr.mxu0 0.0
    %4560 = vmatpush1.msra.mxu0 %v102
    %4561 = vmatprep.subr.mxu0 0.0
    %4562 = vmatpush1.msra.mxu0 %v103
    %4563 = vmatprep.subr.mxu0 0.0
    %4564 = vmatpush1.msra.mxu0 %v104
    %4565 = vmatprep.subr.mxu0 0.0
    %4566 = vmatpush1.msra.mxu0 %v105
    %4567 = vmatprep.subr.mxu0 0.0
    %4568 = vmatpush1.msra.mxu0 0.0
    %4569 = vmatprep.subr.mxu0 0.0
    %4570 = vmatpush1.msra.mxu0 0.0
    %4571 = vmatprep.subr.mxu0 0.0
    %4572 = vmatpush1.msra.mxu0 0.0
    %4573 = vmatprep.subr.mxu0 0.0
    %4574 = vmatpush1.msra.mxu0 0.0
    %4575 = vmatprep.subr.mxu0 0.0
    %4576 = vmatpush1.msra.mxu0 0.0
    %4577 = vmatprep.subr.mxu0 0.0
    %4578 = vmatpush1.msra.mxu0 0.0
    %4579 = vmatprep.subr.mxu0 0.0
    %4580 = vmatpush1.msra.mxu0 0.0
    %4581 = vmatprep.subr.mxu0 0.0
    %4582 = vmatpush1.msra.mxu0 0.0
    %4583 = vmatprep.subr.mxu0 0.0
    %4584 = vmatpush1.msra.mxu0 0.0
    %4585 = vmatprep.subr.mxu0 0.0
    %4586 = vmatpush1.msra.mxu0 0.0
    %4587 = vmatprep.subr.mxu0 0.0
    %4588 = vmatpush1.msra.mxu0 0.0
    %4589 = vmatprep.subr.mxu0 0.0
    %4590 = vmatpush1.msra.mxu0 0.0
    %4591 = vmatprep.subr.mxu0 0.0
    %4592 = vmatpush1.msra.mxu0 0.0
    %4593 = vmatprep.subr.mxu0 0.0
    %4594 = vmatpush1.msra.mxu0 0.0
    %4595 = vmatprep.subr.mxu0 0.0
    %4596 = vmatpush1.msra.mxu0 0.0
    %4597 = vmatprep.subr.mxu0 0.0
    %4598 = vmatpush1.msra.mxu0 0.0
    %4599 = vmatprep.mubr.f32.mxu0 0.0
    %4600 = vmatmul.mubr.f32.gmra.mrb[0].mxu0 %v4534
    %v4601 = vpop.f32.mrb[0].mxu0
    %v4602 = vadd.f32 0.0, %v4601
    %v4603 = vpop.f32.mrb[0].mxu0
    %4604 = vdwg.mxu0
    %v4605 = vmax.f32 %v4602, 0.0
    %4606 = vmatprep.subr.mxu0 %v107
    %4607 = vmatpush1.msra.mxu0 %v106
    %4608 = vmatprep.subr.mxu0 %v110
    %4609 = vmatpush1.msra.mxu0 %v109
    %4610 = vmatprep.subr.mxu0 %v113
    %4611 = vmatpush1.msra.mxu0 %v112
    %4612 = vmatprep.subr.mxu0 %v116
    %4613 = vmatpush1.msra.mxu0 %v115
    %4614 = vmatprep.subr.mxu0 %v119
    %4615 = vmatpush1.msra.mxu0 %v118
    %4616 = vmatprep.subr.mxu0 %v122
    %4617 = vmatpush1.msra.mxu0 %v121
    %4618 = vmatprep.subr.mxu0 %v125
    %4619 = vmatpush1.msra.mxu0 %v124
    %4620 = vmatprep.subr.mxu0 %v128
    %4621 = vmatpush1.msra.mxu0 %v127
    %4622 = vmatprep.subr.mxu0 %v131
    %4623 = vmatpush1.msra.mxu0 %v130
    %4624 = vmatprep.subr.mxu0 %v134
    %4625 = vmatpush1.msra.mxu0 %v133
    %4626 = vmatprep.subr.mxu0 %v137
    %4627 = vmatpush1.msra.mxu0 %v136
    %4628 = vmatprep.subr.mxu0 %v140
    %4629 = vmatpush1.msra.mxu0 %v139
    %4630 = vmatprep.subr.mxu0 %v143
    %4631 = vmatpush1.msra.mxu0 %v142
    %4632 = vmatprep.subr.mxu0 %v146
    %4633 = vmatpush1.msra.mxu0 %v145
    %4634 = vmatprep.subr.mxu0 %v149
    %4635 = vmatpush1.msra.mxu0 %v148
    %4636 = vmatprep.subr.mxu0 %v152
    %4637 = vmatpush1.msra.mxu0 %v151
    %4638 = vmatprep.subr.mxu0 0.0
    %4639 = vmatpush1.msra.mxu0 0.0
    %4640 = vmatprep.subr.mxu0 0.0
    %4641 = vmatpush1.msra.mxu0 0.0
    %4642 = vmatprep.subr.mxu0 0.0
    %4643 = vmatpush1.msra.mxu0 0.0
    %4644 = vmatprep.subr.mxu0 0.0
    %4645 = vmatpush1.msra.mxu0 0.0
    %4646 = vmatprep.subr.mxu0 0.0
    %4647 = vmatpush1.msra.mxu0 0.0
    %4648 = vmatprep.subr.mxu0 0.0
    %4649 = vmatpush1.msra.mxu0 0.0
    %4650 = vmatprep.subr.mxu0 0.0
    %4651 = vmatpush1.msra.mxu0 0.0
    %4652 = vmatprep.subr.mxu0 0.0
    %4653 = vmatpush1.msra.mxu0 0.0
    %4654 = vmatprep.subr.mxu0 0.0
    %4655 = vmatpush1.msra.mxu0 0.0
    %4656 = vmatprep.subr.mxu0 0.0
    %4657 = vmatpush1.msra.mxu0 0.0
    %4658 = vmatprep.subr.mxu0 0.0
    %4659 = vmatpush1.msra.mxu0 0.0
    %4660 = vmatprep.subr.mxu0 0.0
    %4661 = vmatpush1.msra.mxu0 0.0
    %4662 = vmatprep.subr.mxu0 0.0
    %4663 = vmatpush1.msra.mxu0 0.0
    %4664 = vmatprep.subr.mxu0 0.0
    %4665 = vmatpush1.msra.mxu0 0.0
    %4666 = vmatprep.subr.mxu0 0.0
    %4667 = vmatpush1.msra.mxu0 0.0
    %4668 = vmatprep.subr.mxu0 0.0
    %4669 = vmatpush1.msra.mxu0 0.0
    %4670 = vmatprep.mubr.f32.mxu0 0.0
    %4671 = vmatmul.mubr.f32.gmra.mrb[0].mxu0 %v4605
    %v4672 = vpop.f32.mrb[0].mxu0
    %v4673 = vadd.f32 %v299, %v4672
    %v4674 = vpop.f32.mrb[0].mxu0
    %v4675 = vadd.f32 %v303, %v4674
    %4676 = vdwg.mxu0
    %4677 = vmatprep.subr.mxu0 0.0
    %4678 = vmatpush1.msra.mxu0 %v108
    %4679 = vmatprep.subr.mxu0 0.0
    %4680 = vmatpush1.msra.mxu0 %v111
    %4681 = vmatprep.subr.mxu0 0.0
    %4682 = vmatpush1.msra.mxu0 %v114
    %4683 = vmatprep.subr.mxu0 0.0
    %4684 = vmatpush1.msra.mxu0 %v117
    %4685 = vmatprep.subr.mxu0 0.0
    %4686 = vmatpush1.msra.mxu0 %v120
    %4687 = vmatprep.subr.mxu0 0.0
    %4688 = vmatpush1.msra.mxu0 %v123
    %4689 = vmatprep.subr.mxu0 0.0
    %4690 = vmatpush1.msra.mxu0 %v126
    %4691 = vmatprep.subr.mxu0 0.0
    %4692 = vmatpush1.msra.mxu0 %v129
    %4693 = vmatprep.subr.mxu0 0.0
    %4694 = vmatpush1.msra.mxu0 %v132
    %4695 = vmatprep.subr.mxu0 0.0
    %4696 = vmatpush1.msra.mxu0 %v135
    %4697 = vmatprep.subr.mxu0 0.0
    %4698 = vmatpush1.msra.mxu0 %v138
    %4699 = vmatprep.subr.mxu0 0.0
    %4700 = vmatpush1.msra.mxu0 %v141
    %4701 = vmatprep.subr.mxu0 0.0
    %4702 = vmatpush1.msra.mxu0 %v144
    %4703 = vmatprep.subr.mxu0 0.0
    %4704 = vmatpush1.msra.mxu0 %v147
    %4705 = vmatprep.subr.mxu0 0.0
    %4706 = vmatpush1.msra.mxu0 %v150
    %4707 = vmatprep.subr.mxu0 0.0
    %4708 = vmatpush1.msra.mxu0 %v153
    %4709 = vmatprep.subr.mxu0 0.0
    %4710 = vmatpush1.msra.mxu0 0.0
    %4711 = vmatprep.subr.mxu0 0.0
    %4712 = vmatpush1.msra.mxu0 0.0
    %4713 = vmatprep.subr.mxu0 0.0
    %4714 = vmatpush1.msra.mxu0 0.0
    %4715 = vmatprep.subr.mxu0 0.0
    %4716 = vmatpush1.msra.mxu0 0.0
    %4717 = vmatprep.subr.mxu0 0.0
    %4718 = vmatpush1.msra.mxu0 0.0
    %4719 = vmatprep.subr.mxu0 0.0
    %4720 = vmatpush1.msra.mxu0 0.0
    %4721 = vmatprep.subr.mxu0 0.0
    %4722 = vmatpush1.msra.mxu0 0.0
    %4723 = vmatprep.subr.mxu0 0.0
    %4724 = vmatpush1.msra.mxu0 0.0
    %4725 = vmatprep.subr.mxu0 0.0
    %4726 = vmatpush1.msra.mxu0 0.0
    %4727 = vmatprep.subr.mxu0 0.0
    %4728 = vmatpush1.msra.mxu0 0.0
    %4729 = vmatprep.subr.mxu0 0.0
    %4730 = vmatpush1.msra.mxu0 0.0
    %4731 = vmatprep.subr.mxu0 0.0
    %4732 = vmatpush1.msra.mxu0 0.0
    %4733 = vmatprep.subr.mxu0 0.0
    %4734 = vmatpush1.msra.mxu0 0.0
    %4735 = vmatprep.subr.mxu0 0.0
    %4736 = vmatpush1.msra.mxu0 0.0
    %4737 = vmatprep.subr.mxu0 0.0
    %4738 = vmatpush1.msra.mxu0 0.0
    %4739 = vmatprep.subr.mxu0 0.0
    %4740 = vmatpush1.msra.mxu0 0.0
    %4741 = vmatprep.mubr.f32.mxu0 0.0
    %4742 = vmatmul.mubr.f32.gmra.mrb[0].mxu0 %v4605
    %v4743 = vpop.f32.mrb[0].mxu0
    %v4744 = vadd.f32 %v307, %v4743
    %v4745 = vpop.f32.mrb[0].mxu0
    %4746 = vdwg.mxu0
    %4747 = vmatprep.subr.mxu0 %v155
    %4748 = vmatpush1.msra.mxu0 %v154
    %4749 = vmatprep.subr.mxu0 %v158
    %4750 = vmatpush1.msra.mxu0 %v157
    %4751 = vmatprep.subr.mxu0 %v161
    %4752 = vmatpush1.msra.mxu0 %v160
    %4753 = vmatprep.subr.mxu0 %v164
    %4754 = vmatpush1.msra.mxu0 %v163
    %4755 = vmatprep.subr.mxu0 %v167
    %4756 = vmatpush1.msra.mxu0 %v166
    %4757 = vmatprep.subr.mxu0 %v170
    %4758 = vmatpush1.msra.mxu0 %v169
    %4759 = vmatprep.subr.mxu0 %v173
    %4760 = vmatpush1.msra.mxu0 %v172
    %4761 = vmatprep.subr.mxu0 %v176
    %4762 = vmatpush1.msra.mxu0 %v175
    %4763 = vmatprep.subr.mxu0 %v179
    %4764 = vmatpush1.msra.mxu0 %v178
    %4765 = vmatprep.subr.mxu0 %v182
    %4766 = vmatpush1.msra.mxu0 %v181
    %4767 = vmatprep.subr.mxu0 %v185
    %4768 = vmatpush1.msra.mxu0 %v184
    %4769 = vmatprep.subr.mxu0 %v188
    %4770 = vmatpush1.msra.mxu0 %v187
    %4771 = vmatprep.subr.mxu0 %v191
    %4772 = vmatpush1.msra.mxu0 %v190
    %4773 = vmatprep.subr.mxu0 %v194
    %4774 = vmatpush1.msra.mxu0 %v193
    %4775 = vmatprep.subr.mxu0 %v197
    %4776 = vmatpush1.msra.mxu0 %v196
    %4777 = vmatprep.subr.mxu0 %v200
    %4778 = vmatpush1.msra.mxu0 %v199
    %4779 = vmatprep.subr.mxu0 0.0
    %4780 = vmatpush1.msra.mxu0 0.0
    %4781 = vmatprep.subr.mxu0 0.0
    %4782 = vmatpush1.msra.mxu0 0.0
    %4783 = vmatprep.subr.mxu0 0.0
    %4784 = vmatpush1.msra.mxu0 0.0
    %4785 = vmatprep.subr.mxu0 0.0
    %4786 = vmatpush1.msra.mxu0 0.0
    %4787 = vmatprep.subr.mxu0 0.0
    %4788 = vmatpush1.msra.mxu0 0.0
    %4789 = vmatprep.subr.mxu0 0.0
    %4790 = vmatpush1.msra.mxu0 0.0
    %4791 = vmatprep.subr.mxu0 0.0
    %4792 = vmatpush1.msra.mxu0 0.0
    %4793 = vmatprep.subr.mxu0 0.0
    %4794 = vmatpush1.msra.mxu0 0.0
    %4795 = vmatprep.subr.mxu0 0.0
    %4796 = vmatpush1.msra.mxu0 0.0
    %4797 = vmatprep.subr.mxu0 0.0
    %4798 = vmatpush1.msra.mxu0 0.0
    %4799 = vmatprep.subr.mxu0 0.0
    %4800 = vmatpush1.msra.mxu0 0.0
    %4801 = vmatprep.subr.mxu0 0.0
    %4802 = vmatpush1.msra.mxu0 0.0
    %4803 = vmatprep.subr.mxu0 0.0
    %4804 = vmatpush1.msra.mxu0 0.0
    %4805 = vmatprep.subr.mxu0 0.0
    %4806 = vmatpush1.msra.mxu0 0.0
    %4807 = vmatprep.subr.mxu0 0.0
    %4808 = vmatpush1.msra.mxu0 0.0
    %4809 = vmatprep.subr.mxu0 0.0
    %4810 = vmatpush1.msra.mxu0 0.0
    %4811 = vmatprep.mubr.f32.mxu0 0.0
    %4812 = vmatmul.mubr.f32.gmra.mrb[0].mxu0 %v4433
    %v4813 = vpop.f32.mrb[0].mxu0
    %v4814 = vadd.f32 0.0, %v4813
    %v4815 = vpop.f32.mrb[0].mxu0
    %v4816 = vadd.f32 0.0, %v4815
    %4817 = vdwg.mxu0
    %4818 = vmatprep.subr.mxu0 0.0
    %4819 = vmatpush1.msra.mxu0 %v156
    %4820 = vmatprep.subr.mxu0 0.0
    %4821 = vmatpush1.msra.mxu0 %v159
    %4822 = vmatprep.subr.mxu0 0.0
    %4823 = vmatpush1.msra.mxu0 %v162
    %4824 = vmatprep.subr.mxu0 0.0
    %4825 = vmatpush1.msra.mxu0 %v165
    %4826 = vmatprep.subr.mxu0 0.0
    %4827 = vmatpush1.msra.mxu0 %v168
    %4828 = vmatprep.subr.mxu0 0.0
    %4829 = vmatpush1.msra.mxu0 %v171
    %4830 = vmatprep.subr.mxu0 0.0
    %4831 = vmatpush1.msra.mxu0 %v174
    %4832 = vmatprep.subr.mxu0 0.0
    %4833 = vmatpush1.msra.mxu0 %v177
    %4834 = vmatprep.subr.mxu0 0.0
    %4835 = vmatpush1.msra.mxu0 %v180
    %4836 = vmatprep.subr.mxu0 0.0
    %4837 = vmatpush1.msra.mxu0 %v183
    %4838 = vmatprep.subr.mxu0 0.0
    %4839 = vmatpush1.msra.mxu0 %v186
    %4840 = vmatprep.subr.mxu0 0.0
    %4841 = vmatpush1.msra.mxu0 %v189
    %4842 = vmatprep.subr.mxu0 0.0
    %4843 = vmatpush1.msra.mxu0 %v192
    %4844 = vmatprep.subr.mxu0 0.0
    %4845 = vmatpush1.msra.mxu0 %v195
    %4846 = vmatprep.subr.mxu0 0.0
    %4847 = vmatpush1.msra.mxu0 %v198
    %4848 = vmatprep.subr.mxu0 0.0
    %4849 = vmatpush1.msra.mxu0 %v201
    %4850 = vmatprep.subr.mxu0 0.0
    %4851 = vmatpush1.msra.mxu0 0.0
    %4852 = vmatprep.subr.mxu0 0.0
    %4853 = vmatpush1.msra.mxu0 0.0
    %4854 = vmatprep.subr.mxu0 0.0
    %4855 = vmatpush1.msra.mxu0 0.0
    %4856 = vmatprep.subr.mxu0 0.0
    %4857 = vmatpush1.msra.mxu0 0.0
    %4858 = vmatprep.subr.mxu0 0.0
    %4859 = vmatpush1.msra.mxu0 0.0
    %4860 = vmatprep.subr.mxu0 0.0
    %4861 = vmatpush1.msra.mxu0 0.0
    %4862 = vmatprep.subr.mxu0 0.0
    %4863 = vmatpush1.msra.mxu0 0.0
    %4864 = vmatprep.subr.mxu0 0.0
    %4865 = vmatpush1.msra.mxu0 0.0
    %4866 = vmatprep.subr.mxu0 0.0
    %4867 = vmatpush1.msra.mxu0 0.0
    %4868 = vmatprep.subr.mxu0 0.0
    %4869 = vmatpush1.msra.mxu0 0.0
    %4870 = vmatprep.subr.mxu0 0.0
    %4871 = vmatpush1.msra.mxu0 0.0
    %4872 = vmatprep.subr.mxu0 0.0
    %4873 = vmatpush1.msra.mxu0 0.0
    %4874 = vmatprep.subr.mxu0 0.0
    %4875 = vmatpush1.msra.mxu0 0.0
    %4876 = vmatprep.subr.mxu0 0.0
    %4877 = vmatpush1.msra.mxu0 0.0
    %4878 = vmatprep.subr.mxu0 0.0
    %4879 = vmatpush1.msra.mxu0 0.0
    %4880 = vmatprep.subr.mxu0 0.0
    %4881 = vmatpush1.msra.mxu0 0.0
    %4882 = vmatprep.mubr.f32.mxu0 0.0
    %4883 = vmatmul.mubr.f32.gmra.mrb[0].mxu0 %v4433
    %v4884 = vpop.f32.mrb[0].mxu0
    %v4885 = vadd.f32 0.0, %v4884
    %v4886 = vpop.f32.mrb[0].mxu0
    %4887 = vdwg.mxu0
    %v4888 = vadd.f32 %v4673, %v4814
    %v4889 = vxor.u32 %v4888, 2147483648
    %v4890 = vmul.f32 %v4889, 1.442695
    %v4891 = vpow.pop %v4890
    %v4892 = vadd.f32 %v4891, 1.0
    %v4893 = vrcp.pop %v4892
    %v4894 = vmul.f32 1.0, %v4893
    %v4895 = vadd.f32 %v4675, %v4816
    %v4896 = vxor.u32 %v4895, 2147483648
    %v4897 = vmul.f32 %v4896, 1.442695
    %v4898 = vpow.pop %v4897
    %v4899 = vadd.f32 %v4898, 1.0
    %v4900 = vrcp.pop %v4899
    %v4901 = vmul.f32 1.0, %v4900
    %v4902 = vadd.f32 %v4885, %v611
    %v4903 = vmul.f32 %v4894, %v4902
    %v4904 = vadd.f32 %v4744, %v4903
    %v4905 = vtanh.pop %v4904
    %v4906 = vsub.f32 1.0, %v4901
    %v4907 = vmul.f32 %v4906, %v4905
    %v4908 = vmul.f32 %v4901, %v4433
    %v4909 = vadd.f32 %v4907, %v4908
    %4910 = vmatprep.subr.mxu0 0.0
    %4911 = vmatpush1.msra.mxu0 %v204
    %4912 = vmatprep.subr.mxu0 0.0
    %4913 = vmatpush1.msra.mxu0 %v205
    %4914 = vmatprep.subr.mxu0 0.0
    %4915 = vmatpush1.msra.mxu0 %v206
    %4916 = vmatprep.subr.mxu0 0.0
    %4917 = vmatpush1.msra.mxu0 %v207
    %4918 = vmatprep.subr.mxu0 0.0
    %4919 = vmatpush1.msra.mxu0 %v208
    %4920 = vmatprep.subr.mxu0 0.0
    %4921 = vmatpush1.msra.mxu0 %v209
    %4922 = vmatprep.subr.mxu0 0.0
    %4923 = vmatpush1.msra.mxu0 %v210
    %4924 = vmatprep.subr.mxu0 0.0
    %4925 = vmatpush1.msra.mxu0 %v211
    %4926 = vmatprep.subr.mxu0 0.0
    %4927 = vmatpush1.msra.mxu0 %v212
    %4928 = vmatprep.subr.mxu0 0.0
    %4929 = vmatpush1.msra.mxu0 %v213
    %4930 = vmatprep.subr.mxu0 0.0
    %4931 = vmatpush1.msra.mxu0 %v214
    %4932 = vmatprep.subr.mxu0 0.0
    %4933 = vmatpush1.msra.mxu0 %v215
    %4934 = vmatprep.subr.mxu0 0.0
    %4935 = vmatpush1.msra.mxu0 %v216
    %4936 = vmatprep.subr.mxu0 0.0
    %4937 = vmatpush1.msra.mxu0 %v217
    %4938 = vmatprep.subr.mxu0 0.0
    %4939 = vmatpush1.msra.mxu0 %v218
    %4940 = vmatprep.subr.mxu0 0.0
    %4941 = vmatpush1.msra.mxu0 %v219
    %4942 = vmatprep.subr.mxu0 0.0
    %4943 = vmatpush1.msra.mxu0 0.0
    %4944 = vmatprep.subr.mxu0 0.0
    %4945 = vmatpush1.msra.mxu0 0.0
    %4946 = vmatprep.subr.mxu0 0.0
    %4947 = vmatpush1.msra.mxu0 0.0
    %4948 = vmatprep.subr.mxu0 0.0
    %4949 = vmatpush1.msra.mxu0 0.0
    %4950 = vmatprep.subr.mxu0 0.0
    %4951 = vmatpush1.msra.mxu0 0.0
    %4952 = vmatprep.subr.mxu0 0.0
    %4953 = vmatpush1.msra.mxu0 0.0
    %4954 = vmatprep.subr.mxu0 0.0
    %4955 = vmatpush1.msra.mxu0 0.0
    %4956 = vmatprep.subr.mxu0 0.0
    %4957 = vmatpush1.msra.mxu0 0.0
    %4958 = vmatprep.subr.mxu0 0.0
    %4959 = vmatpush1.msra.mxu0 0.0
    %4960 = vmatprep.subr.mxu0 0.0
    %4961 = vmatpush1.msra.mxu0 0.0
    %4962 = vmatprep.subr.mxu0 0.0
    %4963 = vmatpush1.msra.mxu0 0.0
    %4964 = vmatprep.subr.mxu0 0.0
    %4965 = vmatpush1.msra.mxu0 0.0
    %4966 = vmatprep.subr.mxu0 0.0
    %4967 = vmatpush1.msra.mxu0 0.0
    %4968 = vmatprep.subr.mxu0 0.0
    %4969 = vmatpush1.msra.mxu0 0.0
    %4970 = vmatprep.subr.mxu0 0.0
    %4971 = vmatpush1.msra.mxu0 0.0
    %4972 = vmatprep.subr.mxu0 0.0
    %4973 = vmatpush1.msra.mxu0 0.0
    %4974 = vmatprep.mubr.f32.mxu0 0.0
    %4975 = vmatmul.mubr.f32.gmra.mrb[0].mxu0 %v4909
    %v4976 = vpop.f32.mrb[0].mxu0
    %v4977 = vadd.f32 %v625, %v4976
    %v4978 = vpop.f32.mrb[0].mxu0
    %4979 = vdwg.mxu0
    %4980 = vmax.xlane.f32.xlu0 %v4977
    %v4981 = vpop.xlane.xlu0 %4980
    %v4982 = vsub.f32 %v4977, %v4981
    %v4983 = vmul.f32 %v4982, 1.442695
    %v4984 = vpow.pop %v4983
    %4985 = vadd.xlane.f32.xlu0 %v4984
    %v4986 = vpop.xlane.xlu0 %4985
    %v4987 = vlog2.pop %v4986
    %v4988 = vmul.f32 %v4987, 0.6931472
    %v4989 = vadd.f32 %v4988, %v4981
    %v4990 = vsub.f32 %v4977, %v4989
    %s4991 = scalar_lea.vmem [#allocation10], 72
    %4992 = vst [vmem:[%s4991] sm:$0xff] %v4990
    %4993 = vst [vmem:[#allocation11] sm:$0xff] %v4909
    // Predicated region
    $region50: #{tpu_custom_call.1} parent=1 // pred_check
      _
    $region51: #{tpu_custom_call.1} parent=1 // pred_check_branch
      %4995 = sbr.rel (0) target = $region53
    $region52: #{tpu_custom_call.1} parent=1 // pred_region
      %s4997 = ssub.s32 1280, 1280
      %4998 = vsyncadd [#allocation4], %s4997
      %s4999 = sshll.u32 [#allocation10], 4
      %s5000 = int_to_ptr.vmem [resolvable:$true] %s4999
      %5005 = dma.vmem_to_hbm [thread:$0]  %s5000, 1280, %s8, [#allocation4], 128, 128, 8
    $region53: #{tpu_custom_call.1} parent=1 // pred_fallthru
      _
    // Predicated region
    $region54: #{tpu_custom_call.1} parent=1 // pred_check
      _
    $region55: #{tpu_custom_call.1} parent=1 // pred_check_branch
      %5007 = sbr.rel (0) target = $region57
    $region56: #{tpu_custom_call.1} parent=1 // pred_region
      %s5009 = ssub.s32 128, 128
      %5010 = vsyncadd [#allocation12], %s5009
      %s5012 = sshll.u32 [#allocation11], 4
      %s5013 = int_to_ptr.vmem [resolvable:$true] %s5012
      %5015 = dma.vmem_to_hbm [thread:$0]  %s5013, 128, %s9, [#allocation12]
    $region57: #{tpu_custom_call.1} parent=1 // pred_fallthru
      _
    // Predicated region
    $region58: #{tpu_custom_call.1} parent=1 // pred_check
      _
    $region59: #{tpu_custom_call.1} parent=1 // pred_check_branch
      %5017 = sbr.rel (0) target = $region61
    $region60: #{tpu_custom_call.1} parent=1 // pred_region
      %5018 = dma.done [#allocation4], 1280
    $region61: #{tpu_custom_call.1} parent=1 // pred_fallthru
      _
    // Predicated region
    $region62: #{tpu_custom_call.1} parent=1 // pred_check
      _
    $region63: #{tpu_custom_call.1} parent=1 // pred_check_branch
      %5020 = sbr.rel (0) target = $region65
    $region64: #{tpu_custom_call.1} parent=1 // pred_region
      %5021 = dma.done [#allocation12], 128
    $region65: #{tpu_custom_call.1} parent=1 // pred_fallthru
      _
    %5022 = vsyncpa [#allocation3], 1
    %5023 = vsyncpa [#allocation6], 1
    %5024 = vsyncpa [#allocation9], 1
    %5025 = vsyncpa [#allocation4], 1
    %5026 = vsyncpa [#allocation12], 1

</llo_original>
